<compile_context>
chip_gen: v5e
topology: v5e:2x2
jax: 0.10.0
libtpu: 0.0.40
codegen_flags: <defaults>
</compile_context>

<pallas_src>
import numpy as np
import jax
import jax.numpy as jnp
from jax.experimental import pallas as pl
from jax.experimental.pallas import tpu as pltpu

NEG_SLOPE = 0.01   # F.leaky_relu default negative_slope
PAD = 128          # lane padding on each side of the flattened spatial axis


def _leaky(v):
    return jnp.where(v >= 0, v, NEG_SLOPE * v)


def _ceil8(c):
    return max(8, ((c + 7) // 8) * 8)


# --------------------------- constant tables (built host-side) ---------------

def _conv_masks_np(H, W):
    """mask[t, i*W+j] = 1 iff tap t=(kh,kw) reads an in-bounds pixel."""
    m = np.zeros((9, H * W), np.float32)
    for t in range(9):
        dh, dw = t // 3 - 1, t % 3 - 1
        for i in range(H):
            for j in range(W):
                if 0 <= i + dh < H and 0 <= j + dw < W:
                    m[t, i * W + j] = 1.0
    return m


def _pool_matrix_np(H, W):
    """AvgPool2d(4,4,pad=1) applied to nearest-upsample-x2(y), expressed on y:
       out[oi,oj] = (1/16) sum_{d in {-1,0,1}^2} c(di)c(dj) y[2oi+di, 2oj+dj],
       c(0)=2, c(+-1)=1, out-of-range -> 0 (count_include_pad=True)."""
    Ho = (2 * H + 2 - 4) // 4 + 1
    Wo = (2 * W + 2 - 4) // 4 + 1
    c = {-1: 1.0, 0: 2.0, 1: 1.0}
    P = np.zeros((H * W, Ho * Wo), np.float32)
    for oi in range(Ho):
        for oj in range(Wo):
            for di in (-1, 0, 1):
                for dj in (-1, 0, 1):
                    i, j = 2 * oi + di, 2 * oj + dj
                    if 0 <= i < H and 0 <= j < W:
                        P[i * W + j, oi * Wo + oj] += c[di] * c[dj] / 16.0
    return P, Ho, Wo


def _prep_conv(w, b, cin_p, cout_p):
    """(3,3,Cin,Cout) HWIO -> (Cout_p, 9*Cin_p), tap-major / cin-minor; pad with 0."""
    cin, cout = w.shape[2], w.shape[3]
    wp = jnp.zeros((3, 3, cin_p, cout_p), jnp.float32).at[:, :, :cin, :cout].set(w)
    wk = jnp.transpose(wp.reshape(9, cin_p, cout_p), (2, 0, 1)).reshape(cout_p, 9 * cin_p)
    bk = jnp.zeros((cout_p, 1), jnp.float32).at[:cout, 0].set(b)
    return wk, bk


# --------------------------- fused forward (single pallas_call) --------------

def conv_branch2d_forward(params, x_nchw, cfg):
    N, C_in, H0, W0 = x_nchw.shape
    NL, NR, O = cfg["N_layers"], cfg["N_res"], cfg["out_channel"]
    fm = [C_in] + [2 ** i * cfg["multiply"] for i in range(NL)]

    # ---- static plan of all convs --------------------------------------
    convs = []
    h, w = H0, W0
    for i in range(NL):
        convs.append(dict(w=params["inv"][i][0], b=params["inv"][i][1],
                          cin=fm[i], cout=fm[i], H=h, W=w))
        convs.append(dict(w=params["cont"][i][0], b=params["cont"][i][1],
                          cin=fm[i], cout=fm[i + 1], H=h, W=w))
        h = (2 * h + 2 - 4) // 4 + 1
        w = (2 * w + 2 - 4) // 4 + 1
    for j in range(NR):
        convs.append(dict(w=params["res"][j][0], b=params["res"][j][1],
                          cin=fm[-1], cout=fm[-1], H=h, W=w))
    H_last, W_last, C_last = h, w, fm[-1]
    cp_last = _ceil8(C_last)
    assert max(cd["W"] for cd in convs) + 1 <= PAD

    # ---- kernel inputs ---------------------------------------------------
    inputs, in_specs = [], []

    def add_input(arr, block=None, index_map=None):
        arr = jnp.asarray(arr, jnp.float32)
        if block is None:
            nd = arr.ndim
            block, index_map = arr.shape, (lambda n, _nd=nd: (0,) * _nd)
        inputs.append(arr)
        in_specs.append(pl.BlockSpec(block, index_map))
        return len(inputs) - 1

    cp0 = _ceil8(C_in)
    HW0 = H0 * W0
    x_k = jnp.zeros((N, cp0, HW0), jnp.float32).at[:, :C_in, :].set(
        x_nchw.reshape(N, C_in, HW0))
    x_idx = add_input(x_k, (1, cp0, HW0), lambda n: (n, 0, 0))

    for cd in convs:
        cd["cin_p"], cd["cout_p"] = _ceil8(cd["cin"]), _ceil8(cd["cout"])
        wk, bk = _prep_conv(cd["w"], cd["b"], cd["cin_p"], cd["cout_p"])
        cd["w_idx"] = add_input(wk)
        cd["b_idx"] = add_input(bk)

    mask_idx = {}
    for cd in convs:
        key = (cd["H"], cd["W"])
        if key not in mask_idx:
            mask_idx[key] = add_input(_conv_masks_np(*key))
        cd["mask_idx"] = mask_idx[key]

    pool_idx = []
    h, w = H0, W0
    for i in range(NL):
        P, h, w = _pool_matrix_np(h, w)
        pool_idx.append(add_input(P))

    wl, bl = params["lin"]
    HW_last = H_last * W_last
    wl_k = jnp.transpose(wl, (1, 0)).reshape(O, C_last, HW_last)
    wl_k = jnp.zeros((O, cp_last, HW_last), jnp.float32).at[:, :C_last, :].set(wl_k)
    wl_idx = add_input(wl_k)
    bl_idx = add_input(jnp.reshape(bl, (1, O)))

    # ---- VMEM scratch: (padded flat row buffer, im2col buffer) per shape ----
    scratch_shapes, scratch_key = [], {}
    for cd in convs:
        key = (cd["cin_p"], cd["H"] * cd["W"])
        if key not in scratch_key:
            cp, hw = key
            scratch_key[key] = len(scratch_shapes)
            scratch_shapes.append(pltpu.VMEM((cp, hw + 2 * PAD), jnp.float32))
            scratch_shapes.append(pltpu.VMEM((9 * cp, hw), jnp.float32))
        cd["scr"] = scratch_key[key]

    n_in, n_scr = len(inputs), len(scratch_shapes)

    # ---- the fused kernel (runs once per batch element) --------------------
    def kernel(*refs):
        in_refs = refs[:n_in]
        o_ref = refs[n_in]
        scr = refs[n_in + 1:]

        # zero the padded flat buffers once; their borders stay zero afterwards
        for s in range(0, n_scr, 2):
            scr[s][...] = jnp.zeros(scr[s].shape, jnp.float32)

        def conv3x3(x_val, cd):
            """'same' 3x3 conv as one MXU matmul; x_val: (Cin_p, H*W)."""
            pad_ref = scr[cd["scr"]]
            col_ref = scr[cd["scr"] + 1]
            m_ref = in_refs[cd["mask_idx"]]
            cp, hw = x_val.shape
            Wsp = cd["W"]
            pad_ref[:, PAD:PAD + hw] = x_val                  # aligned store
            for t in range(9):                                # build im2col in VMEM
                dh, dw = t // 3 - 1, t % 3 - 1
                k = dh * Wsp + dw
                tap = pad_ref[:, PAD + k:PAD + k + hw]        # shifted read
                col_ref[t * cp:(t + 1) * cp, :] = tap * m_ref[t:t + 1, :]
            return (jnp.dot(in_refs[cd["w_idx"]][...], col_ref[...],
                            preferred_element_type=jnp.float32)
                    + in_refs[cd["b_idx"]][...])

        x = in_refs[x_idx][0]                                 # (Cp0, H0*W0)
        ci = 0
        for i in range(NL):
            # invariant conv: up2 -> leaky -> avgpool2 is exactly leaky(conv(x))
            x = _leaky(conv3x3(x, convs[ci])); ci += 1
            # contracting conv: up2 -> leaky -> avgpool4(pad=1) == pool-matrix(leaky(y))
            y = _leaky(conv3x3(x, convs[ci])); ci += 1
            x = jnp.dot(y, in_refs[pool_idx[i]][...],
                        preferred_element_type=jnp.float32)
        for j in range(NR):                                   # ResNet blocks
            cv = conv3x3(_leaky(x), convs[ci]); ci += 1
            x = 0.1 * cv + 0.9 * x
        # final LazyLinear, fused: flatten order (c, h, w) matches this layout
        wl_ref, bl_ref = in_refs[wl_idx], in_refs[bl_idx]
        for o in range(O):
            s = jnp.sum(x * wl_ref[o], axis=1, keepdims=True)  # (Cp_last, 1)
            s = jnp.sum(s, axis=0, keepdims=True)              # (1, 1)
            o_ref[0, :, o:o + 1] = s + bl_ref[:, o:o + 1]

    out = pl.pallas_call(
        kernel,
        out_shape=jax.ShapeDtypeStruct((N, 1, O), jnp.float32),
        grid=(N,),
        in_specs=in_specs,
        out_specs=pl.BlockSpec((1, 1, O), lambda n: (n, 0, 0)),
        scratch_shapes=scratch_shapes,
        compiler_params=pltpu.CompilerParams(dimension_semantics=("parallel",)),
    )(*inputs)
    return out.reshape(N, O)


# --------------------------- pure-JAX reference ------------------------------

def upsample2(x):                                   # nn.Upsample(scale_factor=2), nearest
    return jnp.repeat(jnp.repeat(x, 2, axis=1), 2, axis=2)


def avgpool2(x):                                    # nn.AvgPool2d(2, stride=2, padding=0)
    N, H, W, C = x.shape
    return x.reshape(N, H // 2, 2, W // 2, 2, C).mean(axis=(2, 4))


def avgpool4_pad1(x):                               # nn.AvgPool2d(4, stride=4, padding=1)
    N, H, W, C = x.shape
    Ho = (H + 2 - 4) // 4 + 1
    Wo = (W + 2 - 4) // 4 + 1
    xp = jnp.pad(x, ((0, 0), (1, 1), (1, 1), (0, 0)))
    xp = xp[:, :4 * Ho, :4 * Wo, :]
    return xp.reshape(N, Ho, 4, Wo, 4, C).mean(axis=(2, 4))


def conv_branch2d_reference(params, x_nchw, cfg):
    x = jnp.transpose(x_nchw, (0, 2, 3, 1))
    dn = ("NHWC", "HWIO", "NHWC")
    hp = jax.lax.Precision.HIGHEST

    def conv(v, w, b):
        return jax.lax.conv_general_dilated(
            v, w, (1, 1), ((1, 1), (1, 1)), dimension_numbers=dn, precision=hp) + b

    for i in range(cfg["N_layers"]):
        wi, bi = params["inv"][i]
        x = avgpool2(_leaky(upsample2(conv(x, wi, bi))))
        wc, bc = params["cont"][i]
        x = avgpool4_pad1(_leaky(upsample2(conv(x, wc, bc))))
    for j in range(cfg["N_res"]):
        wr, br = params["res"][j]
        x = 0.1 * conv(_leaky(x), wr, br) + 0.9 * x
    xf = jnp.transpose(x, (0, 3, 1, 2)).reshape(x.shape[0], -1)
    wl, bl = params["lin"]
    return jnp.dot(xf, wl, precision=hp) + bl.reshape(1, -1)


# --------------------------- parameter init ----------------------------------

def init_params(key, cfg):
    fm = [cfg["in_channels"]] + [2 ** i * cfg["multiply"]
                                 for i in range(cfg["N_layers"])]

    def conv_init(k, cin, cout):
        k1, k2 = jax.random.split(k)
        bound = (cin * 9) ** -0.5
        w = jax.random.uniform(k1, (3, 3, cin, cout), jnp.float32, -bound, bound)
        b = jax.random.uniform(k2, (cout,), jnp.float32, -bound, bound)
        return w, b

    params = {"inv": [], "cont": [], "res": []}
    for i in range(cfg["N_layers"]):
        key, k1, k2 = jax.random.split(key, 3)
        params["inv"].append(conv_init(k1, fm[i], fm[i]))
        params["cont"].append(conv_init(k2, fm[i], fm[i + 1]))
    for _ in range(cfg["N_res"]):
        key, k1 = jax.random.split(key)
        params["res"].append(conv_init(k1, fm[-1], fm[-1]))

    # spatial size after N_layers (what nn.LazyLinear infers at first call)
    H = W = cfg["spatial"]
    for _ in range(cfg["N_layers"]):
        H = (2 * H + 2 - 4) // 4 + 1
        W = (2 * W + 2 - 4) // 4 + 1
    F = fm[-1] * H * W

    key, k1, k2 = jax.random.split(key, 3)
    bound = F ** -0.5
    wl = jax.random.uniform(k1, (F, cfg["out_channel"]), jnp.float32, -bound, bound)
    bl = jax.random.uniform(k2, (cfg["out_channel"],), jnp.float32, -bound, bound)
    params["lin"] = (wl, bl)
    return params


# --------------------------- main ---------------------------------------------

if __name__ == "__main__":
    cfg = dict(in_channels=4, N_layers=2, N_res=2, out_channel=1,
               multiply=8, spatial=16)

    key = jax.random.PRNGKey(0)
    key, kx, kp = jax.random.split(key, 3)
    x = jax.random.normal(
        kx, (2, cfg["in_channels"], cfg["spatial"], cfg["spatial"]), jnp.float32)
    params = init_params(kp, cfg)

    out = jax.block_until_ready(conv_branch2d_forward(params, x, cfg))
    ref = jax.block_until_ready(conv_branch2d_reference(params, x, cfg))

    assert out.shape == (2, cfg["out_channel"])
    if not jnp.allclose(out, ref, rtol=2e-3, atol=2e-3):
        raise RuntimeError(f"Pallas/reference mismatch:\n{out}\nvs\n{ref}")
    print("KERNEL_OK")
</pallas_src>

<mosaic_0001>
module attributes {stable_mosaic.version = 11 : i64} {
  func.func @kernel(%arg0: i32, %arg1: memref<1x8x256xf32, #tpu.memory_space<vmem>>, %arg2: memref<8x72xf32, #tpu.memory_space<vmem>>, %arg3: memref<8x1xf32, #tpu.memory_space<vmem>>, %arg4: memref<8x72xf32, #tpu.memory_space<vmem>>, %arg5: memref<8x1xf32, #tpu.memory_space<vmem>>, %arg6: memref<8x72xf32, #tpu.memory_space<vmem>>, %arg7: memref<8x1xf32, #tpu.memory_space<vmem>>, %arg8: memref<16x72xf32, #tpu.memory_space<vmem>>, %arg9: memref<16x1xf32, #tpu.memory_space<vmem>>, %arg10: memref<16x144xf32, #tpu.memory_space<vmem>>, %arg11: memref<16x1xf32, #tpu.memory_space<vmem>>, %arg12: memref<16x144xf32, #tpu.memory_space<vmem>>, %arg13: memref<16x1xf32, #tpu.memory_space<vmem>>, %arg14: memref<9x256xf32, #tpu.memory_space<vmem>>, %arg15: memref<9x64xf32, #tpu.memory_space<vmem>>, %arg16: memref<9x16xf32, #tpu.memory_space<vmem>>, %arg17: memref<256x64xf32, #tpu.memory_space<vmem>>, %arg18: memref<64x16xf32, #tpu.memory_space<vmem>>, %arg19: memref<1x16x16xf32, #tpu.memory_space<vmem>>, %arg20: memref<1x1xf32, #tpu.memory_space<vmem>>, %arg21: memref<1x1x1xf32, #tpu.memory_space<vmem>>, %arg22: memref<8x512xf32, #tpu.memory_space<vmem>>, %arg23: memref<72x256xf32, #tpu.memory_space<vmem>>, %arg24: memref<8x320xf32, #tpu.memory_space<vmem>>, %arg25: memref<72x64xf32, #tpu.memory_space<vmem>>, %arg26: memref<16x272xf32, #tpu.memory_space<vmem>>, %arg27: memref<144x16xf32, #tpu.memory_space<vmem>>) attributes {dimension_semantics = [#tpu.dimension_semantics<parallel>], iteration_bounds = array<i64: 2>, scalar_prefetch = 0 : i64, scratch_operands = 6 : i64, tpu.core_type = #tpu.core_type<tc>, window_params = [{transform_indices = @transform_0, window_bounds = array<i64: 1, 8, 256>}, {pipeline_mode = #tpu.pipeline_mode<synchronous>, transform_indices = @transform_1, window_bounds = array<i64: 8, 72>}, {pipeline_mode = #tpu.pipeline_mode<synchronous>, transform_indices = @transform_2, window_bounds = array<i64: 8, 1>}, {pipeline_mode = #tpu.pipeline_mode<synchronous>, transform_indices = @transform_3, window_bounds = array<i64: 8, 72>}, {pipeline_mode = #tpu.pipeline_mode<synchronous>, transform_indices = @transform_4, window_bounds = array<i64: 8, 1>}, {pipeline_mode = #tpu.pipeline_mode<synchronous>, transform_indices = @transform_5, window_bounds = array<i64: 8, 72>}, {pipeline_mode = #tpu.pipeline_mode<synchronous>, transform_indices = @transform_6, window_bounds = array<i64: 8, 1>}, {pipeline_mode = #tpu.pipeline_mode<synchronous>, transform_indices = @transform_7, window_bounds = array<i64: 16, 72>}, {pipeline_mode = #tpu.pipeline_mode<synchronous>, transform_indices = @transform_8, window_bounds = array<i64: 16, 1>}, {pipeline_mode = #tpu.pipeline_mode<synchronous>, transform_indices = @transform_9, window_bounds = array<i64: 16, 144>}, {pipeline_mode = #tpu.pipeline_mode<synchronous>, transform_indices = @transform_10, window_bounds = array<i64: 16, 1>}, {pipeline_mode = #tpu.pipeline_mode<synchronous>, transform_indices = @transform_11, window_bounds = array<i64: 16, 144>}, {pipeline_mode = #tpu.pipeline_mode<synchronous>, transform_indices = @transform_12, window_bounds = array<i64: 16, 1>}, {pipeline_mode = #tpu.pipeline_mode<synchronous>, transform_indices = @transform_13, window_bounds = array<i64: 9, 256>}, {pipeline_mode = #tpu.pipeline_mode<synchronous>, transform_indices = @transform_14, window_bounds = array<i64: 9, 64>}, {pipeline_mode = #tpu.pipeline_mode<synchronous>, transform_indices = @transform_15, window_bounds = array<i64: 9, 16>}, {pipeline_mode = #tpu.pipeline_mode<synchronous>, transform_indices = @transform_16, window_bounds = array<i64: 256, 64>}, {pipeline_mode = #tpu.pipeline_mode<synchronous>, transform_indices = @transform_17, window_bounds = array<i64: 64, 16>}, {pipeline_mode = #tpu.pipeline_mode<synchronous>, transform_indices = @transform_18, window_bounds = array<i64: 1, 16, 16>}, {pipeline_mode = #tpu.pipeline_mode<synchronous>, transform_indices = @transform_19, window_bounds = array<i64: 1, 1>}, {transform_indices = @transform_20, window_bounds = array<i64: 1, 1, 1>}]} {
    %cst = arith.constant 0.000000e+00 : f32
    %0 = vector.broadcast %cst : f32 to vector<8x512xf32>
    %c0 = arith.constant 0 : index
    %c0_0 = arith.constant 0 : index
    %1 = vector.load %arg22[%c0, %c0_0] : memref<8x512xf32, #tpu.memory_space<vmem>>, vector<8x512xf32>
    tpu.vector_store %arg22[%c0, %c0_0], %0 {strides = array<i32>} : memref<8x512xf32, #tpu.memory_space<vmem>>, vector<8x512xf32>,
    %cst_1 = arith.constant 0.000000e+00 : f32
    %2 = vector.broadcast %cst_1 : f32 to vector<8x320xf32>
    %c0_2 = arith.constant 0 : index
    %c0_3 = arith.constant 0 : index
    %3 = vector.load %arg24[%c0_2, %c0_3] : memref<8x320xf32, #tpu.memory_space<vmem>>, vector<8x320xf32>
    tpu.vector_store %arg24[%c0_2, %c0_3], %2 {strides = array<i32>} : memref<8x320xf32, #tpu.memory_space<vmem>>, vector<8x320xf32>,
    %cst_4 = arith.constant 0.000000e+00 : f32
    %4 = vector.broadcast %cst_4 : f32 to vector<16x272xf32>
    %c0_5 = arith.constant 0 : index
    %c0_6 = arith.constant 0 : index
    %5 = vector.load %arg26[%c0_5, %c0_6] : memref<16x272xf32, #tpu.memory_space<vmem>>, vector<16x272xf32>
    tpu.vector_store %arg26[%c0_5, %c0_6], %4 {strides = array<i32>} : memref<16x272xf32, #tpu.memory_space<vmem>>, vector<16x272xf32>,
    %c0_7 = arith.constant 0 : index
    %c0_8 = arith.constant 0 : index
    %c0_9 = arith.constant 0 : index
    %6 = vector.load %arg1[%c0_7, %c0_8, %c0_9] : memref<1x8x256xf32, #tpu.memory_space<vmem>>, vector<1x8x256xf32>
    %7 = vector.shape_cast %6 : vector<1x8x256xf32> to vector<8x256xf32>
    %c0_10 = arith.constant 0 : index
    %c128 = arith.constant 128 : index
    %8 = vector.load %arg22[%c0_10, %c128] : memref<8x512xf32, #tpu.memory_space<vmem>>, vector<8x256xf32>
    tpu.vector_store %arg22[%c0_10, %c128], %7 {strides = array<i32>} : memref<8x512xf32, #tpu.memory_space<vmem>>, vector<8x256xf32>,
    %c0_11 = arith.constant 0 : index
    %c111 = arith.constant 111 : index
    %9 = vector.load %arg22[%c0_11, %c111] : memref<8x512xf32, #tpu.memory_space<vmem>>, vector<8x256xf32>
    %c0_12 = arith.constant 0 : index
    %c0_13 = arith.constant 0 : index
    %10 = vector.load %arg14[%c0_12, %c0_13] : memref<9x256xf32, #tpu.memory_space<vmem>>, vector<1x256xf32>
    %11 = vector.broadcast %10 : vector<1x256xf32> to vector<8x256xf32>
    %12 = arith.mulf %9, %11 : vector<8x256xf32>
    %c0_14 = arith.constant 0 : index
    %c0_15 = arith.constant 0 : index
    %13 = vector.load %arg23[%c0_14, %c0_15] : memref<72x256xf32, #tpu.memory_space<vmem>>, vector<8x256xf32>
    tpu.vector_store %arg23[%c0_14, %c0_15], %12 {strides = array<i32>} : memref<72x256xf32, #tpu.memory_space<vmem>>, vector<8x256xf32>,
    %c0_16 = arith.constant 0 : index
    %c112 = arith.constant 112 : index
    %14 = vector.load %arg22[%c0_16, %c112] : memref<8x512xf32, #tpu.memory_space<vmem>>, vector<8x256xf32>
    %c1 = arith.constant 1 : index
    %c0_17 = arith.constant 0 : index
    %15 = vector.load %arg14[%c1, %c0_17] : memref<9x256xf32, #tpu.memory_space<vmem>>, vector<1x256xf32>
    %16 = vector.broadcast %15 : vector<1x256xf32> to vector<8x256xf32>
    %17 = arith.mulf %14, %16 : vector<8x256xf32>
    %c8 = arith.constant 8 : index
    %c0_18 = arith.constant 0 : index
    %18 = vector.load %arg23[%c8, %c0_18] : memref<72x256xf32, #tpu.memory_space<vmem>>, vector<8x256xf32>
    tpu.vector_store %arg23[%c8, %c0_18], %17 {strides = array<i32>} : memref<72x256xf32, #tpu.memory_space<vmem>>, vector<8x256xf32>,
    %c0_19 = arith.constant 0 : index
    %c113 = arith.constant 113 : index
    %19 = vector.load %arg22[%c0_19, %c113] : memref<8x512xf32, #tpu.memory_space<vmem>>, vector<8x256xf32>
    %c2 = arith.constant 2 : index
    %c0_20 = arith.constant 0 : index
    %20 = vector.load %arg14[%c2, %c0_20] : memref<9x256xf32, #tpu.memory_space<vmem>>, vector<1x256xf32>
    %21 = vector.broadcast %20 : vector<1x256xf32> to vector<8x256xf32>
    %22 = arith.mulf %19, %21 : vector<8x256xf32>
    %c16 = arith.constant 16 : index
    %c0_21 = arith.constant 0 : index
    %23 = vector.load %arg23[%c16, %c0_21] : memref<72x256xf32, #tpu.memory_space<vmem>>, vector<8x256xf32>
    tpu.vector_store %arg23[%c16, %c0_21], %22 {strides = array<i32>} : memref<72x256xf32, #tpu.memory_space<vmem>>, vector<8x256xf32>,
    %c0_22 = arith.constant 0 : index
    %c127 = arith.constant 127 : index
    %24 = vector.load %arg22[%c0_22, %c127] : memref<8x512xf32, #tpu.memory_space<vmem>>, vector<8x256xf32>
    %c3 = arith.constant 3 : index
    %c0_23 = arith.constant 0 : index
    %25 = vector.load %arg14[%c3, %c0_23] : memref<9x256xf32, #tpu.memory_space<vmem>>, vector<1x256xf32>
    %26 = vector.broadcast %25 : vector<1x256xf32> to vector<8x256xf32>
    %27 = arith.mulf %24, %26 : vector<8x256xf32>
    %c24 = arith.constant 24 : index
    %c0_24 = arith.constant 0 : index
    %28 = vector.load %arg23[%c24, %c0_24] : memref<72x256xf32, #tpu.memory_space<vmem>>, vector<8x256xf32>
    tpu.vector_store %arg23[%c24, %c0_24], %27 {strides = array<i32>} : memref<72x256xf32, #tpu.memory_space<vmem>>, vector<8x256xf32>,
    %c0_25 = arith.constant 0 : index
    %c128_26 = arith.constant 128 : index
    %29 = vector.load %arg22[%c0_25, %c128_26] : memref<8x512xf32, #tpu.memory_space<vmem>>, vector<8x256xf32>
    %c4 = arith.constant 4 : index
    %c0_27 = arith.constant 0 : index
    %30 = vector.load %arg14[%c4, %c0_27] : memref<9x256xf32, #tpu.memory_space<vmem>>, vector<1x256xf32>
    %31 = vector.broadcast %30 : vector<1x256xf32> to vector<8x256xf32>
    %32 = arith.mulf %29, %31 : vector<8x256xf32>
    %c32 = arith.constant 32 : index
    %c0_28 = arith.constant 0 : index
    %33 = vector.load %arg23[%c32, %c0_28] : memref<72x256xf32, #tpu.memory_space<vmem>>, vector<8x256xf32>
    tpu.vector_store %arg23[%c32, %c0_28], %32 {strides = array<i32>} : memref<72x256xf32, #tpu.memory_space<vmem>>, vector<8x256xf32>,
    %c0_29 = arith.constant 0 : index
    %c129 = arith.constant 129 : index
    %34 = vector.load %arg22[%c0_29, %c129] : memref<8x512xf32, #tpu.memory_space<vmem>>, vector<8x256xf32>
    %c5 = arith.constant 5 : index
    %c0_30 = arith.constant 0 : index
    %35 = vector.load %arg14[%c5, %c0_30] : memref<9x256xf32, #tpu.memory_space<vmem>>, vector<1x256xf32>
    %36 = vector.broadcast %35 : vector<1x256xf32> to vector<8x256xf32>
    %37 = arith.mulf %34, %36 : vector<8x256xf32>
    %c40 = arith.constant 40 : index
    %c0_31 = arith.constant 0 : index
    %38 = vector.load %arg23[%c40, %c0_31] : memref<72x256xf32, #tpu.memory_space<vmem>>, vector<8x256xf32>
    tpu.vector_store %arg23[%c40, %c0_31], %37 {strides = array<i32>} : memref<72x256xf32, #tpu.memory_space<vmem>>, vector<8x256xf32>,
    %c0_32 = arith.constant 0 : index
    %c143 = arith.constant 143 : index
    %39 = vector.load %arg22[%c0_32, %c143] : memref<8x512xf32, #tpu.memory_space<vmem>>, vector<8x256xf32>
    %c6 = arith.constant 6 : index
    %c0_33 = arith.constant 0 : index
    %40 = vector.load %arg14[%c6, %c0_33] : memref<9x256xf32, #tpu.memory_space<vmem>>, vector<1x256xf32>
    %41 = vector.broadcast %40 : vector<1x256xf32> to vector<8x256xf32>
    %42 = arith.mulf %39, %41 : vector<8x256xf32>
    %c48 = arith.constant 48 : index
    %c0_34 = arith.constant 0 : index
    %43 = vector.load %arg23[%c48, %c0_34] : memref<72x256xf32, #tpu.memory_space<vmem>>, vector<8x256xf32>
    tpu.vector_store %arg23[%c48, %c0_34], %42 {strides = array<i32>} : memref<72x256xf32, #tpu.memory_space<vmem>>, vector<8x256xf32>,
    %c0_35 = arith.constant 0 : index
    %c144 = arith.constant 144 : index
    %44 = vector.load %arg22[%c0_35, %c144] : memref<8x512xf32, #tpu.memory_space<vmem>>, vector<8x256xf32>
    %c7 = arith.constant 7 : index
    %c0_36 = arith.constant 0 : index
    %45 = vector.load %arg14[%c7, %c0_36] : memref<9x256xf32, #tpu.memory_space<vmem>>, vector<1x256xf32>
    %46 = vector.broadcast %45 : vector<1x256xf32> to vector<8x256xf32>
    %47 = arith.mulf %44, %46 : vector<8x256xf32>
    %c56 = arith.constant 56 : index
    %c0_37 = arith.constant 0 : index
    %48 = vector.load %arg23[%c56, %c0_37] : memref<72x256xf32, #tpu.memory_space<vmem>>, vector<8x256xf32>
    tpu.vector_store %arg23[%c56, %c0_37], %47 {strides = array<i32>} : memref<72x256xf32, #tpu.memory_space<vmem>>, vector<8x256xf32>,
    %c0_38 = arith.constant 0 : index
    %c145 = arith.constant 145 : index
    %49 = vector.load %arg22[%c0_38, %c145] : memref<8x512xf32, #tpu.memory_space<vmem>>, vector<8x256xf32>
    %c8_39 = arith.constant 8 : index
    %c0_40 = arith.constant 0 : index
    %50 = vector.load %arg14[%c8_39, %c0_40] : memref<9x256xf32, #tpu.memory_space<vmem>>, vector<1x256xf32>
    %51 = vector.broadcast %50 : vector<1x256xf32> to vector<8x256xf32>
    %52 = arith.mulf %49, %51 : vector<8x256xf32>
    %c64 = arith.constant 64 : index
    %c0_41 = arith.constant 0 : index
    %53 = vector.load %arg23[%c64, %c0_41] : memref<72x256xf32, #tpu.memory_space<vmem>>, vector<8x256xf32>
    tpu.vector_store %arg23[%c64, %c0_41], %52 {strides = array<i32>} : memref<72x256xf32, #tpu.memory_space<vmem>>, vector<8x256xf32>,
    %c0_42 = arith.constant 0 : index
    %c0_43 = arith.constant 0 : index
    %54 = vector.load %arg2[%c0_42, %c0_43] : memref<8x72xf32, #tpu.memory_space<vmem>>, vector<8x72xf32>
    %c0_44 = arith.constant 0 : index
    %c0_45 = arith.constant 0 : index
    %55 = vector.load %arg23[%c0_44, %c0_45] : memref<72x256xf32, #tpu.memory_space<vmem>>, vector<72x256xf32>
    %cst_46 = arith.constant dense<0.000000e+00> : vector<8x256xf32>
    %56 = tpu.matmul %54, %55, %cst_46 {dimension_numbers = #tpu.dot_dimension_numbers<[1], [0], [0], [1], [0, 0, 1, 1], [], []>} : vector<8x72xf32>, vector<72x256xf32>, vector<8x256xf32> -> vector<8x256xf32>
    %c0_47 = arith.constant 0 : index
    %c0_48 = arith.constant 0 : index
    %57 = vector.load %arg3[%c0_47, %c0_48] : memref<8x1xf32, #tpu.memory_space<vmem>>, vector<8x1xf32>
    %58 = vector.broadcast %57 : vector<8x1xf32> to vector<8x256xf32>
    %59 = arith.addf %56, %58 : vector<8x256xf32>
    %cst_49 = arith.constant 0.000000e+00 : f32
    %60 = vector.broadcast %cst_49 : f32 to vector<8x256xf32>
    %61 = arith.cmpf oge, %59, %60 : vector<8x256xf32>
    %cst_50 = arith.constant 0.00999999977 : f32
    %62 = vector.broadcast %cst_50 : f32 to vector<8x256xf32>
    %63 = arith.mulf %62, %59 : vector<8x256xf32>
    %64 = arith.select %61, %59, %63 : vector<8x256xi1>, vector<8x256xf32>
    %c0_51 = arith.constant 0 : index
    %c128_52 = arith.constant 128 : index
    %65 = vector.load %arg22[%c0_51, %c128_52] : memref<8x512xf32, #tpu.memory_space<vmem>>, vector<8x256xf32>
    tpu.vector_store %arg22[%c0_51, %c128_52], %64 {strides = array<i32>} : memref<8x512xf32, #tpu.memory_space<vmem>>, vector<8x256xf32>,
    %c0_53 = arith.constant 0 : index
    %c111_54 = arith.constant 111 : index
    %66 = vector.load %arg22[%c0_53, %c111_54] : memref<8x512xf32, #tpu.memory_space<vmem>>, vector<8x256xf32>
    %c0_55 = arith.constant 0 : index
    %c0_56 = arith.constant 0 : index
    %67 = vector.load %arg14[%c0_55, %c0_56] : memref<9x256xf32, #tpu.memory_space<vmem>>, vector<1x256xf32>
    %68 = vector.broadcast %67 : vector<1x256xf32> to vector<8x256xf32>
    %69 = arith.mulf %66, %68 : vector<8x256xf32>
    %c0_57 = arith.constant 0 : index
    %c0_58 = arith.constant 0 : index
    %70 = vector.load %arg23[%c0_57, %c0_58] : memref<72x256xf32, #tpu.memory_space<vmem>>, vector<8x256xf32>
    tpu.vector_store %arg23[%c0_57, %c0_58], %69 {strides = array<i32>} : memref<72x256xf32, #tpu.memory_space<vmem>>, vector<8x256xf32>,
    %c0_59 = arith.constant 0 : index
    %c112_60 = arith.constant 112 : index
    %71 = vector.load %arg22[%c0_59, %c112_60] : memref<8x512xf32, #tpu.memory_space<vmem>>, vector<8x256xf32>
    %c1_61 = arith.constant 1 : index
    %c0_62 = arith.constant 0 : index
    %72 = vector.load %arg14[%c1_61, %c0_62] : memref<9x256xf32, #tpu.memory_space<vmem>>, vector<1x256xf32>
    %73 = vector.broadcast %72 : vector<1x256xf32> to vector<8x256xf32>
    %74 = arith.mulf %71, %73 : vector<8x256xf32>
    %c8_63 = arith.constant 8 : index
    %c0_64 = arith.constant 0 : index
    %75 = vector.load %arg23[%c8_63, %c0_64] : memref<72x256xf32, #tpu.memory_space<vmem>>, vector<8x256xf32>
    tpu.vector_store %arg23[%c8_63, %c0_64], %74 {strides = array<i32>} : memref<72x256xf32, #tpu.memory_space<vmem>>, vector<8x256xf32>,
    %c0_65 = arith.constant 0 : index
    %c113_66 = arith.constant 113 : index
    %76 = vector.load %arg22[%c0_65, %c113_66] : memref<8x512xf32, #tpu.memory_space<vmem>>, vector<8x256xf32>
    %c2_67 = arith.constant 2 : index
    %c0_68 = arith.constant 0 : index
    %77 = vector.load %arg14[%c2_67, %c0_68] : memref<9x256xf32, #tpu.memory_space<vmem>>, vector<1x256xf32>
    %78 = vector.broadcast %77 : vector<1x256xf32> to vector<8x256xf32>
    %79 = arith.mulf %76, %78 : vector<8x256xf32>
    %c16_69 = arith.constant 16 : index
    %c0_70 = arith.constant 0 : index
    %80 = vector.load %arg23[%c16_69, %c0_70] : memref<72x256xf32, #tpu.memory_space<vmem>>, vector<8x256xf32>
    tpu.vector_store %arg23[%c16_69, %c0_70], %79 {strides = array<i32>} : memref<72x256xf32, #tpu.memory_space<vmem>>, vector<8x256xf32>,
    %c0_71 = arith.constant 0 : index
    %c127_72 = arith.constant 127 : index
    %81 = vector.load %arg22[%c0_71, %c127_72] : memref<8x512xf32, #tpu.memory_space<vmem>>, vector<8x256xf32>
    %c3_73 = arith.constant 3 : index
    %c0_74 = arith.constant 0 : index
    %82 = vector.load %arg14[%c3_73, %c0_74] : memref<9x256xf32, #tpu.memory_space<vmem>>, vector<1x256xf32>
    %83 = vector.broadcast %82 : vector<1x256xf32> to vector<8x256xf32>
    %84 = arith.mulf %81, %83 : vector<8x256xf32>
    %c24_75 = arith.constant 24 : index
    %c0_76 = arith.constant 0 : index
    %85 = vector.load %arg23[%c24_75, %c0_76] : memref<72x256xf32, #tpu.memory_space<vmem>>, vector<8x256xf32>
    tpu.vector_store %arg23[%c24_75, %c0_76], %84 {strides = array<i32>} : memref<72x256xf32, #tpu.memory_space<vmem>>, vector<8x256xf32>,
    %c0_77 = arith.constant 0 : index
    %c128_78 = arith.constant 128 : index
    %86 = vector.load %arg22[%c0_77, %c128_78] : memref<8x512xf32, #tpu.memory_space<vmem>>, vector<8x256xf32>
    %c4_79 = arith.constant 4 : index
    %c0_80 = arith.constant 0 : index
    %87 = vector.load %arg14[%c4_79, %c0_80] : memref<9x256xf32, #tpu.memory_space<vmem>>, vector<1x256xf32>
    %88 = vector.broadcast %87 : vector<1x256xf32> to vector<8x256xf32>
    %89 = arith.mulf %86, %88 : vector<8x256xf32>
    %c32_81 = arith.constant 32 : index
    %c0_82 = arith.constant 0 : index
    %90 = vector.load %arg23[%c32_81, %c0_82] : memref<72x256xf32, #tpu.memory_space<vmem>>, vector<8x256xf32>
    tpu.vector_store %arg23[%c32_81, %c0_82], %89 {strides = array<i32>} : memref<72x256xf32, #tpu.memory_space<vmem>>, vector<8x256xf32>,
    %c0_83 = arith.constant 0 : index
    %c129_84 = arith.constant 129 : index
    %91 = vector.load %arg22[%c0_83, %c129_84] : memref<8x512xf32, #tpu.memory_space<vmem>>, vector<8x256xf32>
    %c5_85 = arith.constant 5 : index
    %c0_86 = arith.constant 0 : index
    %92 = vector.load %arg14[%c5_85, %c0_86] : memref<9x256xf32, #tpu.memory_space<vmem>>, vector<1x256xf32>
    %93 = vector.broadcast %92 : vector<1x256xf32> to vector<8x256xf32>
    %94 = arith.mulf %91, %93 : vector<8x256xf32>
    %c40_87 = arith.constant 40 : index
    %c0_88 = arith.constant 0 : index
    %95 = vector.load %arg23[%c40_87, %c0_88] : memref<72x256xf32, #tpu.memory_space<vmem>>, vector<8x256xf32>
    tpu.vector_store %arg23[%c40_87, %c0_88], %94 {strides = array<i32>} : memref<72x256xf32, #tpu.memory_space<vmem>>, vector<8x256xf32>,
    %c0_89 = arith.constant 0 : index
    %c143_90 = arith.constant 143 : index
    %96 = vector.load %arg22[%c0_89, %c143_90] : memref<8x512xf32, #tpu.memory_space<vmem>>, vector<8x256xf32>
    %c6_91 = arith.constant 6 : index
    %c0_92 = arith.constant 0 : index
    %97 = vector.load %arg14[%c6_91, %c0_92] : memref<9x256xf32, #tpu.memory_space<vmem>>, vector<1x256xf32>
    %98 = vector.broadcast %97 : vector<1x256xf32> to vector<8x256xf32>
    %99 = arith.mulf %96, %98 : vector<8x256xf32>
    %c48_93 = arith.constant 48 : index
    %c0_94 = arith.constant 0 : index
    %100 = vector.load %arg23[%c48_93, %c0_94] : memref<72x256xf32, #tpu.memory_space<vmem>>, vector<8x256xf32>
    tpu.vector_store %arg23[%c48_93, %c0_94], %99 {strides = array<i32>} : memref<72x256xf32, #tpu.memory_space<vmem>>, vector<8x256xf32>,
    %c0_95 = arith.constant 0 : index
    %c144_96 = arith.constant 144 : index
    %101 = vector.load %arg22[%c0_95, %c144_96] : memref<8x512xf32, #tpu.memory_space<vmem>>, vector<8x256xf32>
    %c7_97 = arith.constant 7 : index
    %c0_98 = arith.constant 0 : index
    %102 = vector.load %arg14[%c7_97, %c0_98] : memref<9x256xf32, #tpu.memory_space<vmem>>, vector<1x256xf32>
    %103 = vector.broadcast %102 : vector<1x256xf32> to vector<8x256xf32>
    %104 = arith.mulf %101, %103 : vector<8x256xf32>
    %c56_99 = arith.constant 56 : index
    %c0_100 = arith.constant 0 : index
    %105 = vector.load %arg23[%c56_99, %c0_100] : memref<72x256xf32, #tpu.memory_space<vmem>>, vector<8x256xf32>
    tpu.vector_store %arg23[%c56_99, %c0_100], %104 {strides = array<i32>} : memref<72x256xf32, #tpu.memory_space<vmem>>, vector<8x256xf32>,
    %c0_101 = arith.constant 0 : index
    %c145_102 = arith.constant 145 : index
    %106 = vector.load %arg22[%c0_101, %c145_102] : memref<8x512xf32, #tpu.memory_space<vmem>>, vector<8x256xf32>
    %c8_103 = arith.constant 8 : index
    %c0_104 = arith.constant 0 : index
    %107 = vector.load %arg14[%c8_103, %c0_104] : memref<9x256xf32, #tpu.memory_space<vmem>>, vector<1x256xf32>
    %108 = vector.broadcast %107 : vector<1x256xf32> to vector<8x256xf32>
    %109 = arith.mulf %106, %108 : vector<8x256xf32>
    %c64_105 = arith.constant 64 : index
    %c0_106 = arith.constant 0 : index
    %110 = vector.load %arg23[%c64_105, %c0_106] : memref<72x256xf32, #tpu.memory_space<vmem>>, vector<8x256xf32>
    tpu.vector_store %arg23[%c64_105, %c0_106], %109 {strides = array<i32>} : memref<72x256xf32, #tpu.memory_space<vmem>>, vector<8x256xf32>,
    %c0_107 = arith.constant 0 : index
    %c0_108 = arith.constant 0 : index
    %111 = vector.load %arg4[%c0_107, %c0_108] : memref<8x72xf32, #tpu.memory_space<vmem>>, vector<8x72xf32>
    %c0_109 = arith.constant 0 : index
    %c0_110 = arith.constant 0 : index
    %112 = vector.load %arg23[%c0_109, %c0_110] : memref<72x256xf32, #tpu.memory_space<vmem>>, vector<72x256xf32>
    %cst_111 = arith.constant dense<0.000000e+00> : vector<8x256xf32>
    %113 = tpu.matmul %111, %112, %cst_111 {dimension_numbers = #tpu.dot_dimension_numbers<[1], [0], [0], [1], [0, 0, 1, 1], [], []>} : vector<8x72xf32>, vector<72x256xf32>, vector<8x256xf32> -> vector<8x256xf32>
    %c0_112 = arith.constant 0 : index
    %c0_113 = arith.constant 0 : index
    %114 = vector.load %arg5[%c0_112, %c0_113] : memref<8x1xf32, #tpu.memory_space<vmem>>, vector<8x1xf32>
    %115 = vector.broadcast %114 : vector<8x1xf32> to vector<8x256xf32>
    %116 = arith.addf %113, %115 : vector<8x256xf32>
    %cst_114 = arith.constant 0.000000e+00 : f32
    %117 = vector.broadcast %cst_114 : f32 to vector<8x256xf32>
    %118 = arith.cmpf oge, %116, %117 : vector<8x256xf32>
    %cst_115 = arith.constant 0.00999999977 : f32
    %119 = vector.broadcast %cst_115 : f32 to vector<8x256xf32>
    %120 = arith.mulf %119, %116 : vector<8x256xf32>
    %121 = arith.select %118, %116, %120 : vector<8x256xi1>, vector<8x256xf32>
    %c0_116 = arith.constant 0 : index
    %c0_117 = arith.constant 0 : index
    %122 = vector.load %arg17[%c0_116, %c0_117] : memref<256x64xf32, #tpu.memory_space<vmem>>, vector<256x64xf32>
    %cst_118 = arith.constant dense<0.000000e+00> : vector<8x64xf32>
    %123 = tpu.matmul %121, %122, %cst_118 {dimension_numbers = #tpu.dot_dimension_numbers<[1], [0], [0], [1], [0, 0, 1, 1], [], []>} : vector<8x256xf32>, vector<256x64xf32>, vector<8x64xf32> -> vector<8x64xf32>
    %c0_119 = arith.constant 0 : index
    %c128_120 = arith.constant 128 : index
    %124 = vector.load %arg24[%c0_119, %c128_120] : memref<8x320xf32, #tpu.memory_space<vmem>>, vector<8x64xf32>
    tpu.vector_store %arg24[%c0_119, %c128_120], %123 {strides = array<i32>} : memref<8x320xf32, #tpu.memory_space<vmem>>, vector<8x64xf32>,
    %c0_121 = arith.constant 0 : index
    %c119 = arith.constant 119 : index
    %125 = vector.load %arg24[%c0_121, %c119] : memref<8x320xf32, #tpu.memory_space<vmem>>, vector<8x64xf32>
    %c0_122 = arith.constant 0 : index
    %c0_123 = arith.constant 0 : index
    %126 = vector.load %arg15[%c0_122, %c0_123] : memref<9x64xf32, #tpu.memory_space<vmem>>, vector<1x64xf32>
    %127 = vector.broadcast %126 : vector<1x64xf32> to vector<8x64xf32>
    %128 = arith.mulf %125, %127 : vector<8x64xf32>
    %c0_124 = arith.constant 0 : index
    %c0_125 = arith.constant 0 : index
    %129 = vector.load %arg25[%c0_124, %c0_125] : memref<72x64xf32, #tpu.memory_space<vmem>>, vector<8x64xf32>
    tpu.vector_store %arg25[%c0_124, %c0_125], %128 {strides = array<i32>} : memref<72x64xf32, #tpu.memory_space<vmem>>, vector<8x64xf32>,
    %c0_126 = arith.constant 0 : index
    %c120 = arith.constant 120 : index
    %130 = vector.load %arg24[%c0_126, %c120] : memref<8x320xf32, #tpu.memory_space<vmem>>, vector<8x64xf32>
    %c1_127 = arith.constant 1 : index
    %c0_128 = arith.constant 0 : index
    %131 = vector.load %arg15[%c1_127, %c0_128] : memref<9x64xf32, #tpu.memory_space<vmem>>, vector<1x64xf32>
    %132 = vector.broadcast %131 : vector<1x64xf32> to vector<8x64xf32>
    %133 = arith.mulf %130, %132 : vector<8x64xf32>
    %c8_129 = arith.constant 8 : index
    %c0_130 = arith.constant 0 : index
    %134 = vector.load %arg25[%c8_129, %c0_130] : memref<72x64xf32, #tpu.memory_space<vmem>>, vector<8x64xf32>
    tpu.vector_store %arg25[%c8_129, %c0_130], %133 {strides = array<i32>} : memref<72x64xf32, #tpu.memory_space<vmem>>, vector<8x64xf32>,
    %c0_131 = arith.constant 0 : index
    %c121 = arith.constant 121 : index
    %135 = vector.load %arg24[%c0_131, %c121] : memref<8x320xf32, #tpu.memory_space<vmem>>, vector<8x64xf32>
    %c2_132 = arith.constant 2 : index
    %c0_133 = arith.constant 0 : index
    %136 = vector.load %arg15[%c2_132, %c0_133] : memref<9x64xf32, #tpu.memory_space<vmem>>, vector<1x64xf32>
    %137 = vector.broadcast %136 : vector<1x64xf32> to vector<8x64xf32>
    %138 = arith.mulf %135, %137 : vector<8x64xf32>
    %c16_134 = arith.constant 16 : index
    %c0_135 = arith.constant 0 : index
    %139 = vector.load %arg25[%c16_134, %c0_135] : memref<72x64xf32, #tpu.memory_space<vmem>>, vector<8x64xf32>
    tpu.vector_store %arg25[%c16_134, %c0_135], %138 {strides = array<i32>} : memref<72x64xf32, #tpu.memory_space<vmem>>, vector<8x64xf32>,
    %c0_136 = arith.constant 0 : index
    %c127_137 = arith.constant 127 : index
    %140 = vector.load %arg24[%c0_136, %c127_137] : memref<8x320xf32, #tpu.memory_space<vmem>>, vector<8x64xf32>
    %c3_138 = arith.constant 3 : index
    %c0_139 = arith.constant 0 : index
    %141 = vector.load %arg15[%c3_138, %c0_139] : memref<9x64xf32, #tpu.memory_space<vmem>>, vector<1x64xf32>
    %142 = vector.broadcast %141 : vector<1x64xf32> to vector<8x64xf32>
    %143 = arith.mulf %140, %142 : vector<8x64xf32>
    %c24_140 = arith.constant 24 : index
    %c0_141 = arith.constant 0 : index
    %144 = vector.load %arg25[%c24_140, %c0_141] : memref<72x64xf32, #tpu.memory_space<vmem>>, vector<8x64xf32>
    tpu.vector_store %arg25[%c24_140, %c0_141], %143 {strides = array<i32>} : memref<72x64xf32, #tpu.memory_space<vmem>>, vector<8x64xf32>,
    %c0_142 = arith.constant 0 : index
    %c128_143 = arith.constant 128 : index
    %145 = vector.load %arg24[%c0_142, %c128_143] : memref<8x320xf32, #tpu.memory_space<vmem>>, vector<8x64xf32>
    %c4_144 = arith.constant 4 : index
    %c0_145 = arith.constant 0 : index
    %146 = vector.load %arg15[%c4_144, %c0_145] : memref<9x64xf32, #tpu.memory_space<vmem>>, vector<1x64xf32>
    %147 = vector.broadcast %146 : vector<1x64xf32> to vector<8x64xf32>
    %148 = arith.mulf %145, %147 : vector<8x64xf32>
    %c32_146 = arith.constant 32 : index
    %c0_147 = arith.constant 0 : index
    %149 = vector.load %arg25[%c32_146, %c0_147] : memref<72x64xf32, #tpu.memory_space<vmem>>, vector<8x64xf32>
    tpu.vector_store %arg25[%c32_146, %c0_147], %148 {strides = array<i32>} : memref<72x64xf32, #tpu.memory_space<vmem>>, vector<8x64xf32>,
    %c0_148 = arith.constant 0 : index
    %c129_149 = arith.constant 129 : index
    %150 = vector.load %arg24[%c0_148, %c129_149] : memref<8x320xf32, #tpu.memory_space<vmem>>, vector<8x64xf32>
    %c5_150 = arith.constant 5 : index
    %c0_151 = arith.constant 0 : index
    %151 = vector.load %arg15[%c5_150, %c0_151] : memref<9x64xf32, #tpu.memory_space<vmem>>, vector<1x64xf32>
    %152 = vector.broadcast %151 : vector<1x64xf32> to vector<8x64xf32>
    %153 = arith.mulf %150, %152 : vector<8x64xf32>
    %c40_152 = arith.constant 40 : index
    %c0_153 = arith.constant 0 : index
    %154 = vector.load %arg25[%c40_152, %c0_153] : memref<72x64xf32, #tpu.memory_space<vmem>>, vector<8x64xf32>
    tpu.vector_store %arg25[%c40_152, %c0_153], %153 {strides = array<i32>} : memref<72x64xf32, #tpu.memory_space<vmem>>, vector<8x64xf32>,
    %c0_154 = arith.constant 0 : index
    %c135 = arith.constant 135 : index
    %155 = vector.load %arg24[%c0_154, %c135] : memref<8x320xf32, #tpu.memory_space<vmem>>, vector<8x64xf32>
    %c6_155 = arith.constant 6 : index
    %c0_156 = arith.constant 0 : index
    %156 = vector.load %arg15[%c6_155, %c0_156] : memref<9x64xf32, #tpu.memory_space<vmem>>, vector<1x64xf32>
    %157 = vector.broadcast %156 : vector<1x64xf32> to vector<8x64xf32>
    %158 = arith.mulf %155, %157 : vector<8x64xf32>
    %c48_157 = arith.constant 48 : index
    %c0_158 = arith.constant 0 : index
    %159 = vector.load %arg25[%c48_157, %c0_158] : memref<72x64xf32, #tpu.memory_space<vmem>>, vector<8x64xf32>
    tpu.vector_store %arg25[%c48_157, %c0_158], %158 {strides = array<i32>} : memref<72x64xf32, #tpu.memory_space<vmem>>, vector<8x64xf32>,
    %c0_159 = arith.constant 0 : index
    %c136 = arith.constant 136 : index
    %160 = vector.load %arg24[%c0_159, %c136] : memref<8x320xf32, #tpu.memory_space<vmem>>, vector<8x64xf32>
    %c7_160 = arith.constant 7 : index
    %c0_161 = arith.constant 0 : index
    %161 = vector.load %arg15[%c7_160, %c0_161] : memref<9x64xf32, #tpu.memory_space<vmem>>, vector<1x64xf32>
    %162 = vector.broadcast %161 : vector<1x64xf32> to vector<8x64xf32>
    %163 = arith.mulf %160, %162 : vector<8x64xf32>
    %c56_162 = arith.constant 56 : index
    %c0_163 = arith.constant 0 : index
    %164 = vector.load %arg25[%c56_162, %c0_163] : memref<72x64xf32, #tpu.memory_space<vmem>>, vector<8x64xf32>
    tpu.vector_store %arg25[%c56_162, %c0_163], %163 {strides = array<i32>} : memref<72x64xf32, #tpu.memory_space<vmem>>, vector<8x64xf32>,
    %c0_164 = arith.constant 0 : index
    %c137 = arith.constant 137 : index
    %165 = vector.load %arg24[%c0_164, %c137] : memref<8x320xf32, #tpu.memory_space<vmem>>, vector<8x64xf32>
    %c8_165 = arith.constant 8 : index
    %c0_166 = arith.constant 0 : index
    %166 = vector.load %arg15[%c8_165, %c0_166] : memref<9x64xf32, #tpu.memory_space<vmem>>, vector<1x64xf32>
    %167 = vector.broadcast %166 : vector<1x64xf32> to vector<8x64xf32>
    %168 = arith.mulf %165, %167 : vector<8x64xf32>
    %c64_167 = arith.constant 64 : index
    %c0_168 = arith.constant 0 : index
    %169 = vector.load %arg25[%c64_167, %c0_168] : memref<72x64xf32, #tpu.memory_space<vmem>>, vector<8x64xf32>
    tpu.vector_store %arg25[%c64_167, %c0_168], %168 {strides = array<i32>} : memref<72x64xf32, #tpu.memory_space<vmem>>, vector<8x64xf32>,
    %c0_169 = arith.constant 0 : index
    %c0_170 = arith.constant 0 : index
    %170 = vector.load %arg6[%c0_169, %c0_170] : memref<8x72xf32, #tpu.memory_space<vmem>>, vector<8x72xf32>
    %c0_171 = arith.constant 0 : index
    %c0_172 = arith.constant 0 : index
    %171 = vector.load %arg25[%c0_171, %c0_172] : memref<72x64xf32, #tpu.memory_space<vmem>>, vector<72x64xf32>
    %cst_173 = arith.constant dense<0.000000e+00> : vector<8x64xf32>
    %172 = tpu.matmul %170, %171, %cst_173 {dimension_numbers = #tpu.dot_dimension_numbers<[1], [0], [0], [1], [0, 0, 1, 1], [], []>} : vector<8x72xf32>, vector<72x64xf32>, vector<8x64xf32> -> vector<8x64xf32>
    %c0_174 = arith.constant 0 : index
    %c0_175 = arith.constant 0 : index
    %173 = vector.load %arg7[%c0_174, %c0_175] : memref<8x1xf32, #tpu.memory_space<vmem>>, vector<8x1xf32>
    %174 = vector.broadcast %173 : vector<8x1xf32> to vector<8x64xf32>
    %175 = arith.addf %172, %174 : vector<8x64xf32>
    %cst_176 = arith.constant 0.000000e+00 : f32
    %176 = vector.broadcast %cst_176 : f32 to vector<8x64xf32>
    %177 = arith.cmpf oge, %175, %176 : vector<8x64xf32>
    %cst_177 = arith.constant 0.00999999977 : f32
    %178 = vector.broadcast %cst_177 : f32 to vector<8x64xf32>
    %179 = arith.mulf %178, %175 : vector<8x64xf32>
    %180 = arith.select %177, %175, %179 : vector<8x64xi1>, vector<8x64xf32>
    %c0_178 = arith.constant 0 : index
    %c128_179 = arith.constant 128 : index
    %181 = vector.load %arg24[%c0_178, %c128_179] : memref<8x320xf32, #tpu.memory_space<vmem>>, vector<8x64xf32>
    tpu.vector_store %arg24[%c0_178, %c128_179], %180 {strides = array<i32>} : memref<8x320xf32, #tpu.memory_space<vmem>>, vector<8x64xf32>,
    %c0_180 = arith.constant 0 : index
    %c119_181 = arith.constant 119 : index
    %182 = vector.load %arg24[%c0_180, %c119_181] : memref<8x320xf32, #tpu.memory_space<vmem>>, vector<8x64xf32>
    %c0_182 = arith.constant 0 : index
    %c0_183 = arith.constant 0 : index
    %183 = vector.load %arg15[%c0_182, %c0_183] : memref<9x64xf32, #tpu.memory_space<vmem>>, vector<1x64xf32>
    %184 = vector.broadcast %183 : vector<1x64xf32> to vector<8x64xf32>
    %185 = arith.mulf %182, %184 : vector<8x64xf32>
    %c0_184 = arith.constant 0 : index
    %c0_185 = arith.constant 0 : index
    %186 = vector.load %arg25[%c0_184, %c0_185] : memref<72x64xf32, #tpu.memory_space<vmem>>, vector<8x64xf32>
    tpu.vector_store %arg25[%c0_184, %c0_185], %185 {strides = array<i32>} : memref<72x64xf32, #tpu.memory_space<vmem>>, vector<8x64xf32>,
    %c0_186 = arith.constant 0 : index
    %c120_187 = arith.constant 120 : index
    %187 = vector.load %arg24[%c0_186, %c120_187] : memref<8x320xf32, #tpu.memory_space<vmem>>, vector<8x64xf32>
    %c1_188 = arith.constant 1 : index
    %c0_189 = arith.constant 0 : index
    %188 = vector.load %arg15[%c1_188, %c0_189] : memref<9x64xf32, #tpu.memory_space<vmem>>, vector<1x64xf32>
    %189 = vector.broadcast %188 : vector<1x64xf32> to vector<8x64xf32>
    %190 = arith.mulf %187, %189 : vector<8x64xf32>
    %c8_190 = arith.constant 8 : index
    %c0_191 = arith.constant 0 : index
    %191 = vector.load %arg25[%c8_190, %c0_191] : memref<72x64xf32, #tpu.memory_space<vmem>>, vector<8x64xf32>
    tpu.vector_store %arg25[%c8_190, %c0_191], %190 {strides = array<i32>} : memref<72x64xf32, #tpu.memory_space<vmem>>, vector<8x64xf32>,
    %c0_192 = arith.constant 0 : index
    %c121_193 = arith.constant 121 : index
    %192 = vector.load %arg24[%c0_192, %c121_193] : memref<8x320xf32, #tpu.memory_space<vmem>>, vector<8x64xf32>
    %c2_194 = arith.constant 2 : index
    %c0_195 = arith.constant 0 : index
    %193 = vector.load %arg15[%c2_194, %c0_195] : memref<9x64xf32, #tpu.memory_space<vmem>>, vector<1x64xf32>
    %194 = vector.broadcast %193 : vector<1x64xf32> to vector<8x64xf32>
    %195 = arith.mulf %192, %194 : vector<8x64xf32>
    %c16_196 = arith.constant 16 : index
    %c0_197 = arith.constant 0 : index
    %196 = vector.load %arg25[%c16_196, %c0_197] : memref<72x64xf32, #tpu.memory_space<vmem>>, vector<8x64xf32>
    tpu.vector_store %arg25[%c16_196, %c0_197], %195 {strides = array<i32>} : memref<72x64xf32, #tpu.memory_space<vmem>>, vector<8x64xf32>,
    %c0_198 = arith.constant 0 : index
    %c127_199 = arith.constant 127 : index
    %197 = vector.load %arg24[%c0_198, %c127_199] : memref<8x320xf32, #tpu.memory_space<vmem>>, vector<8x64xf32>
    %c3_200 = arith.constant 3 : index
    %c0_201 = arith.constant 0 : index
    %198 = vector.load %arg15[%c3_200, %c0_201] : memref<9x64xf32, #tpu.memory_space<vmem>>, vector<1x64xf32>
    %199 = vector.broadcast %198 : vector<1x64xf32> to vector<8x64xf32>
    %200 = arith.mulf %197, %199 : vector<8x64xf32>
    %c24_202 = arith.constant 24 : index
    %c0_203 = arith.constant 0 : index
    %201 = vector.load %arg25[%c24_202, %c0_203] : memref<72x64xf32, #tpu.memory_space<vmem>>, vector<8x64xf32>
    tpu.vector_store %arg25[%c24_202, %c0_203], %200 {strides = array<i32>} : memref<72x64xf32, #tpu.memory_space<vmem>>, vector<8x64xf32>,
    %c0_204 = arith.constant 0 : index
    %c128_205 = arith.constant 128 : index
    %202 = vector.load %arg24[%c0_204, %c128_205] : memref<8x320xf32, #tpu.memory_space<vmem>>, vector<8x64xf32>
    %c4_206 = arith.constant 4 : index
    %c0_207 = arith.constant 0 : index
    %203 = vector.load %arg15[%c4_206, %c0_207] : memref<9x64xf32, #tpu.memory_space<vmem>>, vector<1x64xf32>
    %204 = vector.broadcast %203 : vector<1x64xf32> to vector<8x64xf32>
    %205 = arith.mulf %202, %204 : vector<8x64xf32>
    %c32_208 = arith.constant 32 : index
    %c0_209 = arith.constant 0 : index
    %206 = vector.load %arg25[%c32_208, %c0_209] : memref<72x64xf32, #tpu.memory_space<vmem>>, vector<8x64xf32>
    tpu.vector_store %arg25[%c32_208, %c0_209], %205 {strides = array<i32>} : memref<72x64xf32, #tpu.memory_space<vmem>>, vector<8x64xf32>,
    %c0_210 = arith.constant 0 : index
    %c129_211 = arith.constant 129 : index
    %207 = vector.load %arg24[%c0_210, %c129_211] : memref<8x320xf32, #tpu.memory_space<vmem>>, vector<8x64xf32>
    %c5_212 = arith.constant 5 : index
    %c0_213 = arith.constant 0 : index
    %208 = vector.load %arg15[%c5_212, %c0_213] : memref<9x64xf32, #tpu.memory_space<vmem>>, vector<1x64xf32>
    %209 = vector.broadcast %208 : vector<1x64xf32> to vector<8x64xf32>
    %210 = arith.mulf %207, %209 : vector<8x64xf32>
    %c40_214 = arith.constant 40 : index
    %c0_215 = arith.constant 0 : index
    %211 = vector.load %arg25[%c40_214, %c0_215] : memref<72x64xf32, #tpu.memory_space<vmem>>, vector<8x64xf32>
    tpu.vector_store %arg25[%c40_214, %c0_215], %210 {strides = array<i32>} : memref<72x64xf32, #tpu.memory_space<vmem>>, vector<8x64xf32>,
    %c0_216 = arith.constant 0 : index
    %c135_217 = arith.constant 135 : index
    %212 = vector.load %arg24[%c0_216, %c135_217] : memref<8x320xf32, #tpu.memory_space<vmem>>, vector<8x64xf32>
    %c6_218 = arith.constant 6 : index
    %c0_219 = arith.constant 0 : index
    %213 = vector.load %arg15[%c6_218, %c0_219] : memref<9x64xf32, #tpu.memory_space<vmem>>, vector<1x64xf32>
    %214 = vector.broadcast %213 : vector<1x64xf32> to vector<8x64xf32>
    %215 = arith.mulf %212, %214 : vector<8x64xf32>
    %c48_220 = arith.constant 48 : index
    %c0_221 = arith.constant 0 : index
    %216 = vector.load %arg25[%c48_220, %c0_221] : memref<72x64xf32, #tpu.memory_space<vmem>>, vector<8x64xf32>
    tpu.vector_store %arg25[%c48_220, %c0_221], %215 {strides = array<i32>} : memref<72x64xf32, #tpu.memory_space<vmem>>, vector<8x64xf32>,
    %c0_222 = arith.constant 0 : index
    %c136_223 = arith.constant 136 : index
    %217 = vector.load %arg24[%c0_222, %c136_223] : memref<8x320xf32, #tpu.memory_space<vmem>>, vector<8x64xf32>
    %c7_224 = arith.constant 7 : index
    %c0_225 = arith.constant 0 : index
    %218 = vector.load %arg15[%c7_224, %c0_225] : memref<9x64xf32, #tpu.memory_space<vmem>>, vector<1x64xf32>
    %219 = vector.broadcast %218 : vector<1x64xf32> to vector<8x64xf32>
    %220 = arith.mulf %217, %219 : vector<8x64xf32>
    %c56_226 = arith.constant 56 : index
    %c0_227 = arith.constant 0 : index
    %221 = vector.load %arg25[%c56_226, %c0_227] : memref<72x64xf32, #tpu.memory_space<vmem>>, vector<8x64xf32>
    tpu.vector_store %arg25[%c56_226, %c0_227], %220 {strides = array<i32>} : memref<72x64xf32, #tpu.memory_space<vmem>>, vector<8x64xf32>,
    %c0_228 = arith.constant 0 : index
    %c137_229 = arith.constant 137 : index
    %222 = vector.load %arg24[%c0_228, %c137_229] : memref<8x320xf32, #tpu.memory_space<vmem>>, vector<8x64xf32>
    %c8_230 = arith.constant 8 : index
    %c0_231 = arith.constant 0 : index
    %223 = vector.load %arg15[%c8_230, %c0_231] : memref<9x64xf32, #tpu.memory_space<vmem>>, vector<1x64xf32>
    %224 = vector.broadcast %223 : vector<1x64xf32> to vector<8x64xf32>
    %225 = arith.mulf %222, %224 : vector<8x64xf32>
    %c64_232 = arith.constant 64 : index
    %c0_233 = arith.constant 0 : index
    %226 = vector.load %arg25[%c64_232, %c0_233] : memref<72x64xf32, #tpu.memory_space<vmem>>, vector<8x64xf32>
    tpu.vector_store %arg25[%c64_232, %c0_233], %225 {strides = array<i32>} : memref<72x64xf32, #tpu.memory_space<vmem>>, vector<8x64xf32>,
    %c0_234 = arith.constant 0 : index
    %c0_235 = arith.constant 0 : index
    %227 = vector.load %arg8[%c0_234, %c0_235] : memref<16x72xf32, #tpu.memory_space<vmem>>, vector<16x72xf32>
    %c0_236 = arith.constant 0 : index
    %c0_237 = arith.constant 0 : index
    %228 = vector.load %arg25[%c0_236, %c0_237] : memref<72x64xf32, #tpu.memory_space<vmem>>, vector<72x64xf32>
    %cst_238 = arith.constant dense<0.000000e+00> : vector<16x64xf32>
    %229 = tpu.matmul %227, %228, %cst_238 {dimension_numbers = #tpu.dot_dimension_numbers<[1], [0], [0], [1], [0, 0, 1, 1], [], []>} : vector<16x72xf32>, vector<72x64xf32>, vector<16x64xf32> -> vector<16x64xf32>
    %c0_239 = arith.constant 0 : index
    %c0_240 = arith.constant 0 : index
    %230 = vector.load %arg9[%c0_239, %c0_240] : memref<16x1xf32, #tpu.memory_space<vmem>>, vector<16x1xf32>
    %231 = vector.broadcast %230 : vector<16x1xf32> to vector<16x64xf32>
    %232 = arith.addf %229, %231 : vector<16x64xf32>
    %cst_241 = arith.constant 0.000000e+00 : f32
    %233 = vector.broadcast %cst_241 : f32 to vector<16x64xf32>
    %234 = arith.cmpf oge, %232, %233 : vector<16x64xf32>
    %cst_242 = arith.constant 0.00999999977 : f32
    %235 = vector.broadcast %cst_242 : f32 to vector<16x64xf32>
    %236 = arith.mulf %235, %232 : vector<16x64xf32>
    %237 = arith.select %234, %232, %236 : vector<16x64xi1>, vector<16x64xf32>
    %c0_243 = arith.constant 0 : index
    %c0_244 = arith.constant 0 : index
    %238 = vector.load %arg18[%c0_243, %c0_244] : memref<64x16xf32, #tpu.memory_space<vmem>>, vector<64x16xf32>
    %cst_245 = arith.constant dense<0.000000e+00> : vector<16x16xf32>
    %239 = tpu.matmul %237, %238, %cst_245 {dimension_numbers = #tpu.dot_dimension_numbers<[1], [0], [0], [1], [0, 0, 1, 1], [], []>} : vector<16x64xf32>, vector<64x16xf32>, vector<16x16xf32> -> vector<16x16xf32>
    %cst_246 = arith.constant 0.000000e+00 : f32
    %240 = vector.broadcast %cst_246 : f32 to vector<16x16xf32>
    %241 = arith.cmpf oge, %239, %240 : vector<16x16xf32>
    %cst_247 = arith.constant 0.00999999977 : f32
    %242 = vector.broadcast %cst_247 : f32 to vector<16x16xf32>
    %243 = arith.mulf %242, %239 : vector<16x16xf32>
    %244 = arith.select %241, %239, %243 : vector<16x16xi1>, vector<16x16xf32>
    %c0_248 = arith.constant 0 : index
    %c128_249 = arith.constant 128 : index
    %245 = vector.load %arg26[%c0_248, %c128_249] : memref<16x272xf32, #tpu.memory_space<vmem>>, vector<16x16xf32>
    tpu.vector_store %arg26[%c0_248, %c128_249], %244 {strides = array<i32>} : memref<16x272xf32, #tpu.memory_space<vmem>>, vector<16x16xf32>,
    %c0_250 = arith.constant 0 : index
    %c123 = arith.constant 123 : index
    %246 = vector.load %arg26[%c0_250, %c123] : memref<16x272xf32, #tpu.memory_space<vmem>>, vector<16x16xf32>
    %c0_251 = arith.constant 0 : index
    %c0_252 = arith.constant 0 : index
    %247 = vector.load %arg16[%c0_251, %c0_252] : memref<9x16xf32, #tpu.memory_space<vmem>>, vector<1x16xf32>
    %248 = vector.broadcast %247 : vector<1x16xf32> to vector<16x16xf32>
    %249 = arith.mulf %246, %248 : vector<16x16xf32>
    %c0_253 = arith.constant 0 : index
    %c0_254 = arith.constant 0 : index
    %250 = vector.load %arg27[%c0_253, %c0_254] : memref<144x16xf32, #tpu.memory_space<vmem>>, vector<16x16xf32>
    tpu.vector_store %arg27[%c0_253, %c0_254], %249 {strides = array<i32>} : memref<144x16xf32, #tpu.memory_space<vmem>>, vector<16x16xf32>,
    %c0_255 = arith.constant 0 : index
    %c124 = arith.constant 124 : index
    %251 = vector.load %arg26[%c0_255, %c124] : memref<16x272xf32, #tpu.memory_space<vmem>>, vector<16x16xf32>
    %c1_256 = arith.constant 1 : index
    %c0_257 = arith.constant 0 : index
    %252 = vector.load %arg16[%c1_256, %c0_257] : memref<9x16xf32, #tpu.memory_space<vmem>>, vector<1x16xf32>
    %253 = vector.broadcast %252 : vector<1x16xf32> to vector<16x16xf32>
    %254 = arith.mulf %251, %253 : vector<16x16xf32>
    %c16_258 = arith.constant 16 : index
    %c0_259 = arith.constant 0 : index
    %255 = vector.load %arg27[%c16_258, %c0_259] : memref<144x16xf32, #tpu.memory_space<vmem>>, vector<16x16xf32>
    tpu.vector_store %arg27[%c16_258, %c0_259], %254 {strides = array<i32>} : memref<144x16xf32, #tpu.memory_space<vmem>>, vector<16x16xf32>,
    %c0_260 = arith.constant 0 : index
    %c125 = arith.constant 125 : index
    %256 = vector.load %arg26[%c0_260, %c125] : memref<16x272xf32, #tpu.memory_space<vmem>>, vector<16x16xf32>
    %c2_261 = arith.constant 2 : index
    %c0_262 = arith.constant 0 : index
    %257 = vector.load %arg16[%c2_261, %c0_262] : memref<9x16xf32, #tpu.memory_space<vmem>>, vector<1x16xf32>
    %258 = vector.broadcast %257 : vector<1x16xf32> to vector<16x16xf32>
    %259 = arith.mulf %256, %258 : vector<16x16xf32>
    %c32_263 = arith.constant 32 : index
    %c0_264 = arith.constant 0 : index
    %260 = vector.load %arg27[%c32_263, %c0_264] : memref<144x16xf32, #tpu.memory_space<vmem>>, vector<16x16xf32>
    tpu.vector_store %arg27[%c32_263, %c0_264], %259 {strides = array<i32>} : memref<144x16xf32, #tpu.memory_space<vmem>>, vector<16x16xf32>,
    %c0_265 = arith.constant 0 : index
    %c127_266 = arith.constant 127 : index
    %261 = vector.load %arg26[%c0_265, %c127_266] : memref<16x272xf32, #tpu.memory_space<vmem>>, vector<16x16xf32>
    %c3_267 = arith.constant 3 : index
    %c0_268 = arith.constant 0 : index
    %262 = vector.load %arg16[%c3_267, %c0_268] : memref<9x16xf32, #tpu.memory_space<vmem>>, vector<1x16xf32>
    %263 = vector.broadcast %262 : vector<1x16xf32> to vector<16x16xf32>
    %264 = arith.mulf %261, %263 : vector<16x16xf32>
    %c48_269 = arith.constant 48 : index
    %c0_270 = arith.constant 0 : index
    %265 = vector.load %arg27[%c48_269, %c0_270] : memref<144x16xf32, #tpu.memory_space<vmem>>, vector<16x16xf32>
    tpu.vector_store %arg27[%c48_269, %c0_270], %264 {strides = array<i32>} : memref<144x16xf32, #tpu.memory_space<vmem>>, vector<16x16xf32>,
    %c0_271 = arith.constant 0 : index
    %c128_272 = arith.constant 128 : index
    %266 = vector.load %arg26[%c0_271, %c128_272] : memref<16x272xf32, #tpu.memory_space<vmem>>, vector<16x16xf32>
    %c4_273 = arith.constant 4 : index
    %c0_274 = arith.constant 0 : index
    %267 = vector.load %arg16[%c4_273, %c0_274] : memref<9x16xf32, #tpu.memory_space<vmem>>, vector<1x16xf32>
    %268 = vector.broadcast %267 : vector<1x16xf32> to vector<16x16xf32>
    %269 = arith.mulf %266, %268 : vector<16x16xf32>
    %c64_275 = arith.constant 64 : index
    %c0_276 = arith.constant 0 : index
    %270 = vector.load %arg27[%c64_275, %c0_276] : memref<144x16xf32, #tpu.memory_space<vmem>>, vector<16x16xf32>
    tpu.vector_store %arg27[%c64_275, %c0_276], %269 {strides = array<i32>} : memref<144x16xf32, #tpu.memory_space<vmem>>, vector<16x16xf32>,
    %c0_277 = arith.constant 0 : index
    %c129_278 = arith.constant 129 : index
    %271 = vector.load %arg26[%c0_277, %c129_278] : memref<16x272xf32, #tpu.memory_space<vmem>>, vector<16x16xf32>
    %c5_279 = arith.constant 5 : index
    %c0_280 = arith.constant 0 : index
    %272 = vector.load %arg16[%c5_279, %c0_280] : memref<9x16xf32, #tpu.memory_space<vmem>>, vector<1x16xf32>
    %273 = vector.broadcast %272 : vector<1x16xf32> to vector<16x16xf32>
    %274 = arith.mulf %271, %273 : vector<16x16xf32>
    %c80 = arith.constant 80 : index
    %c0_281 = arith.constant 0 : index
    %275 = vector.load %arg27[%c80, %c0_281] : memref<144x16xf32, #tpu.memory_space<vmem>>, vector<16x16xf32>
    tpu.vector_store %arg27[%c80, %c0_281], %274 {strides = array<i32>} : memref<144x16xf32, #tpu.memory_space<vmem>>, vector<16x16xf32>,
    %c0_282 = arith.constant 0 : index
    %c131 = arith.constant 131 : index
    %276 = vector.load %arg26[%c0_282, %c131] : memref<16x272xf32, #tpu.memory_space<vmem>>, vector<16x16xf32>
    %c6_283 = arith.constant 6 : index
    %c0_284 = arith.constant 0 : index
    %277 = vector.load %arg16[%c6_283, %c0_284] : memref<9x16xf32, #tpu.memory_space<vmem>>, vector<1x16xf32>
    %278 = vector.broadcast %277 : vector<1x16xf32> to vector<16x16xf32>
    %279 = arith.mulf %276, %278 : vector<16x16xf32>
    %c96 = arith.constant 96 : index
    %c0_285 = arith.constant 0 : index
    %280 = vector.load %arg27[%c96, %c0_285] : memref<144x16xf32, #tpu.memory_space<vmem>>, vector<16x16xf32>
    tpu.vector_store %arg27[%c96, %c0_285], %279 {strides = array<i32>} : memref<144x16xf32, #tpu.memory_space<vmem>>, vector<16x16xf32>,
    %c0_286 = arith.constant 0 : index
    %c132 = arith.constant 132 : index
    %281 = vector.load %arg26[%c0_286, %c132] : memref<16x272xf32, #tpu.memory_space<vmem>>, vector<16x16xf32>
    %c7_287 = arith.constant 7 : index
    %c0_288 = arith.constant 0 : index
    %282 = vector.load %arg16[%c7_287, %c0_288] : memref<9x16xf32, #tpu.memory_space<vmem>>, vector<1x16xf32>
    %283 = vector.broadcast %282 : vector<1x16xf32> to vector<16x16xf32>
    %284 = arith.mulf %281, %283 : vector<16x16xf32>
    %c112_289 = arith.constant 112 : index
    %c0_290 = arith.constant 0 : index
    %285 = vector.load %arg27[%c112_289, %c0_290] : memref<144x16xf32, #tpu.memory_space<vmem>>, vector<16x16xf32>
    tpu.vector_store %arg27[%c112_289, %c0_290], %284 {strides = array<i32>} : memref<144x16xf32, #tpu.memory_space<vmem>>, vector<16x16xf32>,
    %c0_291 = arith.constant 0 : index
    %c133 = arith.constant 133 : index
    %286 = vector.load %arg26[%c0_291, %c133] : memref<16x272xf32, #tpu.memory_space<vmem>>, vector<16x16xf32>
    %c8_292 = arith.constant 8 : index
    %c0_293 = arith.constant 0 : index
    %287 = vector.load %arg16[%c8_292, %c0_293] : memref<9x16xf32, #tpu.memory_space<vmem>>, vector<1x16xf32>
    %288 = vector.broadcast %287 : vector<1x16xf32> to vector<16x16xf32>
    %289 = arith.mulf %286, %288 : vector<16x16xf32>
    %c128_294 = arith.constant 128 : index
    %c0_295 = arith.constant 0 : index
    %290 = vector.load %arg27[%c128_294, %c0_295] : memref<144x16xf32, #tpu.memory_space<vmem>>, vector<16x16xf32>
    tpu.vector_store %arg27[%c128_294, %c0_295], %289 {strides = array<i32>} : memref<144x16xf32, #tpu.memory_space<vmem>>, vector<16x16xf32>,
    %c0_296 = arith.constant 0 : index
    %c0_297 = arith.constant 0 : index
    %291 = vector.load %arg10[%c0_296, %c0_297] : memref<16x144xf32, #tpu.memory_space<vmem>>, vector<16x144xf32>
    %c0_298 = arith.constant 0 : index
    %c0_299 = arith.constant 0 : index
    %292 = vector.load %arg27[%c0_298, %c0_299] : memref<144x16xf32, #tpu.memory_space<vmem>>, vector<144x16xf32>
    %cst_300 = arith.constant dense<0.000000e+00> : vector<16x16xf32>
    %293 = tpu.matmul %291, %292, %cst_300 {dimension_numbers = #tpu.dot_dimension_numbers<[1], [0], [0], [1], [0, 0, 1, 1], [], []>} : vector<16x144xf32>, vector<144x16xf32>, vector<16x16xf32> -> vector<16x16xf32>
    %c0_301 = arith.constant 0 : index
    %c0_302 = arith.constant 0 : index
    %294 = vector.load %arg11[%c0_301, %c0_302] : memref<16x1xf32, #tpu.memory_space<vmem>>, vector<16x1xf32>
    %295 = vector.broadcast %294 : vector<16x1xf32> to vector<16x16xf32>
    %296 = arith.addf %293, %295 : vector<16x16xf32>
    %cst_303 = arith.constant 1.000000e-01 : f32
    %297 = vector.broadcast %cst_303 : f32 to vector<16x16xf32>
    %298 = arith.mulf %297, %296 : vector<16x16xf32>
    %cst_304 = arith.constant 0.899999976 : f32
    %299 = vector.broadcast %cst_304 : f32 to vector<16x16xf32>
    %300 = arith.mulf %299, %239 : vector<16x16xf32>
    %301 = arith.addf %298, %300 : vector<16x16xf32>
    %cst_305 = arith.constant 0.000000e+00 : f32
    %302 = vector.broadcast %cst_305 : f32 to vector<16x16xf32>
    %303 = arith.cmpf oge, %301, %302 : vector<16x16xf32>
    %cst_306 = arith.constant 0.00999999977 : f32
    %304 = vector.broadcast %cst_306 : f32 to vector<16x16xf32>
    %305 = arith.mulf %304, %301 : vector<16x16xf32>
    %306 = arith.select %303, %301, %305 : vector<16x16xi1>, vector<16x16xf32>
    %c0_307 = arith.constant 0 : index
    %c128_308 = arith.constant 128 : index
    %307 = vector.load %arg26[%c0_307, %c128_308] : memref<16x272xf32, #tpu.memory_space<vmem>>, vector<16x16xf32>
    tpu.vector_store %arg26[%c0_307, %c128_308], %306 {strides = array<i32>} : memref<16x272xf32, #tpu.memory_space<vmem>>, vector<16x16xf32>,
    %c0_309 = arith.constant 0 : index
    %c123_310 = arith.constant 123 : index
    %308 = vector.load %arg26[%c0_309, %c123_310] : memref<16x272xf32, #tpu.memory_space<vmem>>, vector<16x16xf32>
    %c0_311 = arith.constant 0 : index
    %c0_312 = arith.constant 0 : index
    %309 = vector.load %arg16[%c0_311, %c0_312] : memref<9x16xf32, #tpu.memory_space<vmem>>, vector<1x16xf32>
    %310 = vector.broadcast %309 : vector<1x16xf32> to vector<16x16xf32>
    %311 = arith.mulf %308, %310 : vector<16x16xf32>
    %c0_313 = arith.constant 0 : index
    %c0_314 = arith.constant 0 : index
    %312 = vector.load %arg27[%c0_313, %c0_314] : memref<144x16xf32, #tpu.memory_space<vmem>>, vector<16x16xf32>
    tpu.vector_store %arg27[%c0_313, %c0_314], %311 {strides = array<i32>} : memref<144x16xf32, #tpu.memory_space<vmem>>, vector<16x16xf32>,
    %c0_315 = arith.constant 0 : index
    %c124_316 = arith.constant 124 : index
    %313 = vector.load %arg26[%c0_315, %c124_316] : memref<16x272xf32, #tpu.memory_space<vmem>>, vector<16x16xf32>
    %c1_317 = arith.constant 1 : index
    %c0_318 = arith.constant 0 : index
    %314 = vector.load %arg16[%c1_317, %c0_318] : memref<9x16xf32, #tpu.memory_space<vmem>>, vector<1x16xf32>
    %315 = vector.broadcast %314 : vector<1x16xf32> to vector<16x16xf32>
    %316 = arith.mulf %313, %315 : vector<16x16xf32>
    %c16_319 = arith.constant 16 : index
    %c0_320 = arith.constant 0 : index
    %317 = vector.load %arg27[%c16_319, %c0_320] : memref<144x16xf32, #tpu.memory_space<vmem>>, vector<16x16xf32>
    tpu.vector_store %arg27[%c16_319, %c0_320], %316 {strides = array<i32>} : memref<144x16xf32, #tpu.memory_space<vmem>>, vector<16x16xf32>,
    %c0_321 = arith.constant 0 : index
    %c125_322 = arith.constant 125 : index
    %318 = vector.load %arg26[%c0_321, %c125_322] : memref<16x272xf32, #tpu.memory_space<vmem>>, vector<16x16xf32>
    %c2_323 = arith.constant 2 : index
    %c0_324 = arith.constant 0 : index
    %319 = vector.load %arg16[%c2_323, %c0_324] : memref<9x16xf32, #tpu.memory_space<vmem>>, vector<1x16xf32>
    %320 = vector.broadcast %319 : vector<1x16xf32> to vector<16x16xf32>
    %321 = arith.mulf %318, %320 : vector<16x16xf32>
    %c32_325 = arith.constant 32 : index
    %c0_326 = arith.constant 0 : index
    %322 = vector.load %arg27[%c32_325, %c0_326] : memref<144x16xf32, #tpu.memory_space<vmem>>, vector<16x16xf32>
    tpu.vector_store %arg27[%c32_325, %c0_326], %321 {strides = array<i32>} : memref<144x16xf32, #tpu.memory_space<vmem>>, vector<16x16xf32>,
    %c0_327 = arith.constant 0 : index
    %c127_328 = arith.constant 127 : index
    %323 = vector.load %arg26[%c0_327, %c127_328] : memref<16x272xf32, #tpu.memory_space<vmem>>, vector<16x16xf32>
    %c3_329 = arith.constant 3 : index
    %c0_330 = arith.constant 0 : index
    %324 = vector.load %arg16[%c3_329, %c0_330] : memref<9x16xf32, #tpu.memory_space<vmem>>, vector<1x16xf32>
    %325 = vector.broadcast %324 : vector<1x16xf32> to vector<16x16xf32>
    %326 = arith.mulf %323, %325 : vector<16x16xf32>
    %c48_331 = arith.constant 48 : index
    %c0_332 = arith.constant 0 : index
    %327 = vector.load %arg27[%c48_331, %c0_332] : memref<144x16xf32, #tpu.memory_space<vmem>>, vector<16x16xf32>
    tpu.vector_store %arg27[%c48_331, %c0_332], %326 {strides = array<i32>} : memref<144x16xf32, #tpu.memory_space<vmem>>, vector<16x16xf32>,
    %c0_333 = arith.constant 0 : index
    %c128_334 = arith.constant 128 : index
    %328 = vector.load %arg26[%c0_333, %c128_334] : memref<16x272xf32, #tpu.memory_space<vmem>>, vector<16x16xf32>
    %c4_335 = arith.constant 4 : index
    %c0_336 = arith.constant 0 : index
    %329 = vector.load %arg16[%c4_335, %c0_336] : memref<9x16xf32, #tpu.memory_space<vmem>>, vector<1x16xf32>
    %330 = vector.broadcast %329 : vector<1x16xf32> to vector<16x16xf32>
    %331 = arith.mulf %328, %330 : vector<16x16xf32>
    %c64_337 = arith.constant 64 : index
    %c0_338 = arith.constant 0 : index
    %332 = vector.load %arg27[%c64_337, %c0_338] : memref<144x16xf32, #tpu.memory_space<vmem>>, vector<16x16xf32>
    tpu.vector_store %arg27[%c64_337, %c0_338], %331 {strides = array<i32>} : memref<144x16xf32, #tpu.memory_space<vmem>>, vector<16x16xf32>,
    %c0_339 = arith.constant 0 : index
    %c129_340 = arith.constant 129 : index
    %333 = vector.load %arg26[%c0_339, %c129_340] : memref<16x272xf32, #tpu.memory_space<vmem>>, vector<16x16xf32>
    %c5_341 = arith.constant 5 : index
    %c0_342 = arith.constant 0 : index
    %334 = vector.load %arg16[%c5_341, %c0_342] : memref<9x16xf32, #tpu.memory_space<vmem>>, vector<1x16xf32>
    %335 = vector.broadcast %334 : vector<1x16xf32> to vector<16x16xf32>
    %336 = arith.mulf %333, %335 : vector<16x16xf32>
    %c80_343 = arith.constant 80 : index
    %c0_344 = arith.constant 0 : index
    %337 = vector.load %arg27[%c80_343, %c0_344] : memref<144x16xf32, #tpu.memory_space<vmem>>, vector<16x16xf32>
    tpu.vector_store %arg27[%c80_343, %c0_344], %336 {strides = array<i32>} : memref<144x16xf32, #tpu.memory_space<vmem>>, vector<16x16xf32>,
    %c0_345 = arith.constant 0 : index
    %c131_346 = arith.constant 131 : index
    %338 = vector.load %arg26[%c0_345, %c131_346] : memref<16x272xf32, #tpu.memory_space<vmem>>, vector<16x16xf32>
    %c6_347 = arith.constant 6 : index
    %c0_348 = arith.constant 0 : index
    %339 = vector.load %arg16[%c6_347, %c0_348] : memref<9x16xf32, #tpu.memory_space<vmem>>, vector<1x16xf32>
    %340 = vector.broadcast %339 : vector<1x16xf32> to vector<16x16xf32>
    %341 = arith.mulf %338, %340 : vector<16x16xf32>
    %c96_349 = arith.constant 96 : index
    %c0_350 = arith.constant 0 : index
    %342 = vector.load %arg27[%c96_349, %c0_350] : memref<144x16xf32, #tpu.memory_space<vmem>>, vector<16x16xf32>
    tpu.vector_store %arg27[%c96_349, %c0_350], %341 {strides = array<i32>} : memref<144x16xf32, #tpu.memory_space<vmem>>, vector<16x16xf32>,
    %c0_351 = arith.constant 0 : index
    %c132_352 = arith.constant 132 : index
    %343 = vector.load %arg26[%c0_351, %c132_352] : memref<16x272xf32, #tpu.memory_space<vmem>>, vector<16x16xf32>
    %c7_353 = arith.constant 7 : index
    %c0_354 = arith.constant 0 : index
    %344 = vector.load %arg16[%c7_353, %c0_354] : memref<9x16xf32, #tpu.memory_space<vmem>>, vector<1x16xf32>
    %345 = vector.broadcast %344 : vector<1x16xf32> to vector<16x16xf32>
    %346 = arith.mulf %343, %345 : vector<16x16xf32>
    %c112_355 = arith.constant 112 : index
    %c0_356 = arith.constant 0 : index
    %347 = vector.load %arg27[%c112_355, %c0_356] : memref<144x16xf32, #tpu.memory_space<vmem>>, vector<16x16xf32>
    tpu.vector_store %arg27[%c112_355, %c0_356], %346 {strides = array<i32>} : memref<144x16xf32, #tpu.memory_space<vmem>>, vector<16x16xf32>,
    %c0_357 = arith.constant 0 : index
    %c133_358 = arith.constant 133 : index
    %348 = vector.load %arg26[%c0_357, %c133_358] : memref<16x272xf32, #tpu.memory_space<vmem>>, vector<16x16xf32>
    %c8_359 = arith.constant 8 : index
    %c0_360 = arith.constant 0 : index
    %349 = vector.load %arg16[%c8_359, %c0_360] : memref<9x16xf32, #tpu.memory_space<vmem>>, vector<1x16xf32>
    %350 = vector.broadcast %349 : vector<1x16xf32> to vector<16x16xf32>
    %351 = arith.mulf %348, %350 : vector<16x16xf32>
    %c128_361 = arith.constant 128 : index
    %c0_362 = arith.constant 0 : index
    %352 = vector.load %arg27[%c128_361, %c0_362] : memref<144x16xf32, #tpu.memory_space<vmem>>, vector<16x16xf32>
    tpu.vector_store %arg27[%c128_361, %c0_362], %351 {strides = array<i32>} : memref<144x16xf32, #tpu.memory_space<vmem>>, vector<16x16xf32>,
    %c0_363 = arith.constant 0 : index
    %c0_364 = arith.constant 0 : index
    %353 = vector.load %arg12[%c0_363, %c0_364] : memref<16x144xf32, #tpu.memory_space<vmem>>, vector<16x144xf32>
    %c0_365 = arith.constant 0 : index
    %c0_366 = arith.constant 0 : index
    %354 = vector.load %arg27[%c0_365, %c0_366] : memref<144x16xf32, #tpu.memory_space<vmem>>, vector<144x16xf32>
    %cst_367 = arith.constant dense<0.000000e+00> : vector<16x16xf32>
    %355 = tpu.matmul %353, %354, %cst_367 {dimension_numbers = #tpu.dot_dimension_numbers<[1], [0], [0], [1], [0, 0, 1, 1], [], []>} : vector<16x144xf32>, vector<144x16xf32>, vector<16x16xf32> -> vector<16x16xf32>
    %c0_368 = arith.constant 0 : index
    %c0_369 = arith.constant 0 : index
    %356 = vector.load %arg13[%c0_368, %c0_369] : memref<16x1xf32, #tpu.memory_space<vmem>>, vector<16x1xf32>
    %357 = vector.broadcast %356 : vector<16x1xf32> to vector<16x16xf32>
    %358 = arith.addf %355, %357 : vector<16x16xf32>
    %cst_370 = arith.constant 1.000000e-01 : f32
    %359 = vector.broadcast %cst_370 : f32 to vector<16x16xf32>
    %360 = arith.mulf %359, %358 : vector<16x16xf32>
    %cst_371 = arith.constant 0.899999976 : f32
    %361 = vector.broadcast %cst_371 : f32 to vector<16x16xf32>
    %362 = arith.mulf %361, %301 : vector<16x16xf32>
    %363 = arith.addf %360, %362 : vector<16x16xf32>
    %c0_372 = arith.constant 0 : index
    %c0_373 = arith.constant 0 : index
    %c0_374 = arith.constant 0 : index
    %364 = vector.load %arg19[%c0_372, %c0_373, %c0_374] : memref<1x16x16xf32, #tpu.memory_space<vmem>>, vector<1x16x16xf32>
    %365 = vector.shape_cast %364 : vector<1x16x16xf32> to vector<16x16xf32>
    %366 = arith.mulf %363, %365 : vector<16x16xf32>
    %cst_375 = arith.constant dense<0.000000e+00> : vector<16xf32>
    %367 = vector.multi_reduction <add>, %366, %cst_375 [1] : vector<16x16xf32> to vector<16xf32>
    %368 = vector.shape_cast %367 : vector<16xf32> to vector<16x1xf32>
    %cst_376 = arith.constant dense<0.000000e+00> : vector<1xf32>
    %369 = vector.multi_reduction <add>, %368, %cst_376 [0] : vector<16x1xf32> to vector<1xf32>
    %370 = vector.shape_cast %369 : vector<1xf32> to vector<1x1xf32>
    %c0_377 = arith.constant 0 : index
    %c0_378 = arith.constant 0 : index
    %371 = vector.load %arg20[%c0_377, %c0_378] : memref<1x1xf32, #tpu.memory_space<vmem>>, vector<1x1xf32>
    %372 = arith.addf %370, %371 : vector<1x1xf32>
    %c0_379 = arith.constant 0 : index
    %c0_380 = arith.constant 0 : index
    %c0_381 = arith.constant 0 : index
    %373 = vector.load %arg21[%c0_379, %c0_380, %c0_381] : memref<1x1x1xf32, #tpu.memory_space<vmem>>, vector<1x1x1xf32>
    %374 = vector.shape_cast %373 : vector<1x1x1xf32> to vector<1x1xf32>
    %375 = vector.shape_cast %372 : vector<1x1xf32> to vector<1x1x1xf32>
    tpu.vector_store %arg21[%c0_379, %c0_380, %c0_381], %375 {strides = array<i32>} : memref<1x1x1xf32, #tpu.memory_space<vmem>>, vector<1x1x1xf32>,
    return
  }
  func.func @transform_0(%arg0: i32) -> (i32, i32, i32) {
    %c0_i32 = arith.constant 0 : i32
    %c0_i32_0 = arith.constant 0 : i32
    %c0_i32_1 = arith.constant 0 : i32
    return %arg0, %c0_i32, %c0_i32_0 : i32, i32, i32
  }
  func.func @transform_1(%arg0: i32) -> (i32, i32) {
    %c0_i32 = arith.constant 0 : i32
    %c0_i32_0 = arith.constant 0 : i32
    %c0_i32_1 = arith.constant 0 : i32
    return %c0_i32, %c0_i32_0 : i32, i32
  }
  func.func @transform_2(%arg0: i32) -> (i32, i32) {
    %c0_i32 = arith.constant 0 : i32
    %c0_i32_0 = arith.constant 0 : i32
    %c0_i32_1 = arith.constant 0 : i32
    return %c0_i32, %c0_i32_0 : i32, i32
  }
  func.func @transform_3(%arg0: i32) -> (i32, i32) {
    %c0_i32 = arith.constant 0 : i32
    %c0_i32_0 = arith.constant 0 : i32
    %c0_i32_1 = arith.constant 0 : i32
    return %c0_i32, %c0_i32_0 : i32, i32
  }
  func.func @transform_4(%arg0: i32) -> (i32, i32) {
    %c0_i32 = arith.constant 0 : i32
    %c0_i32_0 = arith.constant 0 : i32
    %c0_i32_1 = arith.constant 0 : i32
    return %c0_i32, %c0_i32_0 : i32, i32
  }
  func.func @transform_5(%arg0: i32) -> (i32, i32) {
    %c0_i32 = arith.constant 0 : i32
    %c0_i32_0 = arith.constant 0 : i32
    %c0_i32_1 = arith.constant 0 : i32
    return %c0_i32, %c0_i32_0 : i32, i32
  }
  func.func @transform_6(%arg0: i32) -> (i32, i32) {
    %c0_i32 = arith.constant 0 : i32
    %c0_i32_0 = arith.constant 0 : i32
    %c0_i32_1 = arith.constant 0 : i32
    return %c0_i32, %c0_i32_0 : i32, i32
  }
  func.func @transform_7(%arg0: i32) -> (i32, i32) {
    %c0_i32 = arith.constant 0 : i32
    %c0_i32_0 = arith.constant 0 : i32
    %c0_i32_1 = arith.constant 0 : i32
    return %c0_i32, %c0_i32_0 : i32, i32
  }
  func.func @transform_8(%arg0: i32) -> (i32, i32) {
    %c0_i32 = arith.constant 0 : i32
    %c0_i32_0 = arith.constant 0 : i32
    %c0_i32_1 = arith.constant 0 : i32
    return %c0_i32, %c0_i32_0 : i32, i32
  }
  func.func @transform_9(%arg0: i32) -> (i32, i32) {
    %c0_i32 = arith.constant 0 : i32
    %c0_i32_0 = arith.constant 0 : i32
    %c0_i32_1 = arith.constant 0 : i32
    return %c0_i32, %c0_i32_0 : i32, i32
  }
  func.func @transform_10(%arg0: i32) -> (i32, i32) {
    %c0_i32 = arith.constant 0 : i32
    %c0_i32_0 = arith.constant 0 : i32
    %c0_i32_1 = arith.constant 0 : i32
    return %c0_i32, %c0_i32_0 : i32, i32
  }
  func.func @transform_11(%arg0: i32) -> (i32, i32) {
    %c0_i32 = arith.constant 0 : i32
    %c0_i32_0 = arith.constant 0 : i32
    %c0_i32_1 = arith.constant 0 : i32
    return %c0_i32, %c0_i32_0 : i32, i32
  }
  func.func @transform_12(%arg0: i32) -> (i32, i32) {
    %c0_i32 = arith.constant 0 : i32
    %c0_i32_0 = arith.constant 0 : i32
    %c0_i32_1 = arith.constant 0 : i32
    return %c0_i32, %c0_i32_0 : i32, i32
  }
  func.func @transform_13(%arg0: i32) -> (i32, i32) {
    %c0_i32 = arith.constant 0 : i32
    %c0_i32_0 = arith.constant 0 : i32
    %c0_i32_1 = arith.constant 0 : i32
    return %c0_i32, %c0_i32_0 : i32, i32
  }
  func.func @transform_14(%arg0: i32) -> (i32, i32) {
    %c0_i32 = arith.constant 0 : i32
    %c0_i32_0 = arith.constant 0 : i32
    %c0_i32_1 = arith.constant 0 : i32
    return %c0_i32, %c0_i32_0 : i32, i32
  }
  func.func @transform_15(%arg0: i32) -> (i32, i32) {
    %c0_i32 = arith.constant 0 : i32
    %c0_i32_0 = arith.constant 0 : i32
    %c0_i32_1 = arith.constant 0 : i32
    return %c0_i32, %c0_i32_0 : i32, i32
  }
  func.func @transform_16(%arg0: i32) -> (i32, i32) {
    %c0_i32 = arith.constant 0 : i32
    %c0_i32_0 = arith.constant 0 : i32
    %c0_i32_1 = arith.constant 0 : i32
    return %c0_i32, %c0_i32_0 : i32, i32
  }
  func.func @transform_17(%arg0: i32) -> (i32, i32) {
    %c0_i32 = arith.constant 0 : i32
    %c0_i32_0 = arith.constant 0 : i32
    %c0_i32_1 = arith.constant 0 : i32
    return %c0_i32, %c0_i32_0 : i32, i32
  }
  func.func @transform_18(%arg0: i32) -> (i32, i32, i32) {
    %c0_i32 = arith.constant 0 : i32
    %c0_i32_0 = arith.constant 0 : i32
    %c0_i32_1 = arith.constant 0 : i32
    %c0_i32_2 = arith.constant 0 : i32
    return %c0_i32, %c0_i32_0, %c0_i32_1 : i32, i32, i32
  }
  func.func @transform_19(%arg0: i32) -> (i32, i32) {
    %c0_i32 = arith.constant 0 : i32
    %c0_i32_0 = arith.constant 0 : i32
    %c0_i32_1 = arith.constant 0 : i32
    return %c0_i32, %c0_i32_0 : i32, i32
  }
  func.func @transform_20(%arg0: i32) -> (i32, i32, i32) {
    %c0_i32 = arith.constant 0 : i32
    %c0_i32_0 = arith.constant 0 : i32
    %c0_i32_1 = arith.constant 0 : i32
    return %arg0, %c0_i32, %c0_i32_0 : i32, i32, i32
  }
}

</mosaic_0001>

<llo_original>
// kernel: tpu_custom_call.1
$region0: #{tpu_custom_call.1}
  #allocation0 [shape = 'u32[]', space=smem, size = 0x4, offset = 0x4, fixed_abs, tag = 'smem constant byte address 0x4 - core index']
  #allocation1 [shape = 'u32[72,128]{1,0:T(1,128)}', space=vmem, size = 0x9000, scoped, tag = 'internal scratch']
  #allocation2 [shape = 'f32[8,512]{1,0:T(8,128)}', space=vmem, size = 0x4000, scoped, tag = 'scratch operand']
  #allocation3 [shape = 'f32[72,256]{1,0:T(8,128)}', space=vmem, size = 0x12000, scoped, tag = 'scratch operand']
  #allocation4 [shape = 'f32[8,320]{1,0:T(8,128)}', space=vmem, size = 0x3000, scoped, tag = 'scratch operand']
  #allocation5 [shape = 'f32[72,64]{1,0:T(8,128)}', space=vmem, size = 0x9000, scoped, tag = 'scratch operand']
  #allocation6 [shape = 'f32[16,272]{1,0:T(8,128)}', space=vmem, size = 0x6000, scoped, tag = 'scratch operand']
  #allocation7 [shape = 'f32[144,16]{1,0:T(8,128)}', space=vmem, size = 0x12000, scoped, tag = 'scratch operand']
  #allocation8 [shape = 'f32[1,1]{1,0:T(1,128)S(1)}', space=vmem, size = 0x200, scoped, tag = 'scoped memory for tpu_custom_call.1']
  %s0 = inlined_call_operand.vmem [shape: f32[2,8,256], index: 0, kind: input, shape index: {}]
  %s1 = inlined_call_operand.vmem [shape: f32[8,72], index: 1, kind: input, shape index: {}]
  %s2 = inlined_call_operand.vmem [shape: f32[8,1], index: 2, kind: input, shape index: {}]
  %s3 = inlined_call_operand.vmem [shape: f32[8,72], index: 3, kind: input, shape index: {}]
  %s4 = inlined_call_operand.vmem [shape: f32[8,1], index: 4, kind: input, shape index: {}]
  %s5 = inlined_call_operand.vmem [shape: f32[8,72], index: 5, kind: input, shape index: {}]
  %s6 = inlined_call_operand.vmem [shape: f32[8,1], index: 6, kind: input, shape index: {}]
  %s7 = inlined_call_operand.vmem [shape: f32[16,72], index: 7, kind: input, shape index: {}]
  %s8 = inlined_call_operand.vmem [shape: f32[16,1], index: 8, kind: input, shape index: {}]
  %s9 = inlined_call_operand.vmem [shape: f32[16,144], index: 9, kind: input, shape index: {}]
  %s10 = inlined_call_operand.vmem [shape: f32[16,1], index: 10, kind: input, shape index: {}]
  %s11 = inlined_call_operand.vmem [shape: f32[16,144], index: 11, kind: input, shape index: {}]
  %s12 = inlined_call_operand.vmem [shape: f32[16,1], index: 12, kind: input, shape index: {}]
  %s13 = inlined_call_operand.vmem [shape: f32[9,256], index: 13, kind: input, shape index: {}]
  %s14 = inlined_call_operand.vmem [shape: f32[9,64], index: 14, kind: input, shape index: {}]
  %s15 = inlined_call_operand.vmem [shape: f32[9,16], index: 15, kind: input, shape index: {}]
  %s16 = inlined_call_operand.vmem [shape: f32[256,64], index: 16, kind: input, shape index: {}]
  %s17 = inlined_call_operand.vmem [shape: f32[64,16], index: 17, kind: input, shape index: {}]
  %s18 = inlined_call_operand.vmem [shape: f32[1,16,16], index: 18, kind: input, shape index: {}]
  %s19 = inlined_call_operand.<no memory space> [shape: f32[1,1], index: 19, kind: input, shape index: {}]
  %s20 = inlined_call_operand.vmem [shape: f32[2,1,1], index: 20, kind: output, shape index: {}]
  %s21 = sld [smem:[#allocation0]]
  $region113: #{tpu_custom_call.1} parent=0
    _
  %s23 = ssub.s32 1, %s21
  %s24 = scalar_select 0, %s23, %s21
  %v25 = vstv %s19
  %26 = vst [vmem:[#allocation8] sm:$0x1] %v25
  loop: start=0, step=1, limit=4
  $region2: #{tpu_custom_call.1} parent=0 // loop_pre_header
    _
  $region3: #{tpu_custom_call.1} parent=0 // loop_header
    %s28 = sphi 0, %s32
    %p29 = scmp.ge.s32.totalorder %s28, 4
    %s38 = sphi 0, %s40
    %s41 = sphi 0, %s38
    %s42 = sphi 0, %s41
    %s58 = sphi 0, %s42
    %s62 = sphi 0, %s62
    %s64 = sphi 0, %s62
    %s65 = sphi 0, %s64
    %s79 = sphi 0, %s65
    %s83 = sphi 0, %s83
    %s85 = sphi 0, %s83
    %s86 = sphi 0, %s85
    %s100 = sphi 0, %s86
    %s104 = sphi 0, %s104
    %s106 = sphi 0, %s104
    %s107 = sphi 0, %s106
    %s121 = sphi 0, %s107
    %s125 = sphi 0, %s125
    %s127 = sphi 0, %s125
    %s128 = sphi 0, %s127
    %s142 = sphi 0, %s128
    %s146 = sphi 0, %s146
    %s148 = sphi 0, %s146
    %s149 = sphi 0, %s148
    %s163 = sphi 0, %s149
    %s167 = sphi 0, %s167
    %s169 = sphi 0, %s167
    %s170 = sphi 0, %s169
    %s184 = sphi 0, %s170
    %s188 = sphi 0, %s188
    %s190 = sphi 0, %s188
    %s191 = sphi 0, %s190
    %s205 = sphi 0, %s191
    %s209 = sphi 0, %s209
    %s211 = sphi 0, %s209
    %s212 = sphi 0, %s211
    %s226 = sphi 0, %s212
    %s230 = sphi 0, %s230
    %s232 = sphi 0, %s230
    %s233 = sphi 0, %s232
    %s247 = sphi 0, %s233
    %s251 = sphi 0, %s251
    %s253 = sphi 0, %s251
    %s254 = sphi 0, %s253
    %s268 = sphi 0, %s254
    %s272 = sphi 0, %s272
    %s274 = sphi 0, %s272
    %s275 = sphi 0, %s274
    %s289 = sphi 0, %s275
    %s293 = sphi 0, %s293
    %s295 = sphi 0, %s293
    %s296 = sphi 0, %s295
    %s310 = sphi 0, %s296
    %s314 = sphi 0, %s314
    %s316 = sphi 0, %s314
    %s317 = sphi 0, %s316
    %s331 = sphi 0, %s317
    %s335 = sphi 0, %s335
    %s337 = sphi 0, %s335
    %s338 = sphi 0, %s337
    %s352 = sphi 0, %s338
    %s356 = sphi 0, %s356
    %s358 = sphi 0, %s356
    %s359 = sphi 0, %s358
    %s373 = sphi 0, %s359
    %s377 = sphi 0, %s377
    %s379 = sphi 0, %s377
    %s380 = sphi 0, %s379
    %s394 = sphi 0, %s380
    %s398 = sphi 0, %s398
    %s400 = sphi 0, %s398
    %s401 = sphi 0, %s400
    %s415 = sphi 0, %s401
    %s419 = sphi 0, %s419
    %s421 = sphi 0, %s419
    %s422 = sphi 0, %s421
    %s436 = sphi 0, %s422
    %s440 = sphi 0, %s440
    %s442 = sphi 0, %s440
    %s443 = sphi 0, %s442
    %s457 = sphi 0, %s443
    %s463 = sphi 0, %s465
    %s466 = sphi 0, %s463
    %s467 = sphi 0, %s466
    %s483 = sphi 0, %s467
  $region4: #{tpu_custom_call.1} parent=0 // loop_header_branch
    %31 = sbr.rel (%p29) target = $region8
  $region5: #{tpu_custom_call.1} parent=0 // loop_body
    %s33 = ssub.s32 %s28, 1
    %s34 = ssub.s32 %s28, 2
    %s35 = sadd.s32 %s28, 1
    %s36 = ssub.s32 %s28, %s35
    %p37 = scmp.eq.s32.totalorder %s36, 0
    %s39 = sadd.s32 %s38, 1
    %s40 = scalar_select %p37, %s38, %s39
    %p43 = pneg %p37
    %p44 = scmp.eq.s32.totalorder %s28, 1
    %p45 = por %p43, %p44
    %p46 = scmp.ne.s32.totalorder %s38, %s41
    %p47 = scmp.eq.s32.totalorder %s28, 0
    %p48 = por %p46, %p47
    %p49 = scmp.ne.s32.totalorder %s38, %s41
    %p50 = scmp.eq.s32.totalorder %s33, 1
    %p51 = por %p49, %p50
    %p52 = scmp.ne.s32.totalorder %s41, %s42
    %p53 = scmp.eq.s32.totalorder %s33, 0
    %p54 = por %p52, %p53
    %p55 = scmp.ne.s32.totalorder %s41, %s42
    %p56 = scmp.eq.s32.totalorder %s34, 1
    %p57 = por %p55, %p56
    %p59 = scmp.ne.s32.totalorder %s42, %s58
    %p60 = scmp.eq.s32.totalorder %s34, 0
    %p61 = por %p59, %p60
    %s63 = sadd.s32 %s62, 1
    %p66 = scmp.eq.s32.totalorder %s28, 1
    %p67 = scmp.ne.s32.totalorder %s62, %s64
    %p68 = scmp.eq.s32.totalorder %s28, 0
    %p69 = por %p67, %p68
    %p70 = scmp.ne.s32.totalorder %s62, %s64
    %p71 = scmp.eq.s32.totalorder %s33, 1
    %p72 = por %p70, %p71
    %p73 = scmp.ne.s32.totalorder %s64, %s65
    %p74 = scmp.eq.s32.totalorder %s33, 0
    %p75 = por %p73, %p74
    %p76 = scmp.ne.s32.totalorder %s64, %s65
    %p77 = scmp.eq.s32.totalorder %s34, 1
    %p78 = por %p76, %p77
    %p80 = scmp.ne.s32.totalorder %s65, %s79
    %p81 = scmp.eq.s32.totalorder %s34, 0
    %p82 = por %p80, %p81
    %s84 = sadd.s32 %s83, 1
    %p87 = scmp.eq.s32.totalorder %s28, 1
    %p88 = scmp.ne.s32.totalorder %s83, %s85
    %p89 = scmp.eq.s32.totalorder %s28, 0
    %p90 = por %p88, %p89
    %p91 = scmp.ne.s32.totalorder %s83, %s85
    %p92 = scmp.eq.s32.totalorder %s33, 1
    %p93 = por %p91, %p92
    %p94 = scmp.ne.s32.totalorder %s85, %s86
    %p95 = scmp.eq.s32.totalorder %s33, 0
    %p96 = por %p94, %p95
    %p97 = scmp.ne.s32.totalorder %s85, %s86
    %p98 = scmp.eq.s32.totalorder %s34, 1
    %p99 = por %p97, %p98
    %p101 = scmp.ne.s32.totalorder %s86, %s100
    %p102 = scmp.eq.s32.totalorder %s34, 0
    %p103 = por %p101, %p102
    %s105 = sadd.s32 %s104, 1
    %p108 = scmp.eq.s32.totalorder %s28, 1
    %p109 = scmp.ne.s32.totalorder %s104, %s106
    %p110 = scmp.eq.s32.totalorder %s28, 0
    %p111 = por %p109, %p110
    %p112 = scmp.ne.s32.totalorder %s104, %s106
    %p113 = scmp.eq.s32.totalorder %s33, 1
    %p114 = por %p112, %p113
    %p115 = scmp.ne.s32.totalorder %s106, %s107
    %p116 = scmp.eq.s32.totalorder %s33, 0
    %p117 = por %p115, %p116
    %p118 = scmp.ne.s32.totalorder %s106, %s107
    %p119 = scmp.eq.s32.totalorder %s34, 1
    %p120 = por %p118, %p119
    %p122 = scmp.ne.s32.totalorder %s107, %s121
    %p123 = scmp.eq.s32.totalorder %s34, 0
    %p124 = por %p122, %p123
    %s126 = sadd.s32 %s125, 1
    %p129 = scmp.eq.s32.totalorder %s28, 1
    %p130 = scmp.ne.s32.totalorder %s125, %s127
    %p131 = scmp.eq.s32.totalorder %s28, 0
    %p132 = por %p130, %p131
    %p133 = scmp.ne.s32.totalorder %s125, %s127
    %p134 = scmp.eq.s32.totalorder %s33, 1
    %p135 = por %p133, %p134
    %p136 = scmp.ne.s32.totalorder %s127, %s128
    %p137 = scmp.eq.s32.totalorder %s33, 0
    %p138 = por %p136, %p137
    %p139 = scmp.ne.s32.totalorder %s127, %s128
    %p140 = scmp.eq.s32.totalorder %s34, 1
    %p141 = por %p139, %p140
    %p143 = scmp.ne.s32.totalorder %s128, %s142
    %p144 = scmp.eq.s32.totalorder %s34, 0
    %p145 = por %p143, %p144
    %s147 = sadd.s32 %s146, 1
    %p150 = scmp.eq.s32.totalorder %s28, 1
    %p151 = scmp.ne.s32.totalorder %s146, %s148
    %p152 = scmp.eq.s32.totalorder %s28, 0
    %p153 = por %p151, %p152
    %p154 = scmp.ne.s32.totalorder %s146, %s148
    %p155 = scmp.eq.s32.totalorder %s33, 1
    %p156 = por %p154, %p155
    %p157 = scmp.ne.s32.totalorder %s148, %s149
    %p158 = scmp.eq.s32.totalorder %s33, 0
    %p159 = por %p157, %p158
    %p160 = scmp.ne.s32.totalorder %s148, %s149
    %p161 = scmp.eq.s32.totalorder %s34, 1
    %p162 = por %p160, %p161
    %p164 = scmp.ne.s32.totalorder %s149, %s163
    %p165 = scmp.eq.s32.totalorder %s34, 0
    %p166 = por %p164, %p165
    %s168 = sadd.s32 %s167, 1
    %p171 = scmp.eq.s32.totalorder %s28, 1
    %p172 = scmp.ne.s32.totalorder %s167, %s169
    %p173 = scmp.eq.s32.totalorder %s28, 0
    %p174 = por %p172, %p173
    %p175 = scmp.ne.s32.totalorder %s167, %s169
    %p176 = scmp.eq.s32.totalorder %s33, 1
    %p177 = por %p175, %p176
    %p178 = scmp.ne.s32.totalorder %s169, %s170
    %p179 = scmp.eq.s32.totalorder %s33, 0
    %p180 = por %p178, %p179
    %p181 = scmp.ne.s32.totalorder %s169, %s170
    %p182 = scmp.eq.s32.totalorder %s34, 1
    %p183 = por %p181, %p182
    %p185 = scmp.ne.s32.totalorder %s170, %s184
    %p186 = scmp.eq.s32.totalorder %s34, 0
    %p187 = por %p185, %p186
    %s189 = sadd.s32 %s188, 1
    %p192 = scmp.eq.s32.totalorder %s28, 1
    %p193 = scmp.ne.s32.totalorder %s188, %s190
    %p194 = scmp.eq.s32.totalorder %s28, 0
    %p195 = por %p193, %p194
    %p196 = scmp.ne.s32.totalorder %s188, %s190
    %p197 = scmp.eq.s32.totalorder %s33, 1
    %p198 = por %p196, %p197
    %p199 = scmp.ne.s32.totalorder %s190, %s191
    %p200 = scmp.eq.s32.totalorder %s33, 0
    %p201 = por %p199, %p200
    %p202 = scmp.ne.s32.totalorder %s190, %s191
    %p203 = scmp.eq.s32.totalorder %s34, 1
    %p204 = por %p202, %p203
    %p206 = scmp.ne.s32.totalorder %s191, %s205
    %p207 = scmp.eq.s32.totalorder %s34, 0
    %p208 = por %p206, %p207
    %s210 = sadd.s32 %s209, 1
    %p213 = scmp.eq.s32.totalorder %s28, 1
    %p214 = scmp.ne.s32.totalorder %s209, %s211
    %p215 = scmp.eq.s32.totalorder %s28, 0
    %p216 = por %p214, %p215
    %p217 = scmp.ne.s32.totalorder %s209, %s211
    %p218 = scmp.eq.s32.totalorder %s33, 1
    %p219 = por %p217, %p218
    %p220 = scmp.ne.s32.totalorder %s211, %s212
    %p221 = scmp.eq.s32.totalorder %s33, 0
    %p222 = por %p220, %p221
    %p223 = scmp.ne.s32.totalorder %s211, %s212
    %p224 = scmp.eq.s32.totalorder %s34, 1
    %p225 = por %p223, %p224
    %p227 = scmp.ne.s32.totalorder %s212, %s226
    %p228 = scmp.eq.s32.totalorder %s34, 0
    %p229 = por %p227, %p228
    %s231 = sadd.s32 %s230, 1
    %p234 = scmp.eq.s32.totalorder %s28, 1
    %p235 = scmp.ne.s32.totalorder %s230, %s232
    %p236 = scmp.eq.s32.totalorder %s28, 0
    %p237 = por %p235, %p236
    %p238 = scmp.ne.s32.totalorder %s230, %s232
    %p239 = scmp.eq.s32.totalorder %s33, 1
    %p240 = por %p238, %p239
    %p241 = scmp.ne.s32.totalorder %s232, %s233
    %p242 = scmp.eq.s32.totalorder %s33, 0
    %p243 = por %p241, %p242
    %p244 = scmp.ne.s32.totalorder %s232, %s233
    %p245 = scmp.eq.s32.totalorder %s34, 1
    %p246 = por %p244, %p245
    %p248 = scmp.ne.s32.totalorder %s233, %s247
    %p249 = scmp.eq.s32.totalorder %s34, 0
    %p250 = por %p248, %p249
    %s252 = sadd.s32 %s251, 1
    %p255 = scmp.eq.s32.totalorder %s28, 1
    %p256 = scmp.ne.s32.totalorder %s251, %s253
    %p257 = scmp.eq.s32.totalorder %s28, 0
    %p258 = por %p256, %p257
    %p259 = scmp.ne.s32.totalorder %s251, %s253
    %p260 = scmp.eq.s32.totalorder %s33, 1
    %p261 = por %p259, %p260
    %p262 = scmp.ne.s32.totalorder %s253, %s254
    %p263 = scmp.eq.s32.totalorder %s33, 0
    %p264 = por %p262, %p263
    %p265 = scmp.ne.s32.totalorder %s253, %s254
    %p266 = scmp.eq.s32.totalorder %s34, 1
    %p267 = por %p265, %p266
    %p269 = scmp.ne.s32.totalorder %s254, %s268
    %p270 = scmp.eq.s32.totalorder %s34, 0
    %p271 = por %p269, %p270
    %s273 = sadd.s32 %s272, 1
    %p276 = scmp.eq.s32.totalorder %s28, 1
    %p277 = scmp.ne.s32.totalorder %s272, %s274
    %p278 = scmp.eq.s32.totalorder %s28, 0
    %p279 = por %p277, %p278
    %p280 = scmp.ne.s32.totalorder %s272, %s274
    %p281 = scmp.eq.s32.totalorder %s33, 1
    %p282 = por %p280, %p281
    %p283 = scmp.ne.s32.totalorder %s274, %s275
    %p284 = scmp.eq.s32.totalorder %s33, 0
    %p285 = por %p283, %p284
    %p286 = scmp.ne.s32.totalorder %s274, %s275
    %p287 = scmp.eq.s32.totalorder %s34, 1
    %p288 = por %p286, %p287
    %p290 = scmp.ne.s32.totalorder %s275, %s289
    %p291 = scmp.eq.s32.totalorder %s34, 0
    %p292 = por %p290, %p291
    %s294 = sadd.s32 %s293, 1
    %p297 = scmp.eq.s32.totalorder %s28, 1
    %p298 = scmp.ne.s32.totalorder %s293, %s295
    %p299 = scmp.eq.s32.totalorder %s28, 0
    %p300 = por %p298, %p299
    %p301 = scmp.ne.s32.totalorder %s293, %s295
    %p302 = scmp.eq.s32.totalorder %s33, 1
    %p303 = por %p301, %p302
    %p304 = scmp.ne.s32.totalorder %s295, %s296
    %p305 = scmp.eq.s32.totalorder %s33, 0
    %p306 = por %p304, %p305
    %p307 = scmp.ne.s32.totalorder %s295, %s296
    %p308 = scmp.eq.s32.totalorder %s34, 1
    %p309 = por %p307, %p308
    %p311 = scmp.ne.s32.totalorder %s296, %s310
    %p312 = scmp.eq.s32.totalorder %s34, 0
    %p313 = por %p311, %p312
    %s315 = sadd.s32 %s314, 1
    %p318 = scmp.eq.s32.totalorder %s28, 1
    %p319 = scmp.ne.s32.totalorder %s314, %s316
    %p320 = scmp.eq.s32.totalorder %s28, 0
    %p321 = por %p319, %p320
    %p322 = scmp.ne.s32.totalorder %s314, %s316
    %p323 = scmp.eq.s32.totalorder %s33, 1
    %p324 = por %p322, %p323
    %p325 = scmp.ne.s32.totalorder %s316, %s317
    %p326 = scmp.eq.s32.totalorder %s33, 0
    %p327 = por %p325, %p326
    %p328 = scmp.ne.s32.totalorder %s316, %s317
    %p329 = scmp.eq.s32.totalorder %s34, 1
    %p330 = por %p328, %p329
    %p332 = scmp.ne.s32.totalorder %s317, %s331
    %p333 = scmp.eq.s32.totalorder %s34, 0
    %p334 = por %p332, %p333
    %s336 = sadd.s32 %s335, 1
    %p339 = scmp.eq.s32.totalorder %s28, 1
    %p340 = scmp.ne.s32.totalorder %s335, %s337
    %p341 = scmp.eq.s32.totalorder %s28, 0
    %p342 = por %p340, %p341
    %p343 = scmp.ne.s32.totalorder %s335, %s337
    %p344 = scmp.eq.s32.totalorder %s33, 1
    %p345 = por %p343, %p344
    %p346 = scmp.ne.s32.totalorder %s337, %s338
    %p347 = scmp.eq.s32.totalorder %s33, 0
    %p348 = por %p346, %p347
    %p349 = scmp.ne.s32.totalorder %s337, %s338
    %p350 = scmp.eq.s32.totalorder %s34, 1
    %p351 = por %p349, %p350
    %p353 = scmp.ne.s32.totalorder %s338, %s352
    %p354 = scmp.eq.s32.totalorder %s34, 0
    %p355 = por %p353, %p354
    %s357 = sadd.s32 %s356, 1
    %p360 = scmp.eq.s32.totalorder %s28, 1
    %p361 = scmp.ne.s32.totalorder %s356, %s358
    %p362 = scmp.eq.s32.totalorder %s28, 0
    %p363 = por %p361, %p362
    %p364 = scmp.ne.s32.totalorder %s356, %s358
    %p365 = scmp.eq.s32.totalorder %s33, 1
    %p366 = por %p364, %p365
    %p367 = scmp.ne.s32.totalorder %s358, %s359
    %p368 = scmp.eq.s32.totalorder %s33, 0
    %p369 = por %p367, %p368
    %p370 = scmp.ne.s32.totalorder %s358, %s359
    %p371 = scmp.eq.s32.totalorder %s34, 1
    %p372 = por %p370, %p371
    %p374 = scmp.ne.s32.totalorder %s359, %s373
    %p375 = scmp.eq.s32.totalorder %s34, 0
    %p376 = por %p374, %p375
    %s378 = sadd.s32 %s377, 1
    %p381 = scmp.eq.s32.totalorder %s28, 1
    %p382 = scmp.ne.s32.totalorder %s377, %s379
    %p383 = scmp.eq.s32.totalorder %s28, 0
    %p384 = por %p382, %p383
    %p385 = scmp.ne.s32.totalorder %s377, %s379
    %p386 = scmp.eq.s32.totalorder %s33, 1
    %p387 = por %p385, %p386
    %p388 = scmp.ne.s32.totalorder %s379, %s380
    %p389 = scmp.eq.s32.totalorder %s33, 0
    %p390 = por %p388, %p389
    %p391 = scmp.ne.s32.totalorder %s379, %s380
    %p392 = scmp.eq.s32.totalorder %s34, 1
    %p393 = por %p391, %p392
    %p395 = scmp.ne.s32.totalorder %s380, %s394
    %p396 = scmp.eq.s32.totalorder %s34, 0
    %p397 = por %p395, %p396
    %s399 = sadd.s32 %s398, 1
    %p402 = scmp.eq.s32.totalorder %s28, 1
    %p403 = scmp.ne.s32.totalorder %s398, %s400
    %p404 = scmp.eq.s32.totalorder %s28, 0
    %p405 = por %p403, %p404
    %p406 = scmp.ne.s32.totalorder %s398, %s400
    %p407 = scmp.eq.s32.totalorder %s33, 1
    %p408 = por %p406, %p407
    %p409 = scmp.ne.s32.totalorder %s400, %s401
    %p410 = scmp.eq.s32.totalorder %s33, 0
    %p411 = por %p409, %p410
    %p412 = scmp.ne.s32.totalorder %s400, %s401
    %p413 = scmp.eq.s32.totalorder %s34, 1
    %p414 = por %p412, %p413
    %p416 = scmp.ne.s32.totalorder %s401, %s415
    %p417 = scmp.eq.s32.totalorder %s34, 0
    %p418 = por %p416, %p417
    %s420 = sadd.s32 %s419, 1
    %p423 = scmp.eq.s32.totalorder %s28, 1
    %p424 = scmp.ne.s32.totalorder %s419, %s421
    %p425 = scmp.eq.s32.totalorder %s28, 0
    %p426 = por %p424, %p425
    %p427 = scmp.ne.s32.totalorder %s419, %s421
    %p428 = scmp.eq.s32.totalorder %s33, 1
    %p429 = por %p427, %p428
    %p430 = scmp.ne.s32.totalorder %s421, %s422
    %p431 = scmp.eq.s32.totalorder %s33, 0
    %p432 = por %p430, %p431
    %p433 = scmp.ne.s32.totalorder %s421, %s422
    %p434 = scmp.eq.s32.totalorder %s34, 1
    %p435 = por %p433, %p434
    %p437 = scmp.ne.s32.totalorder %s422, %s436
    %p438 = scmp.eq.s32.totalorder %s34, 0
    %p439 = por %p437, %p438
    %s441 = sadd.s32 %s440, 1
    %p444 = scmp.eq.s32.totalorder %s28, 1
    %p445 = scmp.ne.s32.totalorder %s440, %s442
    %p446 = scmp.eq.s32.totalorder %s28, 0
    %p447 = por %p445, %p446
    %p448 = scmp.ne.s32.totalorder %s440, %s442
    %p449 = scmp.eq.s32.totalorder %s33, 1
    %p450 = por %p448, %p449
    %p451 = scmp.ne.s32.totalorder %s442, %s443
    %p452 = scmp.eq.s32.totalorder %s33, 0
    %p453 = por %p451, %p452
    %p454 = scmp.ne.s32.totalorder %s442, %s443
    %p455 = scmp.eq.s32.totalorder %s34, 1
    %p456 = por %p454, %p455
    %p458 = scmp.ne.s32.totalorder %s443, %s457
    %p459 = scmp.eq.s32.totalorder %s34, 0
    %p460 = por %p458, %p459
    %s461 = ssub.s32 %s28, %s35
    %p462 = scmp.eq.s32.totalorder %s461, 0
    %s464 = sadd.s32 %s463, 1
    %s465 = scalar_select %p462, %s463, %s464
    %p468 = pneg %p462
    %p469 = scmp.eq.s32.totalorder %s28, 1
    %p470 = por %p468, %p469
    %p471 = scmp.ne.s32.totalorder %s463, %s466
    %p472 = scmp.eq.s32.totalorder %s28, 0
    %p473 = por %p471, %p472
    %p474 = scmp.ne.s32.totalorder %s463, %s466
    %p475 = scmp.eq.s32.totalorder %s33, 1
    %p476 = por %p474, %p475
    %p477 = scmp.ne.s32.totalorder %s466, %s467
    %p478 = scmp.eq.s32.totalorder %s33, 0
    %p479 = por %p477, %p478
    %p480 = scmp.ne.s32.totalorder %s466, %s467
    %p481 = scmp.eq.s32.totalorder %s34, 1
    %p482 = por %p480, %p481
    %p484 = scmp.ne.s32.totalorder %s467, %s483
    %p485 = scmp.eq.s32.totalorder %s34, 0
    %p486 = por %p484, %p485
    %p487 = scmp.le.s32.totalorder 1, %s28
    %p488 = scmp.lt.s32.totalorder %s28, 3
    %p489 = pnand %p487, %p488
    %p490 = pneg %p489
    // Predicated region
    $region9: #{tpu_custom_call.1} parent=5 // pred_check
      _
    $region10: #{tpu_custom_call.1} parent=5 // pred_check_branch
      %492 = sbr.rel (%p489) target = $region12
    $region11: #{tpu_custom_call.1} parent=5 // pred_region
      %s493 = ssub.s32 %s28, 1
      // Predicated region
      $region13: #{tpu_custom_call.1} parent=11 // pred_check
        %p494 = pneg %p75
      $region14: #{tpu_custom_call.1} parent=11 // pred_check_branch
        %496 = sbr.rel (%p494) target = $region16
      $region15: #{tpu_custom_call.1} parent=11 // pred_region
        _
      $region16: #{tpu_custom_call.1} parent=11 // pred_fallthru
        _
      // Predicated region
      $region17: #{tpu_custom_call.1} parent=11 // pred_check
        %p497 = pneg %p96
      $region18: #{tpu_custom_call.1} parent=11 // pred_check_branch
        %499 = sbr.rel (%p497) target = $region20
      $region19: #{tpu_custom_call.1} parent=11 // pred_region
        _
      $region20: #{tpu_custom_call.1} parent=11 // pred_fallthru
        _
      // Predicated region
      $region21: #{tpu_custom_call.1} parent=11 // pred_check
        %p500 = pneg %p117
      $region22: #{tpu_custom_call.1} parent=11 // pred_check_branch
        %502 = sbr.rel (%p500) target = $region24
      $region23: #{tpu_custom_call.1} parent=11 // pred_region
        _
      $region24: #{tpu_custom_call.1} parent=11 // pred_fallthru
        _
      // Predicated region
      $region25: #{tpu_custom_call.1} parent=11 // pred_check
        %p503 = pneg %p138
      $region26: #{tpu_custom_call.1} parent=11 // pred_check_branch
        %505 = sbr.rel (%p503) target = $region28
      $region27: #{tpu_custom_call.1} parent=11 // pred_region
        _
      $region28: #{tpu_custom_call.1} parent=11 // pred_fallthru
        _
      // Predicated region
      $region29: #{tpu_custom_call.1} parent=11 // pred_check
        %p506 = pneg %p159
      $region30: #{tpu_custom_call.1} parent=11 // pred_check_branch
        %508 = sbr.rel (%p506) target = $region32
      $region31: #{tpu_custom_call.1} parent=11 // pred_region
        _
      $region32: #{tpu_custom_call.1} parent=11 // pred_fallthru
        _
      // Predicated region
      $region33: #{tpu_custom_call.1} parent=11 // pred_check
        %p509 = pneg %p180
      $region34: #{tpu_custom_call.1} parent=11 // pred_check_branch
        %511 = sbr.rel (%p509) target = $region36
      $region35: #{tpu_custom_call.1} parent=11 // pred_region
        _
      $region36: #{tpu_custom_call.1} parent=11 // pred_fallthru
        _
      // Predicated region
      $region37: #{tpu_custom_call.1} parent=11 // pred_check
        %p512 = pneg %p201
      $region38: #{tpu_custom_call.1} parent=11 // pred_check_branch
        %514 = sbr.rel (%p512) target = $region40
      $region39: #{tpu_custom_call.1} parent=11 // pred_region
        _
      $region40: #{tpu_custom_call.1} parent=11 // pred_fallthru
        _
      // Predicated region
      $region41: #{tpu_custom_call.1} parent=11 // pred_check
        %p515 = pneg %p222
      $region42: #{tpu_custom_call.1} parent=11 // pred_check_branch
        %517 = sbr.rel (%p515) target = $region44
      $region43: #{tpu_custom_call.1} parent=11 // pred_region
        _
      $region44: #{tpu_custom_call.1} parent=11 // pred_fallthru
        _
      // Predicated region
      $region45: #{tpu_custom_call.1} parent=11 // pred_check
        %p518 = pneg %p243
      $region46: #{tpu_custom_call.1} parent=11 // pred_check_branch
        %520 = sbr.rel (%p518) target = $region48
      $region47: #{tpu_custom_call.1} parent=11 // pred_region
        _
      $region48: #{tpu_custom_call.1} parent=11 // pred_fallthru
        _
      // Predicated region
      $region49: #{tpu_custom_call.1} parent=11 // pred_check
        %p521 = pneg %p264
      $region50: #{tpu_custom_call.1} parent=11 // pred_check_branch
        %523 = sbr.rel (%p521) target = $region52
      $region51: #{tpu_custom_call.1} parent=11 // pred_region
        _
      $region52: #{tpu_custom_call.1} parent=11 // pred_fallthru
        _
      // Predicated region
      $region53: #{tpu_custom_call.1} parent=11 // pred_check
        %p524 = pneg %p285
      $region54: #{tpu_custom_call.1} parent=11 // pred_check_branch
        %526 = sbr.rel (%p524) target = $region56
      $region55: #{tpu_custom_call.1} parent=11 // pred_region
        _
      $region56: #{tpu_custom_call.1} parent=11 // pred_fallthru
        _
      // Predicated region
      $region57: #{tpu_custom_call.1} parent=11 // pred_check
        %p527 = pneg %p306
      $region58: #{tpu_custom_call.1} parent=11 // pred_check_branch
        %529 = sbr.rel (%p527) target = $region60
      $region59: #{tpu_custom_call.1} parent=11 // pred_region
        _
      $region60: #{tpu_custom_call.1} parent=11 // pred_fallthru
        _
      // Predicated region
      $region61: #{tpu_custom_call.1} parent=11 // pred_check
        %p530 = pneg %p327
      $region62: #{tpu_custom_call.1} parent=11 // pred_check_branch
        %532 = sbr.rel (%p530) target = $region64
      $region63: #{tpu_custom_call.1} parent=11 // pred_region
        _
      $region64: #{tpu_custom_call.1} parent=11 // pred_fallthru
        _
      // Predicated region
      $region65: #{tpu_custom_call.1} parent=11 // pred_check
        %p533 = pneg %p348
      $region66: #{tpu_custom_call.1} parent=11 // pred_check_branch
        %535 = sbr.rel (%p533) target = $region68
      $region67: #{tpu_custom_call.1} parent=11 // pred_region
        _
      $region68: #{tpu_custom_call.1} parent=11 // pred_fallthru
        _
      // Predicated region
      $region69: #{tpu_custom_call.1} parent=11 // pred_check
        %p536 = pneg %p369
      $region70: #{tpu_custom_call.1} parent=11 // pred_check_branch
        %538 = sbr.rel (%p536) target = $region72
      $region71: #{tpu_custom_call.1} parent=11 // pred_region
        _
      $region72: #{tpu_custom_call.1} parent=11 // pred_fallthru
        _
      // Predicated region
      $region73: #{tpu_custom_call.1} parent=11 // pred_check
        %p539 = pneg %p390
      $region74: #{tpu_custom_call.1} parent=11 // pred_check_branch
        %541 = sbr.rel (%p539) target = $region76
      $region75: #{tpu_custom_call.1} parent=11 // pred_region
        _
      $region76: #{tpu_custom_call.1} parent=11 // pred_fallthru
        _
      // Predicated region
      $region77: #{tpu_custom_call.1} parent=11 // pred_check
        %p542 = pneg %p411
      $region78: #{tpu_custom_call.1} parent=11 // pred_check_branch
        %544 = sbr.rel (%p542) target = $region80
      $region79: #{tpu_custom_call.1} parent=11 // pred_region
        _
      $region80: #{tpu_custom_call.1} parent=11 // pred_fallthru
        _
      // Predicated region
      $region81: #{tpu_custom_call.1} parent=11 // pred_check
        %p545 = pneg %p432
      $region82: #{tpu_custom_call.1} parent=11 // pred_check_branch
        %547 = sbr.rel (%p545) target = $region84
      $region83: #{tpu_custom_call.1} parent=11 // pred_region
        _
      $region84: #{tpu_custom_call.1} parent=11 // pred_fallthru
        _
      // Predicated region
      $region85: #{tpu_custom_call.1} parent=11 // pred_check
        %p548 = pneg %p453
      $region86: #{tpu_custom_call.1} parent=11 // pred_check_branch
        %550 = sbr.rel (%p548) target = $region88
      $region87: #{tpu_custom_call.1} parent=11 // pred_region
        _
      $region88: #{tpu_custom_call.1} parent=11 // pred_fallthru
        _
    $region12: #{tpu_custom_call.1} parent=5 // pred_fallthru
      _
    %p551 = scmp.lt.s32.totalorder %s28, 2
    // Predicated region
    $region89: #{tpu_custom_call.1} parent=5 // pred_check
      %p552 = pneg %p551
    $region90: #{tpu_custom_call.1} parent=5 // pred_check_branch
      %554 = sbr.rel (%p552) target = $region92
    $region91: #{tpu_custom_call.1} parent=5 // pred_region
      // Predicated region
      $region93: #{tpu_custom_call.1} parent=91 // pred_check
        %p555 = pneg %p48
      $region94: #{tpu_custom_call.1} parent=91 // pred_check_branch
        %557 = sbr.rel (%p555) target = $region96
      $region95: #{tpu_custom_call.1} parent=91 // pred_region
        %p558 = scmp.lt.s32.totalorder %s28, 1
        %s559 = scalar_select %p558, %s28, 1
        %s560 = smul.addr %s559, 2
        %s561 = smul.addr %s560, 8
        %s562 = scalar_lea.vmem %s0, %s561
      $region96: #{tpu_custom_call.1} parent=91 // pred_fallthru
        _
    $region92: #{tpu_custom_call.1} parent=5 // pred_fallthru
      _
    %p563 = scmp.le.s32.totalorder 1, %s28
    %p564 = scmp.lt.s32.totalorder %s28, 3
    %p565 = pnand %p563, %p564
    %p566 = pneg %p565
    // Predicated region
    $region97: #{tpu_custom_call.1} parent=5 // pred_check
      _
    $region98: #{tpu_custom_call.1} parent=5 // pred_check_branch
      %568 = sbr.rel (%p565) target = $region100
    $region99: #{tpu_custom_call.1} parent=5 // pred_region
      %s569 = ssub.s32 %s28, 1
      %p570 = scmp.lt.s32.totalorder %s33, 1
      %s571 = scalar_select %p570, %s33, 1
      %s572 = smul.addr %s571, 2
      %s573 = smul.addr %s572, 8
      %s574 = scalar_lea.vmem %s0, %s573
      %p575 = pneg %p54
      %p576 = pneg %p51
      %p577 = pneg %p75
      %p578 = pneg %p72
      %p579 = pneg %p96
      %p580 = pneg %p93
      %p581 = pneg %p117
      %p582 = pneg %p114
      %p583 = pneg %p138
      %p584 = pneg %p135
      %p585 = pneg %p159
      %p586 = pneg %p156
      %p587 = pneg %p180
      %p588 = pneg %p177
      %p589 = pneg %p201
      %p590 = pneg %p198
      %p591 = pneg %p222
      %p592 = pneg %p219
      %p593 = pneg %p243
      %p594 = pneg %p240
      %p595 = pneg %p264
      %p596 = pneg %p261
      %p597 = pneg %p285
      %p598 = pneg %p282
      %p599 = pneg %p306
      %p600 = pneg %p303
      %p601 = pneg %p327
      %p602 = pneg %p324
      %p603 = pneg %p348
      %p604 = pneg %p345
      %p605 = pneg %p369
      %p606 = pneg %p366
      %p607 = pneg %p390
      %p608 = pneg %p387
      %p609 = pneg %p411
      %p610 = pneg %p408
      %p611 = pneg %p432
      %p612 = pneg %p429
      %p613 = pneg %p453
      %p614 = pneg %p450
      %p615 = pneg %p479
      %p616 = pneg %p476
      %p617 = scmp.lt.s32.totalorder %s33, 1
      %s618 = scalar_select %p617, %s33, 1
      %s619 = scalar_lea.vmem %s20, %s618
      %p620 = scmp.lt.s32.totalorder %s33, 1
      %s621 = scalar_select %p620, %s33, 1
      %s622 = smul.addr %s621, 2
      %s623 = smul.addr %s622, 8
      %s624 = scalar_lea.vmem %s0, %s623
      %p625 = scmp.lt.s32.totalorder %s33, 1
      %s626 = scalar_select %p625, %s33, 1
      %s627 = scalar_lea.vmem %s20, %s626
      %628 = vst [vmem:[#allocation2] sm:$0xff] 0.0
      %629 = vst [vmem:[#allocation2 + $0x8] sm:$0xff] 0.0
      %630 = vst [vmem:[#allocation2 + $0x10] sm:$0xff] 0.0
      %631 = vst [vmem:[#allocation2 + $0x18] sm:$0xff] 0.0
      %632 = vst [vmem:[#allocation4] sm:$0xff] 0.0
      %633 = vst [vmem:[#allocation4 + $0x8] sm:$0xff] 0.0
      %vm634 = vcmask 523264
      %635 = vst.msk [vmem:[#allocation4 + $0x10] sm:$0xff] %vm634, 0.0
      %636 = vst [vmem:[#allocation6] sm:$0xff] 0.0
      %637 = vst [vmem:[#allocation6 + $0x8] sm:$0xff] 0.0
      %vm638 = vcmask 130048
      %639 = vst.msk [vmem:[#allocation6 + $0x10] sm:$0xff] %vm638, 0.0
      %640 = vst [vmem:[#allocation6 + $0x18] sm:$0xff] 0.0
      %641 = vst [vmem:[#allocation6 + $0x20] sm:$0xff] 0.0
      %642 = vst.msk [vmem:[#allocation6 + $0x28] sm:$0xff] %vm638, 0.0
      %v643 = vld [vmem:[%s624] sm:$0xff]
      %v644 = vld [vmem:[%s624 + $0x8] sm:$0xff]
      %645 = vst [vmem:[#allocation2 + $0x8] sm:$0xff] %v643
      %646 = vst [vmem:[#allocation2 + $0x10] sm:$0xff] %v644
      %v647 = vld [vmem:[#allocation2] sm:$0xff]
      %v648 = vld [vmem:[#allocation2 + $0x8] sm:$0xff]
      %v649 = vld [vmem:[#allocation2 + $0x10] sm:$0xff]
      %v650 = vld [vmem:[%s13] ss:$8 sm:$0x3]
      %v652 = vperm.slane %v650, 0
      %v653 = vperm.slane %v650, 1
      %654 = vrot.lane.b32.xlu0 %v652, 111
      %v655 = vpop.permute.xlu0 %654
      %656 = vrot.lane.b32.xlu0 %v653, 111
      %v657 = vpop.permute.xlu0 %656
      %vm658 = vcmask 908288
      %v659 = vsel %vm658, %v655, %v657
      %v663 = vmul.f32 %v647, %v655
      %v664 = vmul.f32 %v648, %v659
      %v665 = vmul.f32 %v649, %v657
      %669 = vrot.lane.b32.xlu0 %v663, 17
      %v670 = vpop.permute.xlu0 %669
      %671 = vrot.lane.b32.xlu0 %v664, 17
      %v672 = vpop.permute.xlu0 %671
      %673 = vrot.lane.b32.xlu0 %v665, 17
      %v674 = vpop.permute.xlu0 %673
      %vm675 = vcmask 138240
      %v676 = vsel %vm675, %v670, %v672
      %v677 = vsel %vm675, %v672, %v674
      %680 = vst [vmem:[#allocation3] sm:$0xff] %v676
      %681 = vst [vmem:[#allocation3 + $0x8] sm:$0xff] %v677
      %v682 = vld [vmem:[#allocation2] sm:$0xff]
      %v683 = vld [vmem:[#allocation2 + $0x8] sm:$0xff]
      %v684 = vld [vmem:[#allocation2 + $0x10] sm:$0xff]
      %s685 = scalar_lea.vmem %s13, 1
      %v686 = vld [vmem:[%s685] ss:$8 sm:$0x3]
      %v688 = vperm.slane %v686, 0
      %v689 = vperm.slane %v686, 1
      %690 = vrot.lane.b32.xlu0 %v688, 112
      %v691 = vpop.permute.xlu0 %690
      %692 = vrot.lane.b32.xlu0 %v689, 112
      %v693 = vpop.permute.xlu0 %692
      %vm694 = vcmask 916480
      %v695 = vsel %vm694, %v691, %v693
      %v699 = vmul.f32 %v682, %v691
      %v700 = vmul.f32 %v683, %v695
      %v701 = vmul.f32 %v684, %v693
      %705 = vrot.lane.b32.xlu0 %v699, 16
      %v706 = vpop.permute.xlu0 %705
      %707 = vrot.lane.b32.xlu0 %v700, 16
      %v708 = vpop.permute.xlu0 %707
      %709 = vrot.lane.b32.xlu0 %v701, 16
      %v710 = vpop.permute.xlu0 %709
      %v711 = vsel %vm638, %v706, %v708
      %v712 = vsel %vm638, %v708, %v710
      %715 = vst [vmem:[#allocation3 + $0x10] sm:$0xff] %v711
      %716 = vst [vmem:[#allocation3 + $0x18] sm:$0xff] %v712
      %v717 = vld [vmem:[#allocation2] sm:$0xff]
      %v718 = vld [vmem:[#allocation2 + $0x8] sm:$0xff]
      %v719 = vld [vmem:[#allocation2 + $0x10] sm:$0xff]
      %s720 = scalar_lea.vmem %s13, 2
      %v721 = vld [vmem:[%s720] ss:$8 sm:$0x3]
      %v723 = vperm.slane %v721, 0
      %v724 = vperm.slane %v721, 1
      %725 = vrot.lane.b32.xlu0 %v723, 113
      %v726 = vpop.permute.xlu0 %725
      %727 = vrot.lane.b32.xlu0 %v724, 113
      %v728 = vpop.permute.xlu0 %727
      %vm729 = vcmask 924672
      %v730 = vsel %vm729, %v726, %v728
      %v734 = vmul.f32 %v717, %v726
      %v735 = vmul.f32 %v718, %v730
      %v736 = vmul.f32 %v719, %v728
      %740 = vrot.lane.b32.xlu0 %v734, 15
      %v741 = vpop.permute.xlu0 %740
      %742 = vrot.lane.b32.xlu0 %v735, 15
      %v743 = vpop.permute.xlu0 %742
      %744 = vrot.lane.b32.xlu0 %v736, 15
      %v745 = vpop.permute.xlu0 %744
      %vm746 = vcmask 121856
      %v747 = vsel %vm746, %v741, %v743
      %v748 = vsel %vm746, %v743, %v745
      %751 = vst [vmem:[#allocation3 + $0x20] sm:$0xff] %v747
      %752 = vst [vmem:[#allocation3 + $0x28] sm:$0xff] %v748
      %v753 = vld [vmem:[#allocation2] sm:$0xff]
      %v754 = vld [vmem:[#allocation2 + $0x8] sm:$0xff]
      %v755 = vld [vmem:[#allocation2 + $0x10] sm:$0xff]
      %s756 = scalar_lea.vmem %s13, 3
      %v757 = vld [vmem:[%s756] ss:$8 sm:$0x3]
      %v759 = vperm.slane %v757, 0
      %v760 = vperm.slane %v757, 1
      %761 = vrot.lane.b32.xlu0 %v759, 127
      %v762 = vpop.permute.xlu0 %761
      %763 = vrot.lane.b32.xlu0 %v760, 127
      %v764 = vpop.permute.xlu0 %763
      %vm765 = vcmask 1039360
      %v766 = vsel %vm765, %v762, %v764
      %v770 = vmul.f32 %v753, %v762
      %v771 = vmul.f32 %v754, %v766
      %v772 = vmul.f32 %v755, %v764
      %776 = vrot.lane.b32.xlu0 %v770, 1
      %v777 = vpop.permute.xlu0 %776
      %778 = vrot.lane.b32.xlu0 %v771, 1
      %v779 = vpop.permute.xlu0 %778
      %780 = vrot.lane.b32.xlu0 %v772, 1
      %v781 = vpop.permute.xlu0 %780
      %vm782 = vcmask 7168
      %v783 = vsel %vm782, %v777, %v779
      %v784 = vsel %vm782, %v779, %v781
      %787 = vst [vmem:[#allocation3 + $0x30] sm:$0xff] %v783
      %788 = vst [vmem:[#allocation3 + $0x38] sm:$0xff] %v784
      %v789 = vld [vmem:[#allocation2 + $0x8] sm:$0xff]
      %v790 = vld [vmem:[#allocation2 + $0x10] sm:$0xff]
      %s791 = scalar_lea.vmem %s13, 4
      %v792 = vld [vmem:[%s791] ss:$8 sm:$0x3]
      %v794 = vperm.slane %v792, 0
      %v795 = vperm.slane %v792, 1
      %v798 = vmul.f32 %v789, %v794
      %v799 = vmul.f32 %v790, %v795
      %800 = vst [vmem:[#allocation3 + $0x40] sm:$0xff] %v798
      %801 = vst [vmem:[#allocation3 + $0x48] sm:$0xff] %v799
      %v802 = vld [vmem:[#allocation2 + $0x8] sm:$0xff]
      %v803 = vld [vmem:[#allocation2 + $0x10] sm:$0xff]
      %v804 = vld [vmem:[#allocation2 + $0x18] sm:$0xff]
      %s805 = scalar_lea.vmem %s13, 5
      %v806 = vld [vmem:[%s805] ss:$8 sm:$0x3]
      %v808 = vperm.slane %v806, 0
      %v809 = vperm.slane %v806, 1
      %810 = vrot.lane.b32.xlu0 %v808, 1
      %v811 = vpop.permute.xlu0 %810
      %812 = vrot.lane.b32.xlu0 %v809, 1
      %v813 = vpop.permute.xlu0 %812
      %v814 = vsel %vm782, %v811, %v813
      %v818 = vmul.f32 %v802, %v811
      %v819 = vmul.f32 %v803, %v814
      %v820 = vmul.f32 %v804, %v813
      %824 = vrot.lane.b32.xlu0 %v818, 127
      %v825 = vpop.permute.xlu0 %824
      %826 = vrot.lane.b32.xlu0 %v819, 127
      %v827 = vpop.permute.xlu0 %826
      %828 = vrot.lane.b32.xlu0 %v820, 127
      %v829 = vpop.permute.xlu0 %828
      %v830 = vsel %vm765, %v825, %v827
      %v831 = vsel %vm765, %v827, %v829
      %834 = vst [vmem:[#allocation3 + $0x50] sm:$0xff] %v830
      %835 = vst [vmem:[#allocation3 + $0x58] sm:$0xff] %v831
      %v836 = vld [vmem:[#allocation2 + $0x8] sm:$0xff]
      %v837 = vld [vmem:[#allocation2 + $0x10] sm:$0xff]
      %v838 = vld [vmem:[#allocation2 + $0x18] sm:$0xff]
      %s839 = scalar_lea.vmem %s13, 6
      %v840 = vld [vmem:[%s839] ss:$8 sm:$0x3]
      %v842 = vperm.slane %v840, 0
      %v843 = vperm.slane %v840, 1
      %844 = vrot.lane.b32.xlu0 %v842, 15
      %v845 = vpop.permute.xlu0 %844
      %846 = vrot.lane.b32.xlu0 %v843, 15
      %v847 = vpop.permute.xlu0 %846
      %v848 = vsel %vm746, %v845, %v847
      %v852 = vmul.f32 %v836, %v845
      %v853 = vmul.f32 %v837, %v848
      %v854 = vmul.f32 %v838, %v847
      %858 = vrot.lane.b32.xlu0 %v852, 113
      %v859 = vpop.permute.xlu0 %858
      %860 = vrot.lane.b32.xlu0 %v853, 113
      %v861 = vpop.permute.xlu0 %860
      %862 = vrot.lane.b32.xlu0 %v854, 113
      %v863 = vpop.permute.xlu0 %862
      %v864 = vsel %vm729, %v859, %v861
      %v865 = vsel %vm729, %v861, %v863
      %868 = vst [vmem:[#allocation3 + $0x60] sm:$0xff] %v864
      %869 = vst [vmem:[#allocation3 + $0x68] sm:$0xff] %v865
      %v870 = vld [vmem:[#allocation2 + $0x8] sm:$0xff]
      %v871 = vld [vmem:[#allocation2 + $0x10] sm:$0xff]
      %v872 = vld [vmem:[#allocation2 + $0x18] sm:$0xff]
      %s873 = scalar_lea.vmem %s13, 7
      %v874 = vld [vmem:[%s873] ss:$8 sm:$0x3]
      %v876 = vperm.slane %v874, 0
      %v877 = vperm.slane %v874, 1
      %878 = vrot.lane.b32.xlu0 %v876, 16
      %v879 = vpop.permute.xlu0 %878
      %880 = vrot.lane.b32.xlu0 %v877, 16
      %v881 = vpop.permute.xlu0 %880
      %v882 = vsel %vm638, %v879, %v881
      %v886 = vmul.f32 %v870, %v879
      %v887 = vmul.f32 %v871, %v882
      %v888 = vmul.f32 %v872, %v881
      %892 = vrot.lane.b32.xlu0 %v886, 112
      %v893 = vpop.permute.xlu0 %892
      %894 = vrot.lane.b32.xlu0 %v887, 112
      %v895 = vpop.permute.xlu0 %894
      %896 = vrot.lane.b32.xlu0 %v888, 112
      %v897 = vpop.permute.xlu0 %896
      %v898 = vsel %vm694, %v893, %v895
      %v899 = vsel %vm694, %v895, %v897
      %902 = vst [vmem:[#allocation3 + $0x70] sm:$0xff] %v898
      %903 = vst [vmem:[#allocation3 + $0x78] sm:$0xff] %v899
      %v904 = vld [vmem:[#allocation2 + $0x8] sm:$0xff]
      %v905 = vld [vmem:[#allocation2 + $0x10] sm:$0xff]
      %v906 = vld [vmem:[#allocation2 + $0x18] sm:$0xff]
      %s907 = scalar_lea.vmem %s13, 16
      %v908 = vld [vmem:[%s907] ss:$8 sm:$0x3]
      %v910 = vperm.slane %v908, 0
      %v911 = vperm.slane %v908, 1
      %912 = vrot.lane.b32.xlu0 %v910, 17
      %v913 = vpop.permute.xlu0 %912
      %914 = vrot.lane.b32.xlu0 %v911, 17
      %v915 = vpop.permute.xlu0 %914
      %v916 = vsel %vm675, %v913, %v915
      %v920 = vmul.f32 %v904, %v913
      %v921 = vmul.f32 %v905, %v916
      %v922 = vmul.f32 %v906, %v915
      %926 = vrot.lane.b32.xlu0 %v920, 111
      %v927 = vpop.permute.xlu0 %926
      %928 = vrot.lane.b32.xlu0 %v921, 111
      %v929 = vpop.permute.xlu0 %928
      %930 = vrot.lane.b32.xlu0 %v922, 111
      %v931 = vpop.permute.xlu0 %930
      %v932 = vsel %vm658, %v927, %v929
      %v933 = vsel %vm658, %v929, %v931
      %936 = vst [vmem:[#allocation3 + $0x80] sm:$0xff] %v932
      %937 = vst [vmem:[#allocation3 + $0x88] sm:$0xff] %v933
      %v938 = vld [vmem:[%s1] sm:$0xff]
      %v939 = vld [vmem:[#allocation3] sm:$0xff]
      %v940 = vld [vmem:[#allocation3 + $0x8] sm:$0xff]
      %v941 = vld [vmem:[#allocation3 + $0x10] sm:$0xff]
      %v942 = vld [vmem:[#allocation3 + $0x18] sm:$0xff]
      %v943 = vld [vmem:[#allocation3 + $0x20] sm:$0xff]
      %v944 = vld [vmem:[#allocation3 + $0x28] sm:$0xff]
      %v945 = vld [vmem:[#allocation3 + $0x30] sm:$0xff]
      %v946 = vld [vmem:[#allocation3 + $0x38] sm:$0xff]
      %v947 = vld [vmem:[#allocation3 + $0x40] sm:$0xff]
      %v948 = vld [vmem:[#allocation3 + $0x48] sm:$0xff]
      %v949 = vld [vmem:[#allocation3 + $0x50] sm:$0xff]
      %v950 = vld [vmem:[#allocation3 + $0x58] sm:$0xff]
      %v951 = vld [vmem:[#allocation3 + $0x60] sm:$0xff]
      %v952 = vld [vmem:[#allocation3 + $0x68] sm:$0xff]
      %v953 = vld [vmem:[#allocation3 + $0x70] sm:$0xff]
      %v954 = vld [vmem:[#allocation3 + $0x78] sm:$0xff]
      %v955 = vld [vmem:[#allocation3 + $0x80] sm:$0xff]
      %v956 = vld [vmem:[#allocation3 + $0x88] sm:$0xff]
      %v957 = vld [vmem:[%s2] sm:$0xff]
      %959 = vset.pattern.permute.xlu0 0
      %960 = vperm.xlu0 %959, %v957
      %v961 = vpop.permute.xlu0 %960
      %vm963 = vcmask 588800
      %v965 = vsel %vm963, %v938, 0
      %967 = vmatpush.msra.mxu0 0.0
      %968 = vmatpush.msra.mxu0 0.0
      %969 = vmatpush.msra.mxu0 0.0
      %970 = vmatpush.msra.mxu0 0.0
      %971 = vmatpush.msra.mxu0 0.0
      %972 = vmatpush.msra.mxu0 0.0
      %973 = vmatpush.msra.mxu0 0.0
      %974 = vmatpush.msra.mxu0 %v955
      %975 = vmatpush.msra.mxu0 %v953
      %976 = vmatpush.msra.mxu0 %v951
      %977 = vmatpush.msra.mxu0 %v949
      %978 = vmatpush.msra.mxu0 %v947
      %979 = vmatpush.msra.mxu0 %v945
      %980 = vmatpush.msra.mxu0 %v943
      %981 = vmatpush.msra.mxu0 %v941
      %982 = vmatpush.msra.mxu0 %v939
      %983 = vmatmul.f32.gmra.mxu0 %v965
      %v984 = vpop.f32.mrf.mxu0
      %v985 = vadd.f32 %v961, %v984
      %986 = vdwg.mxu0
      %987 = vmatpush.msra.mxu0 0.0
      %988 = vmatpush.msra.mxu0 0.0
      %989 = vmatpush.msra.mxu0 0.0
      %990 = vmatpush.msra.mxu0 0.0
      %991 = vmatpush.msra.mxu0 0.0
      %992 = vmatpush.msra.mxu0 0.0
      %993 = vmatpush.msra.mxu0 0.0
      %994 = vmatpush.msra.mxu0 %v956
      %995 = vmatpush.msra.mxu0 %v954
      %996 = vmatpush.msra.mxu0 %v952
      %997 = vmatpush.msra.mxu0 %v950
      %998 = vmatpush.msra.mxu0 %v948
      %999 = vmatpush.msra.mxu0 %v946
      %1000 = vmatpush.msra.mxu0 %v944
      %1001 = vmatpush.msra.mxu0 %v942
      %1002 = vmatpush.msra.mxu0 %v940
      %1003 = vmatmul.f32.gmra.mxu0 %v965
      %v1004 = vpop.f32.mrf.mxu0
      %v1005 = vadd.f32 %v961, %v1004
      %1006 = vdwg.mxu0
      %vm1007 = vcmp.ge.f32.partialorder %v985, 0.0
      %vm1008 = vcmp.ge.f32.partialorder %v1005, 0.0
      %v1009 = vmul.f32 %v985, 0.01
      %v1010 = vmul.f32 %v1005, 0.01
      %v1011 = vsel %vm1007, %v985, %v1009
      %v1012 = vsel %vm1008, %v1005, %v1010
      %1013 = vst [vmem:[#allocation2 + $0x8] sm:$0xff] %v1011
      %1014 = vst [vmem:[#allocation2 + $0x10] sm:$0xff] %v1012
      %v1015 = vld [vmem:[#allocation2] sm:$0xff]
      %v1016 = vld [vmem:[#allocation2 + $0x8] sm:$0xff]
      %v1017 = vld [vmem:[#allocation2 + $0x10] sm:$0xff]
      %v1018 = vld [vmem:[%s13] ss:$8 sm:$0x3]
      %v1020 = vperm.slane %v1018, 0
      %v1021 = vperm.slane %v1018, 1
      %1022 = vrot.lane.b32.xlu0 %v1020, 111
      %v1023 = vpop.permute.xlu0 %1022
      %1024 = vrot.lane.b32.xlu0 %v1021, 111
      %v1025 = vpop.permute.xlu0 %1024
      %v1026 = vsel %vm658, %v1023, %v1025
      %v1030 = vmul.f32 %v1015, %v1023
      %v1031 = vmul.f32 %v1016, %v1026
      %v1032 = vmul.f32 %v1017, %v1025
      %1036 = vrot.lane.b32.xlu0 %v1030, 17
      %v1037 = vpop.permute.xlu0 %1036
      %1038 = vrot.lane.b32.xlu0 %v1031, 17
      %v1039 = vpop.permute.xlu0 %1038
      %1040 = vrot.lane.b32.xlu0 %v1032, 17
      %v1041 = vpop.permute.xlu0 %1040
      %v1042 = vsel %vm675, %v1037, %v1039
      %v1043 = vsel %vm675, %v1039, %v1041
      %1046 = vst [vmem:[#allocation3] sm:$0xff] %v1042
      %1047 = vst [vmem:[#allocation3 + $0x8] sm:$0xff] %v1043
      %v1048 = vld [vmem:[#allocation2] sm:$0xff]
      %v1049 = vld [vmem:[#allocation2 + $0x8] sm:$0xff]
      %v1050 = vld [vmem:[#allocation2 + $0x10] sm:$0xff]
      %v1051 = vld [vmem:[%s685] ss:$8 sm:$0x3]
      %v1053 = vperm.slane %v1051, 0
      %v1054 = vperm.slane %v1051, 1
      %1055 = vrot.lane.b32.xlu0 %v1053, 112
      %v1056 = vpop.permute.xlu0 %1055
      %1057 = vrot.lane.b32.xlu0 %v1054, 112
      %v1058 = vpop.permute.xlu0 %1057
      %v1059 = vsel %vm694, %v1056, %v1058
      %v1063 = vmul.f32 %v1048, %v1056
      %v1064 = vmul.f32 %v1049, %v1059
      %v1065 = vmul.f32 %v1050, %v1058
      %1069 = vrot.lane.b32.xlu0 %v1063, 16
      %v1070 = vpop.permute.xlu0 %1069
      %1071 = vrot.lane.b32.xlu0 %v1064, 16
      %v1072 = vpop.permute.xlu0 %1071
      %1073 = vrot.lane.b32.xlu0 %v1065, 16
      %v1074 = vpop.permute.xlu0 %1073
      %v1075 = vsel %vm638, %v1070, %v1072
      %v1076 = vsel %vm638, %v1072, %v1074
      %1079 = vst [vmem:[#allocation3 + $0x10] sm:$0xff] %v1075
      %1080 = vst [vmem:[#allocation3 + $0x18] sm:$0xff] %v1076
      %v1081 = vld [vmem:[#allocation2] sm:$0xff]
      %v1082 = vld [vmem:[#allocation2 + $0x8] sm:$0xff]
      %v1083 = vld [vmem:[#allocation2 + $0x10] sm:$0xff]
      %v1084 = vld [vmem:[%s720] ss:$8 sm:$0x3]
      %v1086 = vperm.slane %v1084, 0
      %v1087 = vperm.slane %v1084, 1
      %1088 = vrot.lane.b32.xlu0 %v1086, 113
      %v1089 = vpop.permute.xlu0 %1088
      %1090 = vrot.lane.b32.xlu0 %v1087, 113
      %v1091 = vpop.permute.xlu0 %1090
      %v1092 = vsel %vm729, %v1089, %v1091
      %v1096 = vmul.f32 %v1081, %v1089
      %v1097 = vmul.f32 %v1082, %v1092
      %v1098 = vmul.f32 %v1083, %v1091
      %1102 = vrot.lane.b32.xlu0 %v1096, 15
      %v1103 = vpop.permute.xlu0 %1102
      %1104 = vrot.lane.b32.xlu0 %v1097, 15
      %v1105 = vpop.permute.xlu0 %1104
      %1106 = vrot.lane.b32.xlu0 %v1098, 15
      %v1107 = vpop.permute.xlu0 %1106
      %v1108 = vsel %vm746, %v1103, %v1105
      %v1109 = vsel %vm746, %v1105, %v1107
      %1112 = vst [vmem:[#allocation3 + $0x20] sm:$0xff] %v1108
      %1113 = vst [vmem:[#allocation3 + $0x28] sm:$0xff] %v1109
      %v1114 = vld [vmem:[#allocation2] sm:$0xff]
      %v1115 = vld [vmem:[#allocation2 + $0x8] sm:$0xff]
      %v1116 = vld [vmem:[#allocation2 + $0x10] sm:$0xff]
      %v1117 = vld [vmem:[%s756] ss:$8 sm:$0x3]
      %v1119 = vperm.slane %v1117, 0
      %v1120 = vperm.slane %v1117, 1
      %1121 = vrot.lane.b32.xlu0 %v1119, 127
      %v1122 = vpop.permute.xlu0 %1121
      %1123 = vrot.lane.b32.xlu0 %v1120, 127
      %v1124 = vpop.permute.xlu0 %1123
      %v1125 = vsel %vm765, %v1122, %v1124
      %v1129 = vmul.f32 %v1114, %v1122
      %v1130 = vmul.f32 %v1115, %v1125
      %v1131 = vmul.f32 %v1116, %v1124
      %1135 = vrot.lane.b32.xlu0 %v1129, 1
      %v1136 = vpop.permute.xlu0 %1135
      %1137 = vrot.lane.b32.xlu0 %v1130, 1
      %v1138 = vpop.permute.xlu0 %1137
      %1139 = vrot.lane.b32.xlu0 %v1131, 1
      %v1140 = vpop.permute.xlu0 %1139
      %v1141 = vsel %vm782, %v1136, %v1138
      %v1142 = vsel %vm782, %v1138, %v1140
      %1145 = vst [vmem:[#allocation3 + $0x30] sm:$0xff] %v1141
      %1146 = vst [vmem:[#allocation3 + $0x38] sm:$0xff] %v1142
      %v1147 = vld [vmem:[#allocation2 + $0x8] sm:$0xff]
      %v1148 = vld [vmem:[#allocation2 + $0x10] sm:$0xff]
      %v1149 = vld [vmem:[%s791] ss:$8 sm:$0x3]
      %v1151 = vperm.slane %v1149, 0
      %v1152 = vperm.slane %v1149, 1
      %v1155 = vmul.f32 %v1147, %v1151
      %v1156 = vmul.f32 %v1148, %v1152
      %1157 = vst [vmem:[#allocation3 + $0x40] sm:$0xff] %v1155
      %1158 = vst [vmem:[#allocation3 + $0x48] sm:$0xff] %v1156
      %v1159 = vld [vmem:[#allocation2 + $0x8] sm:$0xff]
      %v1160 = vld [vmem:[#allocation2 + $0x10] sm:$0xff]
      %v1161 = vld [vmem:[#allocation2 + $0x18] sm:$0xff]
      %v1162 = vld [vmem:[%s805] ss:$8 sm:$0x3]
      %v1164 = vperm.slane %v1162, 0
      %v1165 = vperm.slane %v1162, 1
      %1166 = vrot.lane.b32.xlu0 %v1164, 1
      %v1167 = vpop.permute.xlu0 %1166
      %1168 = vrot.lane.b32.xlu0 %v1165, 1
      %v1169 = vpop.permute.xlu0 %1168
      %v1170 = vsel %vm782, %v1167, %v1169
      %v1174 = vmul.f32 %v1159, %v1167
      %v1175 = vmul.f32 %v1160, %v1170
      %v1176 = vmul.f32 %v1161, %v1169
      %1180 = vrot.lane.b32.xlu0 %v1174, 127
      %v1181 = vpop.permute.xlu0 %1180
      %1182 = vrot.lane.b32.xlu0 %v1175, 127
      %v1183 = vpop.permute.xlu0 %1182
      %1184 = vrot.lane.b32.xlu0 %v1176, 127
      %v1185 = vpop.permute.xlu0 %1184
      %v1186 = vsel %vm765, %v1181, %v1183
      %v1187 = vsel %vm765, %v1183, %v1185
      %1190 = vst [vmem:[#allocation3 + $0x50] sm:$0xff] %v1186
      %1191 = vst [vmem:[#allocation3 + $0x58] sm:$0xff] %v1187
      %v1192 = vld [vmem:[#allocation2 + $0x8] sm:$0xff]
      %v1193 = vld [vmem:[#allocation2 + $0x10] sm:$0xff]
      %v1194 = vld [vmem:[#allocation2 + $0x18] sm:$0xff]
      %v1195 = vld [vmem:[%s839] ss:$8 sm:$0x3]
      %v1197 = vperm.slane %v1195, 0
      %v1198 = vperm.slane %v1195, 1
      %1199 = vrot.lane.b32.xlu0 %v1197, 15
      %v1200 = vpop.permute.xlu0 %1199
      %1201 = vrot.lane.b32.xlu0 %v1198, 15
      %v1202 = vpop.permute.xlu0 %1201
      %v1203 = vsel %vm746, %v1200, %v1202
      %v1207 = vmul.f32 %v1192, %v1200
      %v1208 = vmul.f32 %v1193, %v1203
      %v1209 = vmul.f32 %v1194, %v1202
      %1213 = vrot.lane.b32.xlu0 %v1207, 113
      %v1214 = vpop.permute.xlu0 %1213
      %1215 = vrot.lane.b32.xlu0 %v1208, 113
      %v1216 = vpop.permute.xlu0 %1215
      %1217 = vrot.lane.b32.xlu0 %v1209, 113
      %v1218 = vpop.permute.xlu0 %1217
      %v1219 = vsel %vm729, %v1214, %v1216
      %v1220 = vsel %vm729, %v1216, %v1218
      %1223 = vst [vmem:[#allocation3 + $0x60] sm:$0xff] %v1219
      %1224 = vst [vmem:[#allocation3 + $0x68] sm:$0xff] %v1220
      %v1225 = vld [vmem:[#allocation2 + $0x8] sm:$0xff]
      %v1226 = vld [vmem:[#allocation2 + $0x10] sm:$0xff]
      %v1227 = vld [vmem:[#allocation2 + $0x18] sm:$0xff]
      %v1228 = vld [vmem:[%s873] ss:$8 sm:$0x3]
      %v1230 = vperm.slane %v1228, 0
      %v1231 = vperm.slane %v1228, 1
      %1232 = vrot.lane.b32.xlu0 %v1230, 16
      %v1233 = vpop.permute.xlu0 %1232
      %1234 = vrot.lane.b32.xlu0 %v1231, 16
      %v1235 = vpop.permute.xlu0 %1234
      %v1236 = vsel %vm638, %v1233, %v1235
      %v1240 = vmul.f32 %v1225, %v1233
      %v1241 = vmul.f32 %v1226, %v1236
      %v1242 = vmul.f32 %v1227, %v1235
      %1246 = vrot.lane.b32.xlu0 %v1240, 112
      %v1247 = vpop.permute.xlu0 %1246
      %1248 = vrot.lane.b32.xlu0 %v1241, 112
      %v1249 = vpop.permute.xlu0 %1248
      %1250 = vrot.lane.b32.xlu0 %v1242, 112
      %v1251 = vpop.permute.xlu0 %1250
      %v1252 = vsel %vm694, %v1247, %v1249
      %v1253 = vsel %vm694, %v1249, %v1251
      %1256 = vst [vmem:[#allocation3 + $0x70] sm:$0xff] %v1252
      %1257 = vst [vmem:[#allocation3 + $0x78] sm:$0xff] %v1253
      %v1258 = vld [vmem:[#allocation2 + $0x8] sm:$0xff]
      %v1259 = vld [vmem:[#allocation2 + $0x10] sm:$0xff]
      %v1260 = vld [vmem:[#allocation2 + $0x18] sm:$0xff]
      %v1261 = vld [vmem:[%s907] ss:$8 sm:$0x3]
      %v1263 = vperm.slane %v1261, 0
      %v1264 = vperm.slane %v1261, 1
      %1265 = vrot.lane.b32.xlu0 %v1263, 17
      %v1266 = vpop.permute.xlu0 %1265
      %1267 = vrot.lane.b32.xlu0 %v1264, 17
      %v1268 = vpop.permute.xlu0 %1267
      %v1269 = vsel %vm675, %v1266, %v1268
      %v1273 = vmul.f32 %v1258, %v1266
      %v1274 = vmul.f32 %v1259, %v1269
      %v1275 = vmul.f32 %v1260, %v1268
      %1279 = vrot.lane.b32.xlu0 %v1273, 111
      %v1280 = vpop.permute.xlu0 %1279
      %1281 = vrot.lane.b32.xlu0 %v1274, 111
      %v1282 = vpop.permute.xlu0 %1281
      %1283 = vrot.lane.b32.xlu0 %v1275, 111
      %v1284 = vpop.permute.xlu0 %1283
      %v1285 = vsel %vm658, %v1280, %v1282
      %v1286 = vsel %vm658, %v1282, %v1284
      %1289 = vst [vmem:[#allocation3 + $0x80] sm:$0xff] %v1285
      %1290 = vst [vmem:[#allocation3 + $0x88] sm:$0xff] %v1286
      %v1291 = vld [vmem:[%s3] sm:$0xff]
      %v1292 = vld [vmem:[#allocation3] sm:$0xff]
      %v1293 = vld [vmem:[#allocation3 + $0x8] sm:$0xff]
      %v1294 = vld [vmem:[#allocation3 + $0x10] sm:$0xff]
      %v1295 = vld [vmem:[#allocation3 + $0x18] sm:$0xff]
      %v1296 = vld [vmem:[#allocation3 + $0x20] sm:$0xff]
      %v1297 = vld [vmem:[#allocation3 + $0x28] sm:$0xff]
      %v1298 = vld [vmem:[#allocation3 + $0x30] sm:$0xff]
      %v1299 = vld [vmem:[#allocation3 + $0x38] sm:$0xff]
      %v1300 = vld [vmem:[#allocation3 + $0x40] sm:$0xff]
      %v1301 = vld [vmem:[#allocation3 + $0x48] sm:$0xff]
      %v1302 = vld [vmem:[#allocation3 + $0x50] sm:$0xff]
      %v1303 = vld [vmem:[#allocation3 + $0x58] sm:$0xff]
      %v1304 = vld [vmem:[#allocation3 + $0x60] sm:$0xff]
      %v1305 = vld [vmem:[#allocation3 + $0x68] sm:$0xff]
      %v1306 = vld [vmem:[#allocation3 + $0x70] sm:$0xff]
      %v1307 = vld [vmem:[#allocation3 + $0x78] sm:$0xff]
      %v1308 = vld [vmem:[#allocation3 + $0x80] sm:$0xff]
      %v1309 = vld [vmem:[#allocation3 + $0x88] sm:$0xff]
      %v1310 = vld [vmem:[%s4] sm:$0xff]
      %1312 = vset.pattern.permute.xlu0 0
      %1313 = vperm.xlu0 %1312, %v1310
      %v1314 = vpop.permute.xlu0 %1313
      %v1317 = vsel %vm963, %v1291, 0
      %1319 = vmatpush.msra.mxu0 0.0
      %1320 = vmatpush.msra.mxu0 0.0
      %1321 = vmatpush.msra.mxu0 0.0
      %1322 = vmatpush.msra.mxu0 0.0
      %1323 = vmatpush.msra.mxu0 0.0
      %1324 = vmatpush.msra.mxu0 0.0
      %1325 = vmatpush.msra.mxu0 0.0
      %1326 = vmatpush.msra.mxu0 %v1308
      %1327 = vmatpush.msra.mxu0 %v1306
      %1328 = vmatpush.msra.mxu0 %v1304
      %1329 = vmatpush.msra.mxu0 %v1302
      %1330 = vmatpush.msra.mxu0 %v1300
      %1331 = vmatpush.msra.mxu0 %v1298
      %1332 = vmatpush.msra.mxu0 %v1296
      %1333 = vmatpush.msra.mxu0 %v1294
      %1334 = vmatpush.msra.mxu0 %v1292
      %1335 = vmatmul.f32.gmra.mxu0 %v1317
      %v1336 = vpop.f32.mrf.mxu0
      %v1337 = vadd.f32 %v1314, %v1336
      %1338 = vdwg.mxu0
      %1339 = vmatpush.msra.mxu0 0.0
      %1340 = vmatpush.msra.mxu0 0.0
      %1341 = vmatpush.msra.mxu0 0.0
      %1342 = vmatpush.msra.mxu0 0.0
      %1343 = vmatpush.msra.mxu0 0.0
      %1344 = vmatpush.msra.mxu0 0.0
      %1345 = vmatpush.msra.mxu0 0.0
      %1346 = vmatpush.msra.mxu0 %v1309
      %1347 = vmatpush.msra.mxu0 %v1307
      %1348 = vmatpush.msra.mxu0 %v1305
      %1349 = vmatpush.msra.mxu0 %v1303
      %1350 = vmatpush.msra.mxu0 %v1301
      %1351 = vmatpush.msra.mxu0 %v1299
      %1352 = vmatpush.msra.mxu0 %v1297
      %1353 = vmatpush.msra.mxu0 %v1295
      %1354 = vmatpush.msra.mxu0 %v1293
      %1355 = vmatmul.f32.gmra.mxu0 %v1317
      %v1356 = vpop.f32.mrf.mxu0
      %v1357 = vadd.f32 %v1314, %v1356
      %1358 = vdwg.mxu0
      %vm1359 = vcmp.ge.f32.partialorder %v1337, 0.0
      %vm1360 = vcmp.ge.f32.partialorder %v1357, 0.0
      %v1361 = vmul.f32 %v1337, 0.01
      %v1362 = vmul.f32 %v1357, 0.01
      %v1363 = vsel %vm1359, %v1337, %v1361
      %v1364 = vsel %vm1360, %v1357, %v1362
      %v1365 = vld [vmem:[%s16] sm:$0xff]
      %v1366 = vld [vmem:[%s16 + $0x8] sm:$0xff]
      %v1367 = vld [vmem:[%s16 + $0x10] sm:$0xff]
      %v1368 = vld [vmem:[%s16 + $0x18] sm:$0xff]
      %v1369 = vld [vmem:[%s16 + $0x20] sm:$0xff]
      %v1370 = vld [vmem:[%s16 + $0x28] sm:$0xff]
      %v1371 = vld [vmem:[%s16 + $0x30] sm:$0xff]
      %v1372 = vld [vmem:[%s16 + $0x38] sm:$0xff]
      %v1373 = vld [vmem:[%s16 + $0x40] sm:$0xff]
      %v1374 = vld [vmem:[%s16 + $0x48] sm:$0xff]
      %v1375 = vld [vmem:[%s16 + $0x50] sm:$0xff]
      %v1376 = vld [vmem:[%s16 + $0x58] sm:$0xff]
      %v1377 = vld [vmem:[%s16 + $0x60] sm:$0xff]
      %v1378 = vld [vmem:[%s16 + $0x68] sm:$0xff]
      %v1379 = vld [vmem:[%s16 + $0x70] sm:$0xff]
      %v1380 = vld [vmem:[%s16 + $0x78] sm:$0xff]
      %v1381 = vld [vmem:[%s16 + $0x80] sm:$0xff]
      %v1382 = vld [vmem:[%s16 + $0x88] sm:$0xff]
      %v1383 = vld [vmem:[%s16 + $0x90] sm:$0xff]
      %v1384 = vld [vmem:[%s16 + $0x98] sm:$0xff]
      %v1385 = vld [vmem:[%s16 + $0xa0] sm:$0xff]
      %v1386 = vld [vmem:[%s16 + $0xa8] sm:$0xff]
      %v1387 = vld [vmem:[%s16 + $0xb0] sm:$0xff]
      %v1388 = vld [vmem:[%s16 + $0xb8] sm:$0xff]
      %v1389 = vld [vmem:[%s16 + $0xc0] sm:$0xff]
      %v1390 = vld [vmem:[%s16 + $0xc8] sm:$0xff]
      %v1391 = vld [vmem:[%s16 + $0xd0] sm:$0xff]
      %v1392 = vld [vmem:[%s16 + $0xd8] sm:$0xff]
      %v1393 = vld [vmem:[%s16 + $0xe0] sm:$0xff]
      %v1394 = vld [vmem:[%s16 + $0xe8] sm:$0xff]
      %v1395 = vld [vmem:[%s16 + $0xf0] sm:$0xff]
      %v1396 = vld [vmem:[%s16 + $0xf8] sm:$0xff]
      %1397 = vmatpush.msra.mxu0 %v1380
      %1398 = vmatpush.msra.mxu0 %v1379
      %1399 = vmatpush.msra.mxu0 %v1378
      %1400 = vmatpush.msra.mxu0 %v1377
      %1401 = vmatpush.msra.mxu0 %v1376
      %1402 = vmatpush.msra.mxu0 %v1375
      %1403 = vmatpush.msra.mxu0 %v1374
      %1404 = vmatpush.msra.mxu0 %v1373
      %1405 = vmatpush.msra.mxu0 %v1372
      %1406 = vmatpush.msra.mxu0 %v1371
      %1407 = vmatpush.msra.mxu0 %v1370
      %1408 = vmatpush.msra.mxu0 %v1369
      %1409 = vmatpush.msra.mxu0 %v1368
      %1410 = vmatpush.msra.mxu0 %v1367
      %1411 = vmatpush.msra.mxu0 %v1366
      %1412 = vmatpush.msra.mxu0 %v1365
      %1413 = vmatmul.f32.gmra.mxu0 %v1363
      %v1414 = vpop.f32.mrf.mxu0
      %v1415 = vadd.f32 0.0, %v1414
      %1416 = vdwg.mxu0
      %1417 = vmatpush.msra.mxu0 %v1396
      %1418 = vmatpush.msra.mxu0 %v1395
      %1419 = vmatpush.msra.mxu0 %v1394
      %1420 = vmatpush.msra.mxu0 %v1393
      %1421 = vmatpush.msra.mxu0 %v1392
      %1422 = vmatpush.msra.mxu0 %v1391
      %1423 = vmatpush.msra.mxu0 %v1390
      %1424 = vmatpush.msra.mxu0 %v1389
      %1425 = vmatpush.msra.mxu0 %v1388
      %1426 = vmatpush.msra.mxu0 %v1387
      %1427 = vmatpush.msra.mxu0 %v1386
      %1428 = vmatpush.msra.mxu0 %v1385
      %1429 = vmatpush.msra.mxu0 %v1384
      %1430 = vmatpush.msra.mxu0 %v1383
      %1431 = vmatpush.msra.mxu0 %v1382
      %1432 = vmatpush.msra.mxu0 %v1381
      %1433 = vmatmul.f32.gmra.mxu0 %v1364
      %v1434 = vpop.f32.mrf.mxu0
      %v1435 = vadd.f32 %v1415, %v1434
      %1436 = vdwg.mxu0
      %1437 = vst.msk [vmem:[#allocation4 + $0x8] sm:$0xff] %vm634, %v1435
      %v1438 = vld [vmem:[#allocation4] sm:$0xff]
      %v1439 = vld [vmem:[#allocation4 + $0x8] sm:$0xff]
      %v1440 = vld [vmem:[%s14] sm:$0x1]
      %v1441 = vperm.slane %v1440, 0
      %1443 = vrot.lane.b32.xlu0 %v1441, 119
      %v1444 = vpop.permute.xlu0 %1443
      %v1446 = vmul.f32 %v1438, %v1444
      %v1447 = vmul.f32 %v1439, %v1444
      %1450 = vrot.lane.b32.xlu0 %v1446, 9
      %v1451 = vpop.permute.xlu0 %1450
      %1452 = vrot.lane.b32.xlu0 %v1447, 9
      %v1453 = vpop.permute.xlu0 %1452
      %vm1454 = vcmask 72704
      %v1455 = vsel %vm1454, %v1451, %v1453
      %1457 = vst.msk [vmem:[#allocation5] sm:$0xff] %vm634, %v1455
      %v1458 = vld [vmem:[#allocation4] sm:$0xff]
      %v1459 = vld [vmem:[#allocation4 + $0x8] sm:$0xff]
      %v1460 = vld [vmem:[%s14 + $0x1] sm:$0x1]
      %v1461 = vperm.slane %v1460, 0
      %1463 = vrot.lane.b32.xlu0 %v1461, 120
      %v1464 = vpop.permute.xlu0 %1463
      %v1466 = vmul.f32 %v1458, %v1464
      %v1467 = vmul.f32 %v1459, %v1464
      %1470 = vrot.lane.b32.xlu0 %v1466, 8
      %v1471 = vpop.permute.xlu0 %1470
      %1472 = vrot.lane.b32.xlu0 %v1467, 8
      %v1473 = vpop.permute.xlu0 %1472
      %vm1474 = vcmask 64512
      %v1475 = vsel %vm1474, %v1471, %v1473
      %1477 = vst.msk [vmem:[#allocation5 + $0x8] sm:$0xff] %vm634, %v1475
      %v1478 = vld [vmem:[#allocation4] sm:$0xff]
      %v1479 = vld [vmem:[#allocation4 + $0x8] sm:$0xff]
      %v1480 = vld [vmem:[%s14 + $0x2] sm:$0x1]
      %v1481 = vperm.slane %v1480, 0
      %1483 = vrot.lane.b32.xlu0 %v1481, 121
      %v1484 = vpop.permute.xlu0 %1483
      %v1486 = vmul.f32 %v1478, %v1484
      %v1487 = vmul.f32 %v1479, %v1484
      %1490 = vrot.lane.b32.xlu0 %v1486, 7
      %v1491 = vpop.permute.xlu0 %1490
      %1492 = vrot.lane.b32.xlu0 %v1487, 7
      %v1493 = vpop.permute.xlu0 %1492
      %vm1494 = vcmask 56320
      %v1495 = vsel %vm1494, %v1491, %v1493
      %1497 = vst.msk [vmem:[#allocation5 + $0x10] sm:$0xff] %vm634, %v1495
      %v1498 = vld [vmem:[#allocation4] sm:$0xff]
      %v1499 = vld [vmem:[#allocation4 + $0x8] sm:$0xff]
      %v1500 = vld [vmem:[%s14 + $0x3] sm:$0x1]
      %v1501 = vperm.slane %v1500, 0
      %1503 = vrot.lane.b32.xlu0 %v1501, 127
      %v1504 = vpop.permute.xlu0 %1503
      %v1506 = vmul.f32 %v1498, %v1504
      %v1507 = vmul.f32 %v1499, %v1504
      %1510 = vrot.lane.b32.xlu0 %v1506, 1
      %v1511 = vpop.permute.xlu0 %1510
      %1512 = vrot.lane.b32.xlu0 %v1507, 1
      %v1513 = vpop.permute.xlu0 %1512
      %v1514 = vsel %vm782, %v1511, %v1513
      %1516 = vst.msk [vmem:[#allocation5 + $0x18] sm:$0xff] %vm634, %v1514
      %v1517 = vld [vmem:[#allocation4 + $0x8] sm:$0xff]
      %v1518 = vld [vmem:[%s14 + $0x4] sm:$0x1]
      %v1519 = vperm.slane %v1518, 0
      %v1520 = vmul.f32 %v1517, %v1519
      %1521 = vst.msk [vmem:[#allocation5 + $0x20] sm:$0xff] %vm634, %v1520
      %v1522 = vld [vmem:[#allocation4 + $0x8] sm:$0xff]
      %v1523 = vld [vmem:[%s14 + $0x5] sm:$0x1]
      %v1524 = vperm.slane %v1523, 0
      %1526 = vrot.lane.b32.xlu0 %v1524, 1
      %v1527 = vpop.permute.xlu0 %1526
      %v1529 = vmul.f32 %v1522, %v1527
      %1531 = vrot.lane.b32.xlu0 %v1529, 127
      %v1532 = vpop.permute.xlu0 %1531
      %1534 = vst.msk [vmem:[#allocation5 + $0x28] sm:$0xff] %vm634, %v1532
      %v1535 = vld [vmem:[#allocation4 + $0x8] sm:$0xff]
      %v1536 = vld [vmem:[%s14 + $0x6] sm:$0x1]
      %v1537 = vperm.slane %v1536, 0
      %1539 = vrot.lane.b32.xlu0 %v1537, 7
      %v1540 = vpop.permute.xlu0 %1539
      %v1542 = vmul.f32 %v1535, %v1540
      %1544 = vrot.lane.b32.xlu0 %v1542, 121
      %v1545 = vpop.permute.xlu0 %1544
      %1547 = vst.msk [vmem:[#allocation5 + $0x30] sm:$0xff] %vm634, %v1545
      %v1548 = vld [vmem:[#allocation4 + $0x8] sm:$0xff]
      %v1549 = vld [vmem:[%s14 + $0x7] sm:$0x1]
      %v1550 = vperm.slane %v1549, 0
      %1552 = vrot.lane.b32.xlu0 %v1550, 8
      %v1553 = vpop.permute.xlu0 %1552
      %v1555 = vmul.f32 %v1548, %v1553
      %1557 = vrot.lane.b32.xlu0 %v1555, 120
      %v1558 = vpop.permute.xlu0 %1557
      %1560 = vst.msk [vmem:[#allocation5 + $0x38] sm:$0xff] %vm634, %v1558
      %v1561 = vld [vmem:[#allocation4 + $0x8] sm:$0xff]
      %v1562 = vld [vmem:[%s14 + $0x8] sm:$0x1]
      %v1563 = vperm.slane %v1562, 0
      %1565 = vrot.lane.b32.xlu0 %v1563, 9
      %v1566 = vpop.permute.xlu0 %1565
      %v1568 = vmul.f32 %v1561, %v1566
      %1570 = vrot.lane.b32.xlu0 %v1568, 119
      %v1571 = vpop.permute.xlu0 %1570
      %1573 = vst.msk [vmem:[#allocation5 + $0x40] sm:$0xff] %vm634, %v1571
      %v1574 = vld [vmem:[%s5] sm:$0xff]
      %v1575 = vld [vmem:[#allocation5] sm:$0xff]
      %v1576 = vld [vmem:[#allocation5 + $0x8] sm:$0xff]
      %v1577 = vld [vmem:[#allocation5 + $0x10] sm:$0xff]
      %v1578 = vld [vmem:[#allocation5 + $0x18] sm:$0xff]
      %v1579 = vld [vmem:[#allocation5 + $0x20] sm:$0xff]
      %v1580 = vld [vmem:[#allocation5 + $0x28] sm:$0xff]
      %v1581 = vld [vmem:[#allocation5 + $0x30] sm:$0xff]
      %v1582 = vld [vmem:[#allocation5 + $0x38] sm:$0xff]
      %v1583 = vld [vmem:[#allocation5 + $0x40] sm:$0xff]
      %v1584 = vld [vmem:[%s6] sm:$0xff]
      %1586 = vset.pattern.permute.xlu0 0
      %1587 = vperm.xlu0 %1586, %v1584
      %v1588 = vpop.permute.xlu0 %1587
      %v1591 = vsel %vm963, %v1574, 0
      %1593 = vmatpush.msra.mxu0 0.0
      %1594 = vmatpush.msra.mxu0 0.0
      %1595 = vmatpush.msra.mxu0 0.0
      %1596 = vmatpush.msra.mxu0 0.0
      %1597 = vmatpush.msra.mxu0 0.0
      %1598 = vmatpush.msra.mxu0 0.0
      %1599 = vmatpush.msra.mxu0 0.0
      %1600 = vmatpush.msra.mxu0 %v1583
      %1601 = vmatpush.msra.mxu0 %v1582
      %1602 = vmatpush.msra.mxu0 %v1581
      %1603 = vmatpush.msra.mxu0 %v1580
      %1604 = vmatpush.msra.mxu0 %v1579
      %1605 = vmatpush.msra.mxu0 %v1578
      %1606 = vmatpush.msra.mxu0 %v1577
      %1607 = vmatpush.msra.mxu0 %v1576
      %1608 = vmatpush.msra.mxu0 %v1575
      %1609 = vmatmul.f32.gmra.mxu0 %v1591
      %v1610 = vpop.f32.mrf.mxu0
      %v1611 = vadd.f32 %v1588, %v1610
      %1612 = vdwg.mxu0
      %vm1613 = vcmp.ge.f32.partialorder %v1611, 0.0
      %v1614 = vmul.f32 %v1611, 0.01
      %v1615 = vsel %vm1613, %v1611, %v1614
      %1616 = vst.msk [vmem:[#allocation4 + $0x8] sm:$0xff] %vm634, %v1615
      %v1617 = vld [vmem:[#allocation4] sm:$0xff]
      %v1618 = vld [vmem:[#allocation4 + $0x8] sm:$0xff]
      %v1619 = vld [vmem:[%s14] sm:$0x1]
      %v1620 = vperm.slane %v1619, 0
      %1622 = vrot.lane.b32.xlu0 %v1620, 119
      %v1623 = vpop.permute.xlu0 %1622
      %v1625 = vmul.f32 %v1617, %v1623
      %v1626 = vmul.f32 %v1618, %v1623
      %1629 = vrot.lane.b32.xlu0 %v1625, 9
      %v1630 = vpop.permute.xlu0 %1629
      %1631 = vrot.lane.b32.xlu0 %v1626, 9
      %v1632 = vpop.permute.xlu0 %1631
      %v1633 = vsel %vm1454, %v1630, %v1632
      %1635 = vst.msk [vmem:[#allocation5] sm:$0xff] %vm634, %v1633
      %v1636 = vld [vmem:[#allocation4] sm:$0xff]
      %v1637 = vld [vmem:[#allocation4 + $0x8] sm:$0xff]
      %v1638 = vld [vmem:[%s14 + $0x1] sm:$0x1]
      %v1639 = vperm.slane %v1638, 0
      %1641 = vrot.lane.b32.xlu0 %v1639, 120
      %v1642 = vpop.permute.xlu0 %1641
      %v1644 = vmul.f32 %v1636, %v1642
      %v1645 = vmul.f32 %v1637, %v1642
      %1648 = vrot.lane.b32.xlu0 %v1644, 8
      %v1649 = vpop.permute.xlu0 %1648
      %1650 = vrot.lane.b32.xlu0 %v1645, 8
      %v1651 = vpop.permute.xlu0 %1650
      %v1652 = vsel %vm1474, %v1649, %v1651
      %1654 = vst.msk [vmem:[#allocation5 + $0x8] sm:$0xff] %vm634, %v1652
      %v1655 = vld [vmem:[#allocation4] sm:$0xff]
      %v1656 = vld [vmem:[#allocation4 + $0x8] sm:$0xff]
      %v1657 = vld [vmem:[%s14 + $0x2] sm:$0x1]
      %v1658 = vperm.slane %v1657, 0
      %1660 = vrot.lane.b32.xlu0 %v1658, 121
      %v1661 = vpop.permute.xlu0 %1660
      %v1663 = vmul.f32 %v1655, %v1661
      %v1664 = vmul.f32 %v1656, %v1661
      %1667 = vrot.lane.b32.xlu0 %v1663, 7
      %v1668 = vpop.permute.xlu0 %1667
      %1669 = vrot.lane.b32.xlu0 %v1664, 7
      %v1670 = vpop.permute.xlu0 %1669
      %v1671 = vsel %vm1494, %v1668, %v1670
      %1673 = vst.msk [vmem:[#allocation5 + $0x10] sm:$0xff] %vm634, %v1671
      %v1674 = vld [vmem:[#allocation4] sm:$0xff]
      %v1675 = vld [vmem:[#allocation4 + $0x8] sm:$0xff]
      %v1676 = vld [vmem:[%s14 + $0x3] sm:$0x1]
      %v1677 = vperm.slane %v1676, 0
      %1679 = vrot.lane.b32.xlu0 %v1677, 127
      %v1680 = vpop.permute.xlu0 %1679
      %v1682 = vmul.f32 %v1674, %v1680
      %v1683 = vmul.f32 %v1675, %v1680
      %1686 = vrot.lane.b32.xlu0 %v1682, 1
      %v1687 = vpop.permute.xlu0 %1686
      %1688 = vrot.lane.b32.xlu0 %v1683, 1
      %v1689 = vpop.permute.xlu0 %1688
      %v1690 = vsel %vm782, %v1687, %v1689
      %1692 = vst.msk [vmem:[#allocation5 + $0x18] sm:$0xff] %vm634, %v1690
      %v1693 = vld [vmem:[#allocation4 + $0x8] sm:$0xff]
      %v1694 = vld [vmem:[%s14 + $0x4] sm:$0x1]
      %v1695 = vperm.slane %v1694, 0
      %v1696 = vmul.f32 %v1693, %v1695
      %1697 = vst.msk [vmem:[#allocation5 + $0x20] sm:$0xff] %vm634, %v1696
      %v1698 = vld [vmem:[#allocation4 + $0x8] sm:$0xff]
      %v1699 = vld [vmem:[%s14 + $0x5] sm:$0x1]
      %v1700 = vperm.slane %v1699, 0
      %1702 = vrot.lane.b32.xlu0 %v1700, 1
      %v1703 = vpop.permute.xlu0 %1702
      %v1705 = vmul.f32 %v1698, %v1703
      %1707 = vrot.lane.b32.xlu0 %v1705, 127
      %v1708 = vpop.permute.xlu0 %1707
      %1710 = vst.msk [vmem:[#allocation5 + $0x28] sm:$0xff] %vm634, %v1708
      %v1711 = vld [vmem:[#allocation4 + $0x8] sm:$0xff]
      %v1712 = vld [vmem:[%s14 + $0x6] sm:$0x1]
      %v1713 = vperm.slane %v1712, 0
      %1715 = vrot.lane.b32.xlu0 %v1713, 7
      %v1716 = vpop.permute.xlu0 %1715
      %v1718 = vmul.f32 %v1711, %v1716
      %1720 = vrot.lane.b32.xlu0 %v1718, 121
      %v1721 = vpop.permute.xlu0 %1720
      %1723 = vst.msk [vmem:[#allocation5 + $0x30] sm:$0xff] %vm634, %v1721
      %v1724 = vld [vmem:[#allocation4 + $0x8] sm:$0xff]
      %v1725 = vld [vmem:[%s14 + $0x7] sm:$0x1]
      %v1726 = vperm.slane %v1725, 0
      %1728 = vrot.lane.b32.xlu0 %v1726, 8
      %v1729 = vpop.permute.xlu0 %1728
      %v1731 = vmul.f32 %v1724, %v1729
      %1733 = vrot.lane.b32.xlu0 %v1731, 120
      %v1734 = vpop.permute.xlu0 %1733
      %1736 = vst.msk [vmem:[#allocation5 + $0x38] sm:$0xff] %vm634, %v1734
      %v1737 = vld [vmem:[#allocation4 + $0x8] sm:$0xff]
      %v1738 = vld [vmem:[%s14 + $0x8] sm:$0x1]
      %v1739 = vperm.slane %v1738, 0
      %1741 = vrot.lane.b32.xlu0 %v1739, 9
      %v1742 = vpop.permute.xlu0 %1741
      %v1744 = vmul.f32 %v1737, %v1742
      %1746 = vrot.lane.b32.xlu0 %v1744, 119
      %v1747 = vpop.permute.xlu0 %1746
      %1749 = vst.msk [vmem:[#allocation5 + $0x40] sm:$0xff] %vm634, %v1747
      %v1750 = vld [vmem:[%s7] sm:$0xff]
      %v1751 = vld [vmem:[%s7 + $0x8] sm:$0xff]
      %v1752 = vld [vmem:[#allocation5] sm:$0xff]
      %v1753 = vld [vmem:[#allocation5 + $0x8] sm:$0xff]
      %v1754 = vld [vmem:[#allocation5 + $0x10] sm:$0xff]
      %v1755 = vld [vmem:[#allocation5 + $0x18] sm:$0xff]
      %v1756 = vld [vmem:[#allocation5 + $0x20] sm:$0xff]
      %v1757 = vld [vmem:[#allocation5 + $0x28] sm:$0xff]
      %v1758 = vld [vmem:[#allocation5 + $0x30] sm:$0xff]
      %v1759 = vld [vmem:[#allocation5 + $0x38] sm:$0xff]
      %v1760 = vld [vmem:[#allocation5 + $0x40] sm:$0xff]
      %v1761 = vld [vmem:[%s8] sm:$0xff]
      %v1762 = vld [vmem:[%s8 + $0x8] sm:$0xff]
      %1764 = vset.pattern.permute.xlu0 0
      %1765 = vperm.xlu0 %1764, %v1761
      %v1766 = vpop.permute.xlu0 %1765
      %1769 = vset.pattern.permute.xlu0 0
      %1770 = vperm.xlu0 %1769, %v1762
      %v1771 = vpop.permute.xlu0 %1770
      %v1774 = vsel %vm963, %v1750, 0
      %v1777 = vsel %vm963, %v1751, 0
      %1779 = vmatpush.msra.mxu0 0.0
      %1780 = vmatpush.msra.mxu0 0.0
      %1781 = vmatpush.msra.mxu0 0.0
      %1782 = vmatpush.msra.mxu0 0.0
      %1783 = vmatpush.msra.mxu0 0.0
      %1784 = vmatpush.msra.mxu0 0.0
      %1785 = vmatpush.msra.mxu0 0.0
      %1786 = vmatpush.msra.mxu0 %v1760
      %1787 = vmatpush.msra.mxu0 %v1759
      %1788 = vmatpush.msra.mxu0 %v1758
      %1789 = vmatpush.msra.mxu0 %v1757
      %1790 = vmatpush.msra.mxu0 %v1756
      %1791 = vmatpush.msra.mxu0 %v1755
      %1792 = vmatpush.msra.mxu0 %v1754
      %1793 = vmatpush.msra.mxu0 %v1753
      %1794 = vmatpush.msra.mxu0 %v1752
      %1795 = vmatmul.f32.gmra.mxu0 %v1774
      %v1796 = vpop.f32.mrf.mxu0
      %v1797 = vadd.f32 %v1766, %v1796
      %1798 = vmatmul.f32.gmra.mxu0 %v1777
      %v1799 = vpop.f32.mrf.mxu0
      %v1800 = vadd.f32 %v1771, %v1799
      %1801 = vdwg.mxu0
      %vm1802 = vcmp.ge.f32.partialorder %v1797, 0.0
      %vm1803 = vcmp.ge.f32.partialorder %v1800, 0.0
      %v1804 = vmul.f32 %v1797, 0.01
      %v1805 = vmul.f32 %v1800, 0.01
      %v1806 = vsel %vm1802, %v1797, %v1804
      %v1807 = vsel %vm1803, %v1800, %v1805
      %v1808 = vld [vmem:[%s17] sm:$0xff]
      %v1809 = vld [vmem:[%s17 + $0x8] sm:$0xff]
      %v1810 = vld [vmem:[%s17 + $0x10] sm:$0xff]
      %v1811 = vld [vmem:[%s17 + $0x18] sm:$0xff]
      %v1812 = vld [vmem:[%s17 + $0x20] sm:$0xff]
      %v1813 = vld [vmem:[%s17 + $0x28] sm:$0xff]
      %v1814 = vld [vmem:[%s17 + $0x30] sm:$0xff]
      %v1815 = vld [vmem:[%s17 + $0x38] sm:$0xff]
      %v1817 = vsel %vm634, %v1806, 0
      %v1820 = vsel %vm634, %v1807, 0
      %1822 = vmatpush.msra.mxu0 0.0
      %1823 = vmatpush.msra.mxu0 0.0
      %1824 = vmatpush.msra.mxu0 0.0
      %1825 = vmatpush.msra.mxu0 0.0
      %1826 = vmatpush.msra.mxu0 0.0
      %1827 = vmatpush.msra.mxu0 0.0
      %1828 = vmatpush.msra.mxu0 0.0
      %1829 = vmatpush.msra.mxu0 0.0
      %1830 = vmatpush.msra.mxu0 %v1815
      %1831 = vmatpush.msra.mxu0 %v1814
      %1832 = vmatpush.msra.mxu0 %v1813
      %1833 = vmatpush.msra.mxu0 %v1812
      %1834 = vmatpush.msra.mxu0 %v1811
      %1835 = vmatpush.msra.mxu0 %v1810
      %1836 = vmatpush.msra.mxu0 %v1809
      %1837 = vmatpush.msra.mxu0 %v1808
      %1838 = vmatmul.f32.gmra.mxu0 %v1817
      %v1839 = vpop.f32.mrf.mxu0
      %v1840 = vadd.f32 0.0, %v1839
      %1841 = vmatmul.f32.gmra.mxu0 %v1820
      %v1842 = vpop.f32.mrf.mxu0
      %v1843 = vadd.f32 0.0, %v1842
      %1844 = vdwg.mxu0
      %vm1845 = vcmp.ge.f32.partialorder %v1840, 0.0
      %vm1846 = vcmp.ge.f32.partialorder %v1843, 0.0
      %v1847 = vmul.f32 %v1840, 0.01
      %v1848 = vmul.f32 %v1843, 0.01
      %v1849 = vsel %vm1845, %v1840, %v1847
      %v1850 = vsel %vm1846, %v1843, %v1848
      %1851 = vst.msk [vmem:[#allocation6 + $0x8] sm:$0xff] %vm638, %v1849
      %1852 = vst.msk [vmem:[#allocation6 + $0x20] sm:$0xff] %vm638, %v1850
      %v1853 = vld [vmem:[#allocation6] sm:$0xff]
      %v1854 = vld [vmem:[#allocation6 + $0x8] sm:$0xff]
      %v1855 = vld [vmem:[#allocation6 + $0x18] sm:$0xff]
      %v1856 = vld [vmem:[#allocation6 + $0x20] sm:$0xff]
      %v1857 = vld [vmem:[%s15] sm:$0x1]
      %v1858 = vperm.slane %v1857, 0
      %1860 = vrot.lane.b32.xlu0 %v1858, 123
      %v1861 = vpop.permute.xlu0 %1860
      %v1863 = vmul.f32 %v1853, %v1861
      %v1864 = vmul.f32 %v1854, %v1861
      %v1865 = vmul.f32 %v1855, %v1861
      %v1866 = vmul.f32 %v1856, %v1861
      %1871 = vrot.lane.b32.xlu0 %v1863, 5
      %v1872 = vpop.permute.xlu0 %1871
      %1873 = vrot.lane.b32.xlu0 %v1864, 5
      %v1874 = vpop.permute.xlu0 %1873
      %1875 = vrot.lane.b32.xlu0 %v1865, 5
      %v1876 = vpop.permute.xlu0 %1875
      %1877 = vrot.lane.b32.xlu0 %v1866, 5
      %v1878 = vpop.permute.xlu0 %1877
      %vm1879 = vcmask 39936
      %v1880 = vsel %vm1879, %v1872, %v1874
      %v1881 = vsel %vm1879, %v1876, %v1878
      %1884 = vst.msk [vmem:[#allocation7] sm:$0xff] %vm638, %v1880
      %1885 = vst.msk [vmem:[#allocation7 + $0x8] sm:$0xff] %vm638, %v1881
      %v1886 = vld [vmem:[#allocation6] sm:$0xff]
      %v1887 = vld [vmem:[#allocation6 + $0x8] sm:$0xff]
      %v1888 = vld [vmem:[#allocation6 + $0x18] sm:$0xff]
      %v1889 = vld [vmem:[#allocation6 + $0x20] sm:$0xff]
      %v1890 = vld [vmem:[%s15 + $0x1] sm:$0x1]
      %v1891 = vperm.slane %v1890, 0
      %1893 = vrot.lane.b32.xlu0 %v1891, 124
      %v1894 = vpop.permute.xlu0 %1893
      %v1896 = vmul.f32 %v1886, %v1894
      %v1897 = vmul.f32 %v1887, %v1894
      %v1898 = vmul.f32 %v1888, %v1894
      %v1899 = vmul.f32 %v1889, %v1894
      %1904 = vrot.lane.b32.xlu0 %v1896, 4
      %v1905 = vpop.permute.xlu0 %1904
      %1906 = vrot.lane.b32.xlu0 %v1897, 4
      %v1907 = vpop.permute.xlu0 %1906
      %1908 = vrot.lane.b32.xlu0 %v1898, 4
      %v1909 = vpop.permute.xlu0 %1908
      %1910 = vrot.lane.b32.xlu0 %v1899, 4
      %v1911 = vpop.permute.xlu0 %1910
      %vm1912 = vcmask 31744
      %v1913 = vsel %vm1912, %v1905, %v1907
      %v1914 = vsel %vm1912, %v1909, %v1911
      %1917 = vst.msk [vmem:[#allocation7 + $0x10] sm:$0xff] %vm638, %v1913
      %1918 = vst.msk [vmem:[#allocation7 + $0x18] sm:$0xff] %vm638, %v1914
      %v1919 = vld [vmem:[#allocation6] sm:$0xff]
      %v1920 = vld [vmem:[#allocation6 + $0x8] sm:$0xff]
      %v1921 = vld [vmem:[#allocation6 + $0x18] sm:$0xff]
      %v1922 = vld [vmem:[#allocation6 + $0x20] sm:$0xff]
      %v1923 = vld [vmem:[%s15 + $0x2] sm:$0x1]
      %v1924 = vperm.slane %v1923, 0
      %1926 = vrot.lane.b32.xlu0 %v1924, 125
      %v1927 = vpop.permute.xlu0 %1926
      %v1929 = vmul.f32 %v1919, %v1927
      %v1930 = vmul.f32 %v1920, %v1927
      %v1931 = vmul.f32 %v1921, %v1927
      %v1932 = vmul.f32 %v1922, %v1927
      %1937 = vrot.lane.b32.xlu0 %v1929, 3
      %v1938 = vpop.permute.xlu0 %1937
      %1939 = vrot.lane.b32.xlu0 %v1930, 3
      %v1940 = vpop.permute.xlu0 %1939
      %1941 = vrot.lane.b32.xlu0 %v1931, 3
      %v1942 = vpop.permute.xlu0 %1941
      %1943 = vrot.lane.b32.xlu0 %v1932, 3
      %v1944 = vpop.permute.xlu0 %1943
      %vm1945 = vcmask 23552
      %v1946 = vsel %vm1945, %v1938, %v1940
      %v1947 = vsel %vm1945, %v1942, %v1944
      %1950 = vst.msk [vmem:[#allocation7 + $0x20] sm:$0xff] %vm638, %v1946
      %1951 = vst.msk [vmem:[#allocation7 + $0x28] sm:$0xff] %vm638, %v1947
      %v1952 = vld [vmem:[#allocation6] sm:$0xff]
      %v1953 = vld [vmem:[#allocation6 + $0x8] sm:$0xff]
      %v1954 = vld [vmem:[#allocation6 + $0x18] sm:$0xff]
      %v1955 = vld [vmem:[#allocation6 + $0x20] sm:$0xff]
      %v1956 = vld [vmem:[%s15 + $0x3] sm:$0x1]
      %v1957 = vperm.slane %v1956, 0
      %1959 = vrot.lane.b32.xlu0 %v1957, 127
      %v1960 = vpop.permute.xlu0 %1959
      %v1962 = vmul.f32 %v1952, %v1960
      %v1963 = vmul.f32 %v1953, %v1960
      %v1964 = vmul.f32 %v1954, %v1960
      %v1965 = vmul.f32 %v1955, %v1960
      %1970 = vrot.lane.b32.xlu0 %v1962, 1
      %v1971 = vpop.permute.xlu0 %1970
      %1972 = vrot.lane.b32.xlu0 %v1963, 1
      %v1973 = vpop.permute.xlu0 %1972
      %1974 = vrot.lane.b32.xlu0 %v1964, 1
      %v1975 = vpop.permute.xlu0 %1974
      %1976 = vrot.lane.b32.xlu0 %v1965, 1
      %v1977 = vpop.permute.xlu0 %1976
      %v1978 = vsel %vm782, %v1971, %v1973
      %v1979 = vsel %vm782, %v1975, %v1977
      %1982 = vst.msk [vmem:[#allocation7 + $0x30] sm:$0xff] %vm638, %v1978
      %1983 = vst.msk [vmem:[#allocation7 + $0x38] sm:$0xff] %vm638, %v1979
      %v1984 = vld [vmem:[#allocation6 + $0x8] sm:$0xff]
      %v1985 = vld [vmem:[#allocation6 + $0x20] sm:$0xff]
      %v1986 = vld [vmem:[%s15 + $0x4] sm:$0x1]
      %v1987 = vperm.slane %v1986, 0
      %v1988 = vmul.f32 %v1984, %v1987
      %v1989 = vmul.f32 %v1985, %v1987
      %1990 = vst.msk [vmem:[#allocation7 + $0x40] sm:$0xff] %vm638, %v1988
      %1991 = vst.msk [vmem:[#allocation7 + $0x48] sm:$0xff] %vm638, %v1989
      %v1992 = vld [vmem:[#allocation6 + $0x8] sm:$0xff]
      %v1993 = vld [vmem:[#allocation6 + $0x20] sm:$0xff]
      %v1994 = vld [vmem:[%s15 + $0x5] sm:$0x1]
      %v1995 = vperm.slane %v1994, 0
      %1997 = vrot.lane.b32.xlu0 %v1995, 1
      %v1998 = vpop.permute.xlu0 %1997
      %v2000 = vmul.f32 %v1992, %v1998
      %v2001 = vmul.f32 %v1993, %v1998
      %2004 = vrot.lane.b32.xlu0 %v2000, 127
      %v2005 = vpop.permute.xlu0 %2004
      %2006 = vrot.lane.b32.xlu0 %v2001, 127
      %v2007 = vpop.permute.xlu0 %2006
      %2010 = vst.msk [vmem:[#allocation7 + $0x50] sm:$0xff] %vm638, %v2005
      %2011 = vst.msk [vmem:[#allocation7 + $0x58] sm:$0xff] %vm638, %v2007
      %v2012 = vld [vmem:[#allocation6 + $0x8] sm:$0xff]
      %v2013 = vld [vmem:[#allocation6 + $0x20] sm:$0xff]
      %v2014 = vld [vmem:[%s15 + $0x6] sm:$0x1]
      %v2015 = vperm.slane %v2014, 0
      %2017 = vrot.lane.b32.xlu0 %v2015, 3
      %v2018 = vpop.permute.xlu0 %2017
      %v2020 = vmul.f32 %v2012, %v2018
      %v2021 = vmul.f32 %v2013, %v2018
      %2024 = vrot.lane.b32.xlu0 %v2020, 125
      %v2025 = vpop.permute.xlu0 %2024
      %2026 = vrot.lane.b32.xlu0 %v2021, 125
      %v2027 = vpop.permute.xlu0 %2026
      %2030 = vst.msk [vmem:[#allocation7 + $0x60] sm:$0xff] %vm638, %v2025
      %2031 = vst.msk [vmem:[#allocation7 + $0x68] sm:$0xff] %vm638, %v2027
      %v2032 = vld [vmem:[#allocation6 + $0x8] sm:$0xff]
      %v2033 = vld [vmem:[#allocation6 + $0x20] sm:$0xff]
      %v2034 = vld [vmem:[%s15 + $0x7] sm:$0x1]
      %v2035 = vperm.slane %v2034, 0
      %2037 = vrot.lane.b32.xlu0 %v2035, 4
      %v2038 = vpop.permute.xlu0 %2037
      %v2040 = vmul.f32 %v2032, %v2038
      %v2041 = vmul.f32 %v2033, %v2038
      %2044 = vrot.lane.b32.xlu0 %v2040, 124
      %v2045 = vpop.permute.xlu0 %2044
      %2046 = vrot.lane.b32.xlu0 %v2041, 124
      %v2047 = vpop.permute.xlu0 %2046
      %2050 = vst.msk [vmem:[#allocation7 + $0x70] sm:$0xff] %vm638, %v2045
      %2051 = vst.msk [vmem:[#allocation7 + $0x78] sm:$0xff] %vm638, %v2047
      %v2052 = vld [vmem:[#allocation6 + $0x8] sm:$0xff]
      %v2053 = vld [vmem:[#allocation6 + $0x20] sm:$0xff]
      %v2054 = vld [vmem:[%s15 + $0x8] sm:$0x1]
      %v2055 = vperm.slane %v2054, 0
      %2057 = vrot.lane.b32.xlu0 %v2055, 5
      %v2058 = vpop.permute.xlu0 %2057
      %v2060 = vmul.f32 %v2052, %v2058
      %v2061 = vmul.f32 %v2053, %v2058
      %2064 = vrot.lane.b32.xlu0 %v2060, 123
      %v2065 = vpop.permute.xlu0 %2064
      %2066 = vrot.lane.b32.xlu0 %v2061, 123
      %v2067 = vpop.permute.xlu0 %2066
      %2070 = vst.msk [vmem:[#allocation7 + $0x80] sm:$0xff] %vm638, %v2065
      %2071 = vst.msk [vmem:[#allocation7 + $0x88] sm:$0xff] %vm638, %v2067
      %v2072 = vld [vmem:[%s9] sm:$0xff]
      %v2073 = vld [vmem:[%s9 + $0x8] sm:$0xff]
      %v2074 = vld [vmem:[%s9 + $0x10] sm:$0xff]
      %v2075 = vld [vmem:[%s9 + $0x18] sm:$0xff]
      %v2076 = vld [vmem:[#allocation7] sm:$0xff]
      %v2077 = vld [vmem:[#allocation7 + $0x8] sm:$0xff]
      %v2078 = vld [vmem:[#allocation7 + $0x10] sm:$0xff]
      %v2079 = vld [vmem:[#allocation7 + $0x18] sm:$0xff]
      %v2080 = vld [vmem:[#allocation7 + $0x20] sm:$0xff]
      %v2081 = vld [vmem:[#allocation7 + $0x28] sm:$0xff]
      %v2082 = vld [vmem:[#allocation7 + $0x30] sm:$0xff]
      %v2083 = vld [vmem:[#allocation7 + $0x38] sm:$0xff]
      %v2084 = vld [vmem:[#allocation7 + $0x40] sm:$0xff]
      %v2085 = vld [vmem:[#allocation7 + $0x48] sm:$0xff]
      %v2086 = vld [vmem:[#allocation7 + $0x50] sm:$0xff]
      %v2087 = vld [vmem:[#allocation7 + $0x58] sm:$0xff]
      %v2088 = vld [vmem:[#allocation7 + $0x60] sm:$0xff]
      %v2089 = vld [vmem:[#allocation7 + $0x68] sm:$0xff]
      %v2090 = vld [vmem:[#allocation7 + $0x70] sm:$0xff]
      %v2091 = vld [vmem:[#allocation7 + $0x78] sm:$0xff]
      %v2092 = vld [vmem:[#allocation7 + $0x80] sm:$0xff]
      %v2093 = vld [vmem:[#allocation7 + $0x88] sm:$0xff]
      %v2094 = vld [vmem:[%s10] sm:$0xff]
      %v2095 = vld [vmem:[%s10 + $0x8] sm:$0xff]
      %2097 = vset.pattern.permute.xlu0 0
      %2098 = vperm.xlu0 %2097, %v2094
      %v2099 = vpop.permute.xlu0 %2098
      %2102 = vset.pattern.permute.xlu0 0
      %2103 = vperm.xlu0 %2102, %v2095
      %v2104 = vpop.permute.xlu0 %2103
      %v2107 = vsel %vm638, %v2073, 0
      %v2110 = vsel %vm638, %v2075, 0
      %2112 = vmatpush.msra.mxu0 %v2091
      %2113 = vmatpush.msra.mxu0 %v2090
      %2114 = vmatpush.msra.mxu0 %v2089
      %2115 = vmatpush.msra.mxu0 %v2088
      %2116 = vmatpush.msra.mxu0 %v2087
      %2117 = vmatpush.msra.mxu0 %v2086
      %2118 = vmatpush.msra.mxu0 %v2085
      %2119 = vmatpush.msra.mxu0 %v2084
      %2120 = vmatpush.msra.mxu0 %v2083
      %2121 = vmatpush.msra.mxu0 %v2082
      %2122 = vmatpush.msra.mxu0 %v2081
      %2123 = vmatpush.msra.mxu0 %v2080
      %2124 = vmatpush.msra.mxu0 %v2079
      %2125 = vmatpush.msra.mxu0 %v2078
      %2126 = vmatpush.msra.mxu0 %v2077
      %2127 = vmatpush.msra.mxu0 %v2076
      %2128 = vmatmul.f32.gmra.mxu0 %v2072
      %v2129 = vpop.f32.mrf.mxu0
      %v2130 = vadd.f32 %v2099, %v2129
      %2131 = vmatmul.f32.gmra.mxu0 %v2074
      %v2132 = vpop.f32.mrf.mxu0
      %v2133 = vadd.f32 %v2104, %v2132
      %2134 = vdwg.mxu0
      %2135 = vmatpush.msra.mxu0 0.0
      %2136 = vmatpush.msra.mxu0 0.0
      %2137 = vmatpush.msra.mxu0 0.0
      %2138 = vmatpush.msra.mxu0 0.0
      %2139 = vmatpush.msra.mxu0 0.0
      %2140 = vmatpush.msra.mxu0 0.0
      %2141 = vmatpush.msra.mxu0 0.0
      %2142 = vmatpush.msra.mxu0 0.0
      %2143 = vmatpush.msra.mxu0 0.0
      %2144 = vmatpush.msra.mxu0 0.0
      %2145 = vmatpush.msra.mxu0 0.0
      %2146 = vmatpush.msra.mxu0 0.0
      %2147 = vmatpush.msra.mxu0 0.0
      %2148 = vmatpush.msra.mxu0 0.0
      %2149 = vmatpush.msra.mxu0 %v2093
      %2150 = vmatpush.msra.mxu0 %v2092
      %2151 = vmatmul.f32.gmra.mxu0 %v2107
      %v2152 = vpop.f32.mrf.mxu0
      %v2153 = vadd.f32 %v2130, %v2152
      %2154 = vmatmul.f32.gmra.mxu0 %v2110
      %v2155 = vpop.f32.mrf.mxu0
      %v2156 = vadd.f32 %v2133, %v2155
      %2157 = vdwg.mxu0
      %v2158 = vmul.f32 %v2153, 0.1
      %v2159 = vmul.f32 %v2156, 0.1
      %v2160 = vmul.f32 %v1840, 0.9
      %v2161 = vmul.f32 %v1843, 0.9
      %v2162 = vadd.f32 %v2158, %v2160
      %v2163 = vadd.f32 %v2159, %v2161
      %vm2164 = vcmp.ge.f32.partialorder %v2162, 0.0
      %vm2165 = vcmp.ge.f32.partialorder %v2163, 0.0
      %v2166 = vmul.f32 %v2162, 0.01
      %v2167 = vmul.f32 %v2163, 0.01
      %v2168 = vsel %vm2164, %v2162, %v2166
      %v2169 = vsel %vm2165, %v2163, %v2167
      %2170 = vst.msk [vmem:[#allocation6 + $0x8] sm:$0xff] %vm638, %v2168
      %2171 = vst.msk [vmem:[#allocation6 + $0x20] sm:$0xff] %vm638, %v2169
      %v2172 = vld [vmem:[#allocation6] sm:$0xff]
      %v2173 = vld [vmem:[#allocation6 + $0x8] sm:$0xff]
      %v2174 = vld [vmem:[#allocation6 + $0x18] sm:$0xff]
      %v2175 = vld [vmem:[#allocation6 + $0x20] sm:$0xff]
      %v2176 = vld [vmem:[%s15] sm:$0x1]
      %v2177 = vperm.slane %v2176, 0
      %2179 = vrot.lane.b32.xlu0 %v2177, 123
      %v2180 = vpop.permute.xlu0 %2179
      %v2182 = vmul.f32 %v2172, %v2180
      %v2183 = vmul.f32 %v2173, %v2180
      %v2184 = vmul.f32 %v2174, %v2180
      %v2185 = vmul.f32 %v2175, %v2180
      %2190 = vrot.lane.b32.xlu0 %v2182, 5
      %v2191 = vpop.permute.xlu0 %2190
      %2192 = vrot.lane.b32.xlu0 %v2183, 5
      %v2193 = vpop.permute.xlu0 %2192
      %2194 = vrot.lane.b32.xlu0 %v2184, 5
      %v2195 = vpop.permute.xlu0 %2194
      %2196 = vrot.lane.b32.xlu0 %v2185, 5
      %v2197 = vpop.permute.xlu0 %2196
      %v2198 = vsel %vm1879, %v2191, %v2193
      %v2199 = vsel %vm1879, %v2195, %v2197
      %2202 = vst.msk [vmem:[#allocation7] sm:$0xff] %vm638, %v2198
      %2203 = vst.msk [vmem:[#allocation7 + $0x8] sm:$0xff] %vm638, %v2199
      %v2204 = vld [vmem:[#allocation6] sm:$0xff]
      %v2205 = vld [vmem:[#allocation6 + $0x8] sm:$0xff]
      %v2206 = vld [vmem:[#allocation6 + $0x18] sm:$0xff]
      %v2207 = vld [vmem:[#allocation6 + $0x20] sm:$0xff]
      %v2208 = vld [vmem:[%s15 + $0x1] sm:$0x1]
      %v2209 = vperm.slane %v2208, 0
      %2211 = vrot.lane.b32.xlu0 %v2209, 124
      %v2212 = vpop.permute.xlu0 %2211
      %v2214 = vmul.f32 %v2204, %v2212
      %v2215 = vmul.f32 %v2205, %v2212
      %v2216 = vmul.f32 %v2206, %v2212
      %v2217 = vmul.f32 %v2207, %v2212
      %2222 = vrot.lane.b32.xlu0 %v2214, 4
      %v2223 = vpop.permute.xlu0 %2222
      %2224 = vrot.lane.b32.xlu0 %v2215, 4
      %v2225 = vpop.permute.xlu0 %2224
      %2226 = vrot.lane.b32.xlu0 %v2216, 4
      %v2227 = vpop.permute.xlu0 %2226
      %2228 = vrot.lane.b32.xlu0 %v2217, 4
      %v2229 = vpop.permute.xlu0 %2228
      %v2230 = vsel %vm1912, %v2223, %v2225
      %v2231 = vsel %vm1912, %v2227, %v2229
      %2234 = vst.msk [vmem:[#allocation7 + $0x10] sm:$0xff] %vm638, %v2230
      %2235 = vst.msk [vmem:[#allocation7 + $0x18] sm:$0xff] %vm638, %v2231
      %v2236 = vld [vmem:[#allocation6] sm:$0xff]
      %v2237 = vld [vmem:[#allocation6 + $0x8] sm:$0xff]
      %v2238 = vld [vmem:[#allocation6 + $0x18] sm:$0xff]
      %v2239 = vld [vmem:[#allocation6 + $0x20] sm:$0xff]
      %v2240 = vld [vmem:[%s15 + $0x2] sm:$0x1]
      %v2241 = vperm.slane %v2240, 0
      %2243 = vrot.lane.b32.xlu0 %v2241, 125
      %v2244 = vpop.permute.xlu0 %2243
      %v2246 = vmul.f32 %v2236, %v2244
      %v2247 = vmul.f32 %v2237, %v2244
      %v2248 = vmul.f32 %v2238, %v2244
      %v2249 = vmul.f32 %v2239, %v2244
      %2254 = vrot.lane.b32.xlu0 %v2246, 3
      %v2255 = vpop.permute.xlu0 %2254
      %2256 = vrot.lane.b32.xlu0 %v2247, 3
      %v2257 = vpop.permute.xlu0 %2256
      %2258 = vrot.lane.b32.xlu0 %v2248, 3
      %v2259 = vpop.permute.xlu0 %2258
      %2260 = vrot.lane.b32.xlu0 %v2249, 3
      %v2261 = vpop.permute.xlu0 %2260
      %v2262 = vsel %vm1945, %v2255, %v2257
      %v2263 = vsel %vm1945, %v2259, %v2261
      %2266 = vst.msk [vmem:[#allocation7 + $0x20] sm:$0xff] %vm638, %v2262
      %2267 = vst.msk [vmem:[#allocation7 + $0x28] sm:$0xff] %vm638, %v2263
      %v2268 = vld [vmem:[#allocation6] sm:$0xff]
      %v2269 = vld [vmem:[#allocation6 + $0x8] sm:$0xff]
      %v2270 = vld [vmem:[#allocation6 + $0x18] sm:$0xff]
      %v2271 = vld [vmem:[#allocation6 + $0x20] sm:$0xff]
      %v2272 = vld [vmem:[%s15 + $0x3] sm:$0x1]
      %v2273 = vperm.slane %v2272, 0
      %2275 = vrot.lane.b32.xlu0 %v2273, 127
      %v2276 = vpop.permute.xlu0 %2275
      %v2278 = vmul.f32 %v2268, %v2276
      %v2279 = vmul.f32 %v2269, %v2276
      %v2280 = vmul.f32 %v2270, %v2276
      %v2281 = vmul.f32 %v2271, %v2276
      %2286 = vrot.lane.b32.xlu0 %v2278, 1
      %v2287 = vpop.permute.xlu0 %2286
      %2288 = vrot.lane.b32.xlu0 %v2279, 1
      %v2289 = vpop.permute.xlu0 %2288
      %2290 = vrot.lane.b32.xlu0 %v2280, 1
      %v2291 = vpop.permute.xlu0 %2290
      %2292 = vrot.lane.b32.xlu0 %v2281, 1
      %v2293 = vpop.permute.xlu0 %2292
      %v2294 = vsel %vm782, %v2287, %v2289
      %v2295 = vsel %vm782, %v2291, %v2293
      %2298 = vst.msk [vmem:[#allocation7 + $0x30] sm:$0xff] %vm638, %v2294
      %2299 = vst.msk [vmem:[#allocation7 + $0x38] sm:$0xff] %vm638, %v2295
      %v2300 = vld [vmem:[#allocation6 + $0x8] sm:$0xff]
      %v2301 = vld [vmem:[#allocation6 + $0x20] sm:$0xff]
      %v2302 = vld [vmem:[%s15 + $0x4] sm:$0x1]
      %v2303 = vperm.slane %v2302, 0
      %v2304 = vmul.f32 %v2300, %v2303
      %v2305 = vmul.f32 %v2301, %v2303
      %2306 = vst.msk [vmem:[#allocation7 + $0x40] sm:$0xff] %vm638, %v2304
      %2307 = vst.msk [vmem:[#allocation7 + $0x48] sm:$0xff] %vm638, %v2305
      %v2308 = vld [vmem:[#allocation6 + $0x8] sm:$0xff]
      %v2309 = vld [vmem:[#allocation6 + $0x20] sm:$0xff]
      %v2310 = vld [vmem:[%s15 + $0x5] sm:$0x1]
      %v2311 = vperm.slane %v2310, 0
      %2313 = vrot.lane.b32.xlu0 %v2311, 1
      %v2314 = vpop.permute.xlu0 %2313
      %v2316 = vmul.f32 %v2308, %v2314
      %v2317 = vmul.f32 %v2309, %v2314
      %2320 = vrot.lane.b32.xlu0 %v2316, 127
      %v2321 = vpop.permute.xlu0 %2320
      %2322 = vrot.lane.b32.xlu0 %v2317, 127
      %v2323 = vpop.permute.xlu0 %2322
      %2326 = vst.msk [vmem:[#allocation7 + $0x50] sm:$0xff] %vm638, %v2321
      %2327 = vst.msk [vmem:[#allocation7 + $0x58] sm:$0xff] %vm638, %v2323
      %v2328 = vld [vmem:[#allocation6 + $0x8] sm:$0xff]
      %v2329 = vld [vmem:[#allocation6 + $0x20] sm:$0xff]
      %v2330 = vld [vmem:[%s15 + $0x6] sm:$0x1]
      %v2331 = vperm.slane %v2330, 0
      %2333 = vrot.lane.b32.xlu0 %v2331, 3
      %v2334 = vpop.permute.xlu0 %2333
      %v2336 = vmul.f32 %v2328, %v2334
      %v2337 = vmul.f32 %v2329, %v2334
      %2340 = vrot.lane.b32.xlu0 %v2336, 125
      %v2341 = vpop.permute.xlu0 %2340
      %2342 = vrot.lane.b32.xlu0 %v2337, 125
      %v2343 = vpop.permute.xlu0 %2342
      %2346 = vst.msk [vmem:[#allocation7 + $0x60] sm:$0xff] %vm638, %v2341
      %2347 = vst.msk [vmem:[#allocation7 + $0x68] sm:$0xff] %vm638, %v2343
      %v2348 = vld [vmem:[#allocation6 + $0x8] sm:$0xff]
      %v2349 = vld [vmem:[#allocation6 + $0x20] sm:$0xff]
      %v2350 = vld [vmem:[%s15 + $0x7] sm:$0x1]
      %v2351 = vperm.slane %v2350, 0
      %2353 = vrot.lane.b32.xlu0 %v2351, 4
      %v2354 = vpop.permute.xlu0 %2353
      %v2356 = vmul.f32 %v2348, %v2354
      %v2357 = vmul.f32 %v2349, %v2354
      %2360 = vrot.lane.b32.xlu0 %v2356, 124
      %v2361 = vpop.permute.xlu0 %2360
      %2362 = vrot.lane.b32.xlu0 %v2357, 124
      %v2363 = vpop.permute.xlu0 %2362
      %2366 = vst.msk [vmem:[#allocation7 + $0x70] sm:$0xff] %vm638, %v2361
      %2367 = vst.msk [vmem:[#allocation7 + $0x78] sm:$0xff] %vm638, %v2363
      %v2368 = vld [vmem:[#allocation6 + $0x8] sm:$0xff]
      %v2369 = vld [vmem:[#allocation6 + $0x20] sm:$0xff]
      %v2370 = vld [vmem:[%s15 + $0x8] sm:$0x1]
      %v2371 = vperm.slane %v2370, 0
      %2373 = vrot.lane.b32.xlu0 %v2371, 5
      %v2374 = vpop.permute.xlu0 %2373
      %v2376 = vmul.f32 %v2368, %v2374
      %v2377 = vmul.f32 %v2369, %v2374
      %2380 = vrot.lane.b32.xlu0 %v2376, 123
      %v2381 = vpop.permute.xlu0 %2380
      %2382 = vrot.lane.b32.xlu0 %v2377, 123
      %v2383 = vpop.permute.xlu0 %2382
      %2386 = vst.msk [vmem:[#allocation7 + $0x80] sm:$0xff] %vm638, %v2381
      %2387 = vst.msk [vmem:[#allocation7 + $0x88] sm:$0xff] %vm638, %v2383
      %v2388 = vld [vmem:[%s11] sm:$0xff]
      %v2389 = vld [vmem:[%s11 + $0x8] sm:$0xff]
      %v2390 = vld [vmem:[%s11 + $0x10] sm:$0xff]
      %v2391 = vld [vmem:[%s11 + $0x18] sm:$0xff]
      %v2392 = vld [vmem:[#allocation7] sm:$0xff]
      %v2393 = vld [vmem:[#allocation7 + $0x8] sm:$0xff]
      %v2394 = vld [vmem:[#allocation7 + $0x10] sm:$0xff]
      %v2395 = vld [vmem:[#allocation7 + $0x18] sm:$0xff]
      %v2396 = vld [vmem:[#allocation7 + $0x20] sm:$0xff]
      %v2397 = vld [vmem:[#allocation7 + $0x28] sm:$0xff]
      %v2398 = vld [vmem:[#allocation7 + $0x30] sm:$0xff]
      %v2399 = vld [vmem:[#allocation7 + $0x38] sm:$0xff]
      %v2400 = vld [vmem:[#allocation7 + $0x40] sm:$0xff]
      %v2401 = vld [vmem:[#allocation7 + $0x48] sm:$0xff]
      %v2402 = vld [vmem:[#allocation7 + $0x50] sm:$0xff]
      %v2403 = vld [vmem:[#allocation7 + $0x58] sm:$0xff]
      %v2404 = vld [vmem:[#allocation7 + $0x60] sm:$0xff]
      %v2405 = vld [vmem:[#allocation7 + $0x68] sm:$0xff]
      %v2406 = vld [vmem:[#allocation7 + $0x70] sm:$0xff]
      %v2407 = vld [vmem:[#allocation7 + $0x78] sm:$0xff]
      %v2408 = vld [vmem:[#allocation7 + $0x80] sm:$0xff]
      %v2409 = vld [vmem:[#allocation7 + $0x88] sm:$0xff]
      %v2410 = vld [vmem:[%s12] sm:$0xff]
      %v2411 = vld [vmem:[%s12 + $0x8] sm:$0xff]
      %2413 = vset.pattern.permute.xlu0 0
      %2414 = vperm.xlu0 %2413, %v2410
      %v2415 = vpop.permute.xlu0 %2414
      %2418 = vset.pattern.permute.xlu0 0
      %2419 = vperm.xlu0 %2418, %v2411
      %v2420 = vpop.permute.xlu0 %2419
      %v2423 = vsel %vm638, %v2389, 0
      %v2426 = vsel %vm638, %v2391, 0
      %2428 = vmatpush.msra.mxu0 %v2407
      %2429 = vmatpush.msra.mxu0 %v2406
      %2430 = vmatpush.msra.mxu0 %v2405
      %2431 = vmatpush.msra.mxu0 %v2404
      %2432 = vmatpush.msra.mxu0 %v2403
      %2433 = vmatpush.msra.mxu0 %v2402
      %2434 = vmatpush.msra.mxu0 %v2401
      %2435 = vmatpush.msra.mxu0 %v2400
      %2436 = vmatpush.msra.mxu0 %v2399
      %2437 = vmatpush.msra.mxu0 %v2398
      %2438 = vmatpush.msra.mxu0 %v2397
      %2439 = vmatpush.msra.mxu0 %v2396
      %2440 = vmatpush.msra.mxu0 %v2395
      %2441 = vmatpush.msra.mxu0 %v2394
      %2442 = vmatpush.msra.mxu0 %v2393
      %2443 = vmatpush.msra.mxu0 %v2392
      %2444 = vmatmul.f32.gmra.mxu0 %v2388
      %v2445 = vpop.f32.mrf.mxu0
      %v2446 = vadd.f32 %v2415, %v2445
      %2447 = vmatmul.f32.gmra.mxu0 %v2390
      %v2448 = vpop.f32.mrf.mxu0
      %v2449 = vadd.f32 %v2420, %v2448
      %2450 = vdwg.mxu0
      %2451 = vmatpush.msra.mxu0 0.0
      %2452 = vmatpush.msra.mxu0 0.0
      %2453 = vmatpush.msra.mxu0 0.0
      %2454 = vmatpush.msra.mxu0 0.0
      %2455 = vmatpush.msra.mxu0 0.0
      %2456 = vmatpush.msra.mxu0 0.0
      %2457 = vmatpush.msra.mxu0 0.0
      %2458 = vmatpush.msra.mxu0 0.0
      %2459 = vmatpush.msra.mxu0 0.0
      %2460 = vmatpush.msra.mxu0 0.0
      %2461 = vmatpush.msra.mxu0 0.0
      %2462 = vmatpush.msra.mxu0 0.0
      %2463 = vmatpush.msra.mxu0 0.0
      %2464 = vmatpush.msra.mxu0 0.0
      %2465 = vmatpush.msra.mxu0 %v2409
      %2466 = vmatpush.msra.mxu0 %v2408
      %2467 = vmatmul.f32.gmra.mxu0 %v2423
      %v2468 = vpop.f32.mrf.mxu0
      %v2469 = vadd.f32 %v2446, %v2468
      %2470 = vmatmul.f32.gmra.mxu0 %v2426
      %v2471 = vpop.f32.mrf.mxu0
      %v2472 = vadd.f32 %v2449, %v2471
      %2473 = vdwg.mxu0
      %v2474 = vmul.f32 %v2469, 0.1
      %v2475 = vmul.f32 %v2472, 0.1
      %v2476 = vmul.f32 %v2162, 0.9
      %v2477 = vmul.f32 %v2163, 0.9
      %v2478 = vadd.f32 %v2474, %v2476
      %v2479 = vadd.f32 %v2475, %v2477
      %v2480 = vld [vmem:[%s18] sm:$0xff]
      %v2481 = vld [vmem:[%s18 + $0x8] sm:$0xff]
      %v2482 = vmul.f32 %v2478, %v2480
      %v2483 = vmul.f32 %v2479, %v2481
      %v2484 = vsel %vm638, %v2482, 0.0
      %2485 = vadd.xlane.f32.xlu0 %v2484
      %v2486 = vpop.xlane.xlu0 %2485
      %v2487 = vsel %vm638, %v2483, 0.0
      %2488 = vadd.xlane.f32.xlu0 %v2487
      %v2489 = vpop.xlane.xlu0 %2488
      %v2490 = vadd.f32 %v2486, %v2489
      %v2491 = vrot.slane %v2490, 4
      %v2492 = vadd.f32 %v2490, %v2491
      %v2493 = vrot.slane %v2492, 2
      %v2494 = vadd.f32 %v2492, %v2493
      %v2495 = vrot.slane %v2494, 1
      %v2496 = vadd.f32 %v2494, %v2495
      %v2497 = vld [vmem:[#allocation8] sm:$0x1]
      %v2498 = vadd.f32 %v2496, %v2497
      %vm2499 = vcmask 0
      %2500 = vst.msk [vmem:[%s627] sm:$0x1] %vm2499, %v2498
      %p2501 = scmp.lt.s32.totalorder %s33, 1
      %s2502 = scalar_select %p2501, %s33, 1
      %s2503 = scalar_lea.vmem %s20, %s2502
      // Predicated region
      $region101: #{tpu_custom_call.1} parent=99 // pred_check
        %p2504 = pneg %p476
      $region102: #{tpu_custom_call.1} parent=99 // pred_check_branch
        %2506 = sbr.rel (%p2504) target = $region104
      $region103: #{tpu_custom_call.1} parent=99 // pred_region
        _
      $region104: #{tpu_custom_call.1} parent=99 // pred_fallthru
        _
    $region100: #{tpu_custom_call.1} parent=5 // pred_fallthru
      _
    %p2507 = scmp.le.s32.totalorder 2, %s28
    // Predicated region
    $region105: #{tpu_custom_call.1} parent=5 // pred_check
      %p2508 = pneg %p2507
    $region106: #{tpu_custom_call.1} parent=5 // pred_check_branch
      %2510 = sbr.rel (%p2508) target = $region108
    $region107: #{tpu_custom_call.1} parent=5 // pred_region
      %s2511 = ssub.s32 %s28, 2
      // Predicated region
      $region109: #{tpu_custom_call.1} parent=107 // pred_check
        %p2512 = pneg %p482
      $region110: #{tpu_custom_call.1} parent=107 // pred_check_branch
        %2514 = sbr.rel (%p2512) target = $region112
      $region111: #{tpu_custom_call.1} parent=107 // pred_region
        %p2515 = scmp.lt.s32.totalorder %s34, 1
        %s2516 = scalar_select %p2515, %s34, 1
        %s2517 = scalar_lea.vmem %s20, %s2516
      $region112: #{tpu_custom_call.1} parent=107 // pred_fallthru
        _
    $region108: #{tpu_custom_call.1} parent=5 // pred_fallthru
      _
  $region6: #{tpu_custom_call.1} parent=0 // loop_footer
    %s32 = sadd.s32 1, %s28
  $region7: #{tpu_custom_call.1} parent=0 // loop_footer_branch
    %27 = sbr.rel target = $region3
  $region8: #{tpu_custom_call.1} parent=0 // loop_exit
    _

</llo_original>
